<compile_context>
chip_gen: v7x
topology: tpu7x:2x2x1
jax: 0.10.0
libtpu: 0.0.40
codegen_flags: <defaults>
</compile_context>

<pallas_src>
import jax
import jax.numpy as jnp
from jax import lax
from jax.experimental import pallas as pl
from jax.experimental.pallas import tpu as pltpu
import numpy as np


# ----------------------------- Pallas kernel --------------------------------

def make_fused_lstm_kernel(num_layers, T, B, H, unroll):
    """Fused kernel: num_layers LSTM layers over the full sequence + FC head.

    Inputs (all resident in VMEM):
      x_ref:                (T*B, Din)   time-major, flattened sequence
      per layer l:
        wih_ref:            (Din_l, 4H)  input->hidden weights, gate cols [i|f|o|g]
        whh_ref:            (H, 4H)      hidden->hidden weights, gate cols [i|f|o|g]
        b_ref:              (1, 4H)      combined bias (b_ih + b_hh), reordered
      wfc_ref:              (H, O)       FC weights (transposed)
      bfc_ref:              (1, O)       FC bias
    Output:
      out_ref:              (B, O)
    Scratch (VMEM):
      gx_sc:   (T*B, 4H)  precomputed input-projection gates of current layer
      hseq_sc: (T*B, H)   hidden-state sequence of current (non-final) layer
      h_sc:    (B, H)     running hidden state
      c_sc:    (B, H)     running cell state
    """

    def kernel(*refs):
        x_ref = refs[0]
        layer_refs = refs[1:1 + 3 * num_layers]
        wfc_ref = refs[1 + 3 * num_layers]
        bfc_ref = refs[2 + 3 * num_layers]
        out_ref = refs[3 + 3 * num_layers]
        gx_sc, hseq_sc, h_sc, c_sc = refs[4 + 3 * num_layers:]

        for l in range(num_layers):
            wih_ref, whh_ref, b_ref = layer_refs[3 * l:3 * l + 3]
            inp_ref = x_ref if l == 0 else hseq_sc

            # Hoisted input projection: one batched MXU matmul for the whole
            # sequence, bias folded in (removes T tiny matmuls + T broadcasts
            # from the serial recurrence).
            gx_sc[...] = (
                jnp.dot(inp_ref[...], wih_ref[...],
                        preferred_element_type=jnp.float32)
                + b_ref[...]
            )

            h_sc[...] = jnp.zeros_like(h_sc)
            c_sc[...] = jnp.zeros_like(c_sc)
            write_seq = l < num_layers - 1  # last layer only needs h_T

            def step(t, carry, whh_ref=whh_ref, write_seq=write_seq):
                row = pl.multiple_of(t * B, 8)
                gates = (
                    gx_sc[pl.ds(row, B), :]
                    + jnp.dot(h_sc[...], whh_ref[...],
                              preferred_element_type=jnp.float32)
                )                                            # (B, 4H)
                # Gate layout [i|f|o|g]: sigmoid on one contiguous 3H block,
                # tanh on the remaining H block.
                sig = jax.nn.sigmoid(gates[:, :3 * H])
                g = jnp.tanh(gates[:, 3 * H:])
                i_g = sig[:, 0 * H:1 * H]
                f_g = sig[:, 1 * H:2 * H]
                o_g = sig[:, 2 * H:3 * H]
                c_new = f_g * c_sc[...] + i_g * g
                h_new = o_g * jnp.tanh(c_new)
                c_sc[...] = c_new
                h_sc[...] = h_new
                if write_seq:
                    hseq_sc[pl.ds(row, B), :] = h_new
                return carry

            lax.fori_loop(0, T, step, 0, unroll=unroll)

        # FC head on h_T of the last layer (== out[:, -1, :]); dropout is
        # identity at inference.
        out_ref[...] = (
            jnp.dot(h_sc[...], wfc_ref[...], preferred_element_type=jnp.float32)
            + bfc_ref[...]
        )

    return kernel


# ------------------------------ JAX wrapper ----------------------------------

def lstm_model_forward(x, params):
    """Forward pass matching LSTMModel.forward (inference semantics).

    x: (B, T, input_size)  -> returns (B, output_size)
    """
    B, T, Din = x.shape
    num_layers = len(params["lstm"])
    H = params["lstm"][0]["w_hh"].shape[1]
    O = params["fc_w"].shape[0]

    # Pad batch to a multiple of 8 (sublane) so MXU rows / vreg sublanes are
    # better occupied and the time-major flatten is layout-trivial.
    B_pad = max(8, ((B + 7) // 8) * 8)
    if B_pad != B:
        x = jnp.pad(x, ((0, B_pad - B), (0, 0), (0, 0)))
    # (B_pad, T, Din) -> time-major (T, B_pad, Din) -> flat (T*B_pad, Din)
    x_flat = jnp.transpose(x, (1, 0, 2)).reshape(T * B_pad, Din)

    # PyTorch gate order is [i, f, g, o]; reorder to [i, f, o, g] so sigmoid /
    # tanh each act on one contiguous column block inside the kernel.
    def reorder_gates(w):
        return jnp.concatenate(
            [w[0:2 * H], w[3 * H:4 * H], w[2 * H:3 * H]], axis=0)

    args = [x_flat]
    for layer in params["lstm"]:
        wih = jnp.transpose(reorder_gates(layer["w_ih"]))          # (Din_l, 4H)
        whh = jnp.transpose(reorder_gates(layer["w_hh"]))          # (H, 4H)
        b = reorder_gates(layer["b_ih"] + layer["b_hh"]).reshape(1, 4 * H)
        args += [wih, whh, b]
    args += [jnp.transpose(params["fc_w"]), params["fc_b"].reshape(1, O)]

    unroll = min(T, 8)  # cap unroll; full unroll only for short sequences
    kernel = make_fused_lstm_kernel(num_layers, T, B_pad, H, unroll)

    vmem = pl.BlockSpec(memory_space=pltpu.MemorySpace.VMEM)
    # TODO(synk): for large T*B (esp. v7x 64 MiB VMEM) tile the sequence with a
    # grid over T-chunks and shard batch across TensorCores; unnecessary here.
    out = pl.pallas_call(
        kernel,
        out_shape=jax.ShapeDtypeStruct((B_pad, O), jnp.float32),
        in_specs=[vmem] * len(args),
        out_specs=vmem,
        scratch_shapes=[
            pltpu.VMEM((T * B_pad, 4 * H), jnp.float32),   # gx (input gates)
            pltpu.VMEM((T * B_pad, H), jnp.float32),       # inter-layer h seq
            pltpu.VMEM((B_pad, H), jnp.float32),           # h_t
            pltpu.VMEM((B_pad, H), jnp.float32),           # c_t
        ],
    )(*args)
    return out[:B]


# ------------------------------ param init -----------------------------------

def init_params(key, input_size, hidden_size, num_layers, output_size):
    k = 1.0 / np.sqrt(hidden_size)
    params = {"lstm": []}
    for layer in range(num_layers):
        din = input_size if layer == 0 else hidden_size
        key, k1, k2, k3, k4 = jax.random.split(key, 5)
        params["lstm"].append({
            "w_ih": jax.random.uniform(k1, (4 * hidden_size, din), jnp.float32, -k, k),
            "w_hh": jax.random.uniform(k2, (4 * hidden_size, hidden_size), jnp.float32, -k, k),
            "b_ih": jax.random.uniform(k3, (4 * hidden_size,), jnp.float32, -k, k),
            "b_hh": jax.random.uniform(k4, (4 * hidden_size,), jnp.float32, -k, k),
        })
    key, k1, k2 = jax.random.split(key, 3)
    kf = 1.0 / np.sqrt(hidden_size)
    params["fc_w"] = jax.random.uniform(k1, (output_size, hidden_size), jnp.float32, -kf, kf)
    params["fc_b"] = jax.random.uniform(k2, (output_size,), jnp.float32, -kf, kf)
    return params


# -------------------------- pure-JAX reference --------------------------------

def lstm_model_ref(x, params):
    h = jnp.transpose(x, (1, 0, 2))            # (T, B, Din)
    for layer in params["lstm"]:
        T, B, _ = h.shape
        H = layer["w_hh"].shape[1]
        wih_t, whh_t = layer["w_ih"].T, layer["w_hh"].T
        b = layer["b_ih"] + layer["b_hh"]
        ht = jnp.zeros((B, H), jnp.float32)
        ct = jnp.zeros((B, H), jnp.float32)
        outs = []
        for t in range(T):
            g = h[t] @ wih_t + ht @ whh_t + b
            i = jax.nn.sigmoid(g[:, 0 * H:1 * H])
            f = jax.nn.sigmoid(g[:, 1 * H:2 * H])
            gg = jnp.tanh(g[:, 2 * H:3 * H])
            o = jax.nn.sigmoid(g[:, 3 * H:4 * H])
            ct = f * ct + i * gg
            ht = o * jnp.tanh(ct)
            outs.append(ht)
        h = jnp.stack(outs, axis=0)
    return h[-1] @ params["fc_w"].T + params["fc_b"]


# ----------------------------------- main -------------------------------------

if __name__ == "__main__":
    B, T = 2, 8
    input_size, hidden_size, num_layers, output_size = 16, 32, 2, 1

    key = jax.random.PRNGKey(0)
    key, kx = jax.random.split(key)
    x = jax.random.normal(kx, (B, T, input_size), jnp.float32)

    params = init_params(key, input_size, hidden_size, num_layers, output_size)

    out = jax.block_until_ready(lstm_model_forward(x, params))
    ref = jax.block_until_ready(lstm_model_ref(x, params))

    assert out.shape == (B, output_size)
    np.testing.assert_allclose(np.asarray(out), np.asarray(ref), atol=2e-3, rtol=2e-3)

    print("KERNEL_OK")
</pallas_src>

<mosaic_0001>
module attributes {stable_mosaic.version = 11 : i64} {
  func.func @kernel(%arg0: memref<64x16xf32, #tpu.memory_space<vmem>>, %arg1: memref<16x128xf32, #tpu.memory_space<vmem>>, %arg2: memref<32x128xf32, #tpu.memory_space<vmem>>, %arg3: memref<1x128xf32, #tpu.memory_space<vmem>>, %arg4: memref<32x128xf32, #tpu.memory_space<vmem>>, %arg5: memref<32x128xf32, #tpu.memory_space<vmem>>, %arg6: memref<1x128xf32, #tpu.memory_space<vmem>>, %arg7: memref<32x1xf32, #tpu.memory_space<vmem>>, %arg8: memref<1x1xf32, #tpu.memory_space<vmem>>, %arg9: memref<8x1xf32, #tpu.memory_space<vmem>>, %arg10: memref<64x128xf32, #tpu.memory_space<vmem>>, %arg11: memref<64x32xf32, #tpu.memory_space<vmem>>, %arg12: memref<8x32xf32, #tpu.memory_space<vmem>>, %arg13: memref<8x32xf32, #tpu.memory_space<vmem>>) attributes {dimension_semantics = [], scalar_prefetch = 0 : i64, scratch_operands = 4 : i64, tpu.core_type = #tpu.core_type<tc>} {
    %c0 = arith.constant 0 : index
    %c0_0 = arith.constant 0 : index
    %0 = vector.load %arg0[%c0, %c0_0] : memref<64x16xf32, #tpu.memory_space<vmem>>, vector<64x16xf32>
    %c0_1 = arith.constant 0 : index
    %c0_2 = arith.constant 0 : index
    %1 = vector.load %arg1[%c0_1, %c0_2] : memref<16x128xf32, #tpu.memory_space<vmem>>, vector<16x128xf32>
    %cst = arith.constant dense<0.000000e+00> : vector<64x128xf32>
    %2 = tpu.matmul %0, %1, %cst {dimension_numbers = #tpu.dot_dimension_numbers<[1], [0], [0], [1], [0, 0, 1, 1], [], []>} : vector<64x16xf32>, vector<16x128xf32>, vector<64x128xf32> -> vector<64x128xf32>
    %c0_3 = arith.constant 0 : index
    %c0_4 = arith.constant 0 : index
    %3 = vector.load %arg3[%c0_3, %c0_4] : memref<1x128xf32, #tpu.memory_space<vmem>>, vector<1x128xf32>
    %4 = vector.broadcast %3 : vector<1x128xf32> to vector<64x128xf32>
    %5 = arith.addf %2, %4 : vector<64x128xf32>
    %c0_5 = arith.constant 0 : index
    %c0_6 = arith.constant 0 : index
    %6 = vector.load %arg10[%c0_5, %c0_6] : memref<64x128xf32, #tpu.memory_space<vmem>>, vector<64x128xf32>
    tpu.vector_store %arg10[%c0_5, %c0_6], %5 {strides = array<i32>} : memref<64x128xf32, #tpu.memory_space<vmem>>, vector<64x128xf32>,
    %cst_7 = arith.constant 0.000000e+00 : f32
    %7 = vector.broadcast %cst_7 : f32 to vector<8x32xf32>
    %c0_8 = arith.constant 0 : index
    %c0_9 = arith.constant 0 : index
    %8 = vector.load %arg12[%c0_8, %c0_9] : memref<8x32xf32, #tpu.memory_space<vmem>>, vector<8x32xf32>
    tpu.vector_store %arg12[%c0_8, %c0_9], %7 {strides = array<i32>} : memref<8x32xf32, #tpu.memory_space<vmem>>, vector<8x32xf32>,
    %cst_10 = arith.constant 0.000000e+00 : f32
    %9 = vector.broadcast %cst_10 : f32 to vector<8x32xf32>
    %c0_11 = arith.constant 0 : index
    %c0_12 = arith.constant 0 : index
    %10 = vector.load %arg13[%c0_11, %c0_12] : memref<8x32xf32, #tpu.memory_space<vmem>>, vector<8x32xf32>
    tpu.vector_store %arg13[%c0_11, %c0_12], %9 {strides = array<i32>} : memref<8x32xf32, #tpu.memory_space<vmem>>, vector<8x32xf32>,
    %c0_i32 = arith.constant 0 : i32
    %c8_i32 = arith.constant 8 : i32
    %11 = arith.muli %c0_i32, %c8_i32 : i32
    %12 = tpu.assume_multiple %11, 8 : i32
    %13 = arith.index_cast %12 : i32 to index
    %c0_13 = arith.constant 0 : index
    %14 = vector.load %arg10[%13, %c0_13] : memref<64x128xf32, #tpu.memory_space<vmem>>, vector<8x128xf32>
    %c0_14 = arith.constant 0 : index
    %c0_15 = arith.constant 0 : index
    %15 = vector.load %arg12[%c0_14, %c0_15] : memref<8x32xf32, #tpu.memory_space<vmem>>, vector<8x32xf32>
    %c0_16 = arith.constant 0 : index
    %c0_17 = arith.constant 0 : index
    %16 = vector.load %arg2[%c0_16, %c0_17] : memref<32x128xf32, #tpu.memory_space<vmem>>, vector<32x128xf32>
    %cst_18 = arith.constant dense<0.000000e+00> : vector<8x128xf32>
    %17 = tpu.matmul %15, %16, %cst_18 {dimension_numbers = #tpu.dot_dimension_numbers<[1], [0], [0], [1], [0, 0, 1, 1], [], []>} : vector<8x32xf32>, vector<32x128xf32>, vector<8x128xf32> -> vector<8x128xf32>
    %18 = arith.addf %14, %17 : vector<8x128xf32>
    %19 = vector.extract_strided_slice %18 {offsets = [0, 0], sizes = [8, 96], strides = [1, 1]} : vector<8x128xf32> to vector<8x96xf32>
    %20 = arith.negf %19 : vector<8x96xf32>
    %21 = math.exp %20 : vector<8x96xf32>
    %cst_19 = arith.constant 1.000000e+00 : f32
    %22 = vector.broadcast %cst_19 : f32 to vector<8x96xf32>
    %23 = arith.addf %22, %21 : vector<8x96xf32>
    %24 = arith.divf %22, %23 : vector<8x96xf32>
    %25 = vector.extract_strided_slice %18 {offsets = [0, 96], sizes = [8, 32], strides = [1, 1]} : vector<8x128xf32> to vector<8x32xf32>
    %26 = math.tanh %25 : vector<8x32xf32>
    %27 = vector.extract_strided_slice %24 {offsets = [0, 0], sizes = [8, 32], strides = [1, 1]} : vector<8x96xf32> to vector<8x32xf32>
    %28 = vector.extract_strided_slice %24 {offsets = [0, 32], sizes = [8, 32], strides = [1, 1]} : vector<8x96xf32> to vector<8x32xf32>
    %29 = vector.extract_strided_slice %24 {offsets = [0, 64], sizes = [8, 32], strides = [1, 1]} : vector<8x96xf32> to vector<8x32xf32>
    %c0_20 = arith.constant 0 : index
    %c0_21 = arith.constant 0 : index
    %30 = vector.load %arg13[%c0_20, %c0_21] : memref<8x32xf32, #tpu.memory_space<vmem>>, vector<8x32xf32>
    %31 = arith.mulf %28, %30 : vector<8x32xf32>
    %32 = arith.mulf %27, %26 : vector<8x32xf32>
    %33 = arith.addf %31, %32 : vector<8x32xf32>
    %34 = math.tanh %33 : vector<8x32xf32>
    %35 = arith.mulf %29, %34 : vector<8x32xf32>
    %c0_22 = arith.constant 0 : index
    %c0_23 = arith.constant 0 : index
    %36 = vector.load %arg13[%c0_22, %c0_23] : memref<8x32xf32, #tpu.memory_space<vmem>>, vector<8x32xf32>
    tpu.vector_store %arg13[%c0_22, %c0_23], %33 {strides = array<i32>} : memref<8x32xf32, #tpu.memory_space<vmem>>, vector<8x32xf32>,
    %c0_24 = arith.constant 0 : index
    %c0_25 = arith.constant 0 : index
    %37 = vector.load %arg12[%c0_24, %c0_25] : memref<8x32xf32, #tpu.memory_space<vmem>>, vector<8x32xf32>
    tpu.vector_store %arg12[%c0_24, %c0_25], %35 {strides = array<i32>} : memref<8x32xf32, #tpu.memory_space<vmem>>, vector<8x32xf32>,
    %38 = arith.index_cast %12 : i32 to index
    %c0_26 = arith.constant 0 : index
    %39 = vector.load %arg11[%38, %c0_26] : memref<64x32xf32, #tpu.memory_space<vmem>>, vector<8x32xf32>
    tpu.vector_store %arg11[%38, %c0_26], %35 {strides = array<i32>} : memref<64x32xf32, #tpu.memory_space<vmem>>, vector<8x32xf32>,
    %c1_i32 = arith.constant 1 : i32
    %c8_i32_27 = arith.constant 8 : i32
    %40 = arith.muli %c1_i32, %c8_i32_27 : i32
    %41 = tpu.assume_multiple %40, 8 : i32
    %42 = arith.index_cast %41 : i32 to index
    %c0_28 = arith.constant 0 : index
    %43 = vector.load %arg10[%42, %c0_28] : memref<64x128xf32, #tpu.memory_space<vmem>>, vector<8x128xf32>
    %c0_29 = arith.constant 0 : index
    %c0_30 = arith.constant 0 : index
    %44 = vector.load %arg12[%c0_29, %c0_30] : memref<8x32xf32, #tpu.memory_space<vmem>>, vector<8x32xf32>
    %c0_31 = arith.constant 0 : index
    %c0_32 = arith.constant 0 : index
    %45 = vector.load %arg2[%c0_31, %c0_32] : memref<32x128xf32, #tpu.memory_space<vmem>>, vector<32x128xf32>
    %cst_33 = arith.constant dense<0.000000e+00> : vector<8x128xf32>
    %46 = tpu.matmul %44, %45, %cst_33 {dimension_numbers = #tpu.dot_dimension_numbers<[1], [0], [0], [1], [0, 0, 1, 1], [], []>} : vector<8x32xf32>, vector<32x128xf32>, vector<8x128xf32> -> vector<8x128xf32>
    %47 = arith.addf %43, %46 : vector<8x128xf32>
    %48 = vector.extract_strided_slice %47 {offsets = [0, 0], sizes = [8, 96], strides = [1, 1]} : vector<8x128xf32> to vector<8x96xf32>
    %49 = arith.negf %48 : vector<8x96xf32>
    %50 = math.exp %49 : vector<8x96xf32>
    %cst_34 = arith.constant 1.000000e+00 : f32
    %51 = vector.broadcast %cst_34 : f32 to vector<8x96xf32>
    %52 = arith.addf %51, %50 : vector<8x96xf32>
    %53 = arith.divf %51, %52 : vector<8x96xf32>
    %54 = vector.extract_strided_slice %47 {offsets = [0, 96], sizes = [8, 32], strides = [1, 1]} : vector<8x128xf32> to vector<8x32xf32>
    %55 = math.tanh %54 : vector<8x32xf32>
    %56 = vector.extract_strided_slice %53 {offsets = [0, 0], sizes = [8, 32], strides = [1, 1]} : vector<8x96xf32> to vector<8x32xf32>
    %57 = vector.extract_strided_slice %53 {offsets = [0, 32], sizes = [8, 32], strides = [1, 1]} : vector<8x96xf32> to vector<8x32xf32>
    %58 = vector.extract_strided_slice %53 {offsets = [0, 64], sizes = [8, 32], strides = [1, 1]} : vector<8x96xf32> to vector<8x32xf32>
    %c0_35 = arith.constant 0 : index
    %c0_36 = arith.constant 0 : index
    %59 = vector.load %arg13[%c0_35, %c0_36] : memref<8x32xf32, #tpu.memory_space<vmem>>, vector<8x32xf32>
    %60 = arith.mulf %57, %59 : vector<8x32xf32>
    %61 = arith.mulf %56, %55 : vector<8x32xf32>
    %62 = arith.addf %60, %61 : vector<8x32xf32>
    %63 = math.tanh %62 : vector<8x32xf32>
    %64 = arith.mulf %58, %63 : vector<8x32xf32>
    %c0_37 = arith.constant 0 : index
    %c0_38 = arith.constant 0 : index
    %65 = vector.load %arg13[%c0_37, %c0_38] : memref<8x32xf32, #tpu.memory_space<vmem>>, vector<8x32xf32>
    tpu.vector_store %arg13[%c0_37, %c0_38], %62 {strides = array<i32>} : memref<8x32xf32, #tpu.memory_space<vmem>>, vector<8x32xf32>,
    %c0_39 = arith.constant 0 : index
    %c0_40 = arith.constant 0 : index
    %66 = vector.load %arg12[%c0_39, %c0_40] : memref<8x32xf32, #tpu.memory_space<vmem>>, vector<8x32xf32>
    tpu.vector_store %arg12[%c0_39, %c0_40], %64 {strides = array<i32>} : memref<8x32xf32, #tpu.memory_space<vmem>>, vector<8x32xf32>,
    %67 = arith.index_cast %41 : i32 to index
    %c0_41 = arith.constant 0 : index
    %68 = vector.load %arg11[%67, %c0_41] : memref<64x32xf32, #tpu.memory_space<vmem>>, vector<8x32xf32>
    tpu.vector_store %arg11[%67, %c0_41], %64 {strides = array<i32>} : memref<64x32xf32, #tpu.memory_space<vmem>>, vector<8x32xf32>,
    %c2_i32 = arith.constant 2 : i32
    %c8_i32_42 = arith.constant 8 : i32
    %69 = arith.muli %c2_i32, %c8_i32_42 : i32
    %70 = tpu.assume_multiple %69, 8 : i32
    %71 = arith.index_cast %70 : i32 to index
    %c0_43 = arith.constant 0 : index
    %72 = vector.load %arg10[%71, %c0_43] : memref<64x128xf32, #tpu.memory_space<vmem>>, vector<8x128xf32>
    %c0_44 = arith.constant 0 : index
    %c0_45 = arith.constant 0 : index
    %73 = vector.load %arg12[%c0_44, %c0_45] : memref<8x32xf32, #tpu.memory_space<vmem>>, vector<8x32xf32>
    %c0_46 = arith.constant 0 : index
    %c0_47 = arith.constant 0 : index
    %74 = vector.load %arg2[%c0_46, %c0_47] : memref<32x128xf32, #tpu.memory_space<vmem>>, vector<32x128xf32>
    %cst_48 = arith.constant dense<0.000000e+00> : vector<8x128xf32>
    %75 = tpu.matmul %73, %74, %cst_48 {dimension_numbers = #tpu.dot_dimension_numbers<[1], [0], [0], [1], [0, 0, 1, 1], [], []>} : vector<8x32xf32>, vector<32x128xf32>, vector<8x128xf32> -> vector<8x128xf32>
    %76 = arith.addf %72, %75 : vector<8x128xf32>
    %77 = vector.extract_strided_slice %76 {offsets = [0, 0], sizes = [8, 96], strides = [1, 1]} : vector<8x128xf32> to vector<8x96xf32>
    %78 = arith.negf %77 : vector<8x96xf32>
    %79 = math.exp %78 : vector<8x96xf32>
    %cst_49 = arith.constant 1.000000e+00 : f32
    %80 = vector.broadcast %cst_49 : f32 to vector<8x96xf32>
    %81 = arith.addf %80, %79 : vector<8x96xf32>
    %82 = arith.divf %80, %81 : vector<8x96xf32>
    %83 = vector.extract_strided_slice %76 {offsets = [0, 96], sizes = [8, 32], strides = [1, 1]} : vector<8x128xf32> to vector<8x32xf32>
    %84 = math.tanh %83 : vector<8x32xf32>
    %85 = vector.extract_strided_slice %82 {offsets = [0, 0], sizes = [8, 32], strides = [1, 1]} : vector<8x96xf32> to vector<8x32xf32>
    %86 = vector.extract_strided_slice %82 {offsets = [0, 32], sizes = [8, 32], strides = [1, 1]} : vector<8x96xf32> to vector<8x32xf32>
    %87 = vector.extract_strided_slice %82 {offsets = [0, 64], sizes = [8, 32], strides = [1, 1]} : vector<8x96xf32> to vector<8x32xf32>
    %c0_50 = arith.constant 0 : index
    %c0_51 = arith.constant 0 : index
    %88 = vector.load %arg13[%c0_50, %c0_51] : memref<8x32xf32, #tpu.memory_space<vmem>>, vector<8x32xf32>
    %89 = arith.mulf %86, %88 : vector<8x32xf32>
    %90 = arith.mulf %85, %84 : vector<8x32xf32>
    %91 = arith.addf %89, %90 : vector<8x32xf32>
    %92 = math.tanh %91 : vector<8x32xf32>
    %93 = arith.mulf %87, %92 : vector<8x32xf32>
    %c0_52 = arith.constant 0 : index
    %c0_53 = arith.constant 0 : index
    %94 = vector.load %arg13[%c0_52, %c0_53] : memref<8x32xf32, #tpu.memory_space<vmem>>, vector<8x32xf32>
    tpu.vector_store %arg13[%c0_52, %c0_53], %91 {strides = array<i32>} : memref<8x32xf32, #tpu.memory_space<vmem>>, vector<8x32xf32>,
    %c0_54 = arith.constant 0 : index
    %c0_55 = arith.constant 0 : index
    %95 = vector.load %arg12[%c0_54, %c0_55] : memref<8x32xf32, #tpu.memory_space<vmem>>, vector<8x32xf32>
    tpu.vector_store %arg12[%c0_54, %c0_55], %93 {strides = array<i32>} : memref<8x32xf32, #tpu.memory_space<vmem>>, vector<8x32xf32>,
    %96 = arith.index_cast %70 : i32 to index
    %c0_56 = arith.constant 0 : index
    %97 = vector.load %arg11[%96, %c0_56] : memref<64x32xf32, #tpu.memory_space<vmem>>, vector<8x32xf32>
    tpu.vector_store %arg11[%96, %c0_56], %93 {strides = array<i32>} : memref<64x32xf32, #tpu.memory_space<vmem>>, vector<8x32xf32>,
    %c3_i32 = arith.constant 3 : i32
    %c8_i32_57 = arith.constant 8 : i32
    %98 = arith.muli %c3_i32, %c8_i32_57 : i32
    %99 = tpu.assume_multiple %98, 8 : i32
    %100 = arith.index_cast %99 : i32 to index
    %c0_58 = arith.constant 0 : index
    %101 = vector.load %arg10[%100, %c0_58] : memref<64x128xf32, #tpu.memory_space<vmem>>, vector<8x128xf32>
    %c0_59 = arith.constant 0 : index
    %c0_60 = arith.constant 0 : index
    %102 = vector.load %arg12[%c0_59, %c0_60] : memref<8x32xf32, #tpu.memory_space<vmem>>, vector<8x32xf32>
    %c0_61 = arith.constant 0 : index
    %c0_62 = arith.constant 0 : index
    %103 = vector.load %arg2[%c0_61, %c0_62] : memref<32x128xf32, #tpu.memory_space<vmem>>, vector<32x128xf32>
    %cst_63 = arith.constant dense<0.000000e+00> : vector<8x128xf32>
    %104 = tpu.matmul %102, %103, %cst_63 {dimension_numbers = #tpu.dot_dimension_numbers<[1], [0], [0], [1], [0, 0, 1, 1], [], []>} : vector<8x32xf32>, vector<32x128xf32>, vector<8x128xf32> -> vector<8x128xf32>
    %105 = arith.addf %101, %104 : vector<8x128xf32>
    %106 = vector.extract_strided_slice %105 {offsets = [0, 0], sizes = [8, 96], strides = [1, 1]} : vector<8x128xf32> to vector<8x96xf32>
    %107 = arith.negf %106 : vector<8x96xf32>
    %108 = math.exp %107 : vector<8x96xf32>
    %cst_64 = arith.constant 1.000000e+00 : f32
    %109 = vector.broadcast %cst_64 : f32 to vector<8x96xf32>
    %110 = arith.addf %109, %108 : vector<8x96xf32>
    %111 = arith.divf %109, %110 : vector<8x96xf32>
    %112 = vector.extract_strided_slice %105 {offsets = [0, 96], sizes = [8, 32], strides = [1, 1]} : vector<8x128xf32> to vector<8x32xf32>
    %113 = math.tanh %112 : vector<8x32xf32>
    %114 = vector.extract_strided_slice %111 {offsets = [0, 0], sizes = [8, 32], strides = [1, 1]} : vector<8x96xf32> to vector<8x32xf32>
    %115 = vector.extract_strided_slice %111 {offsets = [0, 32], sizes = [8, 32], strides = [1, 1]} : vector<8x96xf32> to vector<8x32xf32>
    %116 = vector.extract_strided_slice %111 {offsets = [0, 64], sizes = [8, 32], strides = [1, 1]} : vector<8x96xf32> to vector<8x32xf32>
    %c0_65 = arith.constant 0 : index
    %c0_66 = arith.constant 0 : index
    %117 = vector.load %arg13[%c0_65, %c0_66] : memref<8x32xf32, #tpu.memory_space<vmem>>, vector<8x32xf32>
    %118 = arith.mulf %115, %117 : vector<8x32xf32>
    %119 = arith.mulf %114, %113 : vector<8x32xf32>
    %120 = arith.addf %118, %119 : vector<8x32xf32>
    %121 = math.tanh %120 : vector<8x32xf32>
    %122 = arith.mulf %116, %121 : vector<8x32xf32>
    %c0_67 = arith.constant 0 : index
    %c0_68 = arith.constant 0 : index
    %123 = vector.load %arg13[%c0_67, %c0_68] : memref<8x32xf32, #tpu.memory_space<vmem>>, vector<8x32xf32>
    tpu.vector_store %arg13[%c0_67, %c0_68], %120 {strides = array<i32>} : memref<8x32xf32, #tpu.memory_space<vmem>>, vector<8x32xf32>,
    %c0_69 = arith.constant 0 : index
    %c0_70 = arith.constant 0 : index
    %124 = vector.load %arg12[%c0_69, %c0_70] : memref<8x32xf32, #tpu.memory_space<vmem>>, vector<8x32xf32>
    tpu.vector_store %arg12[%c0_69, %c0_70], %122 {strides = array<i32>} : memref<8x32xf32, #tpu.memory_space<vmem>>, vector<8x32xf32>,
    %125 = arith.index_cast %99 : i32 to index
    %c0_71 = arith.constant 0 : index
    %126 = vector.load %arg11[%125, %c0_71] : memref<64x32xf32, #tpu.memory_space<vmem>>, vector<8x32xf32>
    tpu.vector_store %arg11[%125, %c0_71], %122 {strides = array<i32>} : memref<64x32xf32, #tpu.memory_space<vmem>>, vector<8x32xf32>,
    %c4_i32 = arith.constant 4 : i32
    %c8_i32_72 = arith.constant 8 : i32
    %127 = arith.muli %c4_i32, %c8_i32_72 : i32
    %128 = tpu.assume_multiple %127, 8 : i32
    %129 = arith.index_cast %128 : i32 to index
    %c0_73 = arith.constant 0 : index
    %130 = vector.load %arg10[%129, %c0_73] : memref<64x128xf32, #tpu.memory_space<vmem>>, vector<8x128xf32>
    %c0_74 = arith.constant 0 : index
    %c0_75 = arith.constant 0 : index
    %131 = vector.load %arg12[%c0_74, %c0_75] : memref<8x32xf32, #tpu.memory_space<vmem>>, vector<8x32xf32>
    %c0_76 = arith.constant 0 : index
    %c0_77 = arith.constant 0 : index
    %132 = vector.load %arg2[%c0_76, %c0_77] : memref<32x128xf32, #tpu.memory_space<vmem>>, vector<32x128xf32>
    %cst_78 = arith.constant dense<0.000000e+00> : vector<8x128xf32>
    %133 = tpu.matmul %131, %132, %cst_78 {dimension_numbers = #tpu.dot_dimension_numbers<[1], [0], [0], [1], [0, 0, 1, 1], [], []>} : vector<8x32xf32>, vector<32x128xf32>, vector<8x128xf32> -> vector<8x128xf32>
    %134 = arith.addf %130, %133 : vector<8x128xf32>
    %135 = vector.extract_strided_slice %134 {offsets = [0, 0], sizes = [8, 96], strides = [1, 1]} : vector<8x128xf32> to vector<8x96xf32>
    %136 = arith.negf %135 : vector<8x96xf32>
    %137 = math.exp %136 : vector<8x96xf32>
    %cst_79 = arith.constant 1.000000e+00 : f32
    %138 = vector.broadcast %cst_79 : f32 to vector<8x96xf32>
    %139 = arith.addf %138, %137 : vector<8x96xf32>
    %140 = arith.divf %138, %139 : vector<8x96xf32>
    %141 = vector.extract_strided_slice %134 {offsets = [0, 96], sizes = [8, 32], strides = [1, 1]} : vector<8x128xf32> to vector<8x32xf32>
    %142 = math.tanh %141 : vector<8x32xf32>
    %143 = vector.extract_strided_slice %140 {offsets = [0, 0], sizes = [8, 32], strides = [1, 1]} : vector<8x96xf32> to vector<8x32xf32>
    %144 = vector.extract_strided_slice %140 {offsets = [0, 32], sizes = [8, 32], strides = [1, 1]} : vector<8x96xf32> to vector<8x32xf32>
    %145 = vector.extract_strided_slice %140 {offsets = [0, 64], sizes = [8, 32], strides = [1, 1]} : vector<8x96xf32> to vector<8x32xf32>
    %c0_80 = arith.constant 0 : index
    %c0_81 = arith.constant 0 : index
    %146 = vector.load %arg13[%c0_80, %c0_81] : memref<8x32xf32, #tpu.memory_space<vmem>>, vector<8x32xf32>
    %147 = arith.mulf %144, %146 : vector<8x32xf32>
    %148 = arith.mulf %143, %142 : vector<8x32xf32>
    %149 = arith.addf %147, %148 : vector<8x32xf32>
    %150 = math.tanh %149 : vector<8x32xf32>
    %151 = arith.mulf %145, %150 : vector<8x32xf32>
    %c0_82 = arith.constant 0 : index
    %c0_83 = arith.constant 0 : index
    %152 = vector.load %arg13[%c0_82, %c0_83] : memref<8x32xf32, #tpu.memory_space<vmem>>, vector<8x32xf32>
    tpu.vector_store %arg13[%c0_82, %c0_83], %149 {strides = array<i32>} : memref<8x32xf32, #tpu.memory_space<vmem>>, vector<8x32xf32>,
    %c0_84 = arith.constant 0 : index
    %c0_85 = arith.constant 0 : index
    %153 = vector.load %arg12[%c0_84, %c0_85] : memref<8x32xf32, #tpu.memory_space<vmem>>, vector<8x32xf32>
    tpu.vector_store %arg12[%c0_84, %c0_85], %151 {strides = array<i32>} : memref<8x32xf32, #tpu.memory_space<vmem>>, vector<8x32xf32>,
    %154 = arith.index_cast %128 : i32 to index
    %c0_86 = arith.constant 0 : index
    %155 = vector.load %arg11[%154, %c0_86] : memref<64x32xf32, #tpu.memory_space<vmem>>, vector<8x32xf32>
    tpu.vector_store %arg11[%154, %c0_86], %151 {strides = array<i32>} : memref<64x32xf32, #tpu.memory_space<vmem>>, vector<8x32xf32>,
    %c5_i32 = arith.constant 5 : i32
    %c8_i32_87 = arith.constant 8 : i32
    %156 = arith.muli %c5_i32, %c8_i32_87 : i32
    %157 = tpu.assume_multiple %156, 8 : i32
    %158 = arith.index_cast %157 : i32 to index
    %c0_88 = arith.constant 0 : index
    %159 = vector.load %arg10[%158, %c0_88] : memref<64x128xf32, #tpu.memory_space<vmem>>, vector<8x128xf32>
    %c0_89 = arith.constant 0 : index
    %c0_90 = arith.constant 0 : index
    %160 = vector.load %arg12[%c0_89, %c0_90] : memref<8x32xf32, #tpu.memory_space<vmem>>, vector<8x32xf32>
    %c0_91 = arith.constant 0 : index
    %c0_92 = arith.constant 0 : index
    %161 = vector.load %arg2[%c0_91, %c0_92] : memref<32x128xf32, #tpu.memory_space<vmem>>, vector<32x128xf32>
    %cst_93 = arith.constant dense<0.000000e+00> : vector<8x128xf32>
    %162 = tpu.matmul %160, %161, %cst_93 {dimension_numbers = #tpu.dot_dimension_numbers<[1], [0], [0], [1], [0, 0, 1, 1], [], []>} : vector<8x32xf32>, vector<32x128xf32>, vector<8x128xf32> -> vector<8x128xf32>
    %163 = arith.addf %159, %162 : vector<8x128xf32>
    %164 = vector.extract_strided_slice %163 {offsets = [0, 0], sizes = [8, 96], strides = [1, 1]} : vector<8x128xf32> to vector<8x96xf32>
    %165 = arith.negf %164 : vector<8x96xf32>
    %166 = math.exp %165 : vector<8x96xf32>
    %cst_94 = arith.constant 1.000000e+00 : f32
    %167 = vector.broadcast %cst_94 : f32 to vector<8x96xf32>
    %168 = arith.addf %167, %166 : vector<8x96xf32>
    %169 = arith.divf %167, %168 : vector<8x96xf32>
    %170 = vector.extract_strided_slice %163 {offsets = [0, 96], sizes = [8, 32], strides = [1, 1]} : vector<8x128xf32> to vector<8x32xf32>
    %171 = math.tanh %170 : vector<8x32xf32>
    %172 = vector.extract_strided_slice %169 {offsets = [0, 0], sizes = [8, 32], strides = [1, 1]} : vector<8x96xf32> to vector<8x32xf32>
    %173 = vector.extract_strided_slice %169 {offsets = [0, 32], sizes = [8, 32], strides = [1, 1]} : vector<8x96xf32> to vector<8x32xf32>
    %174 = vector.extract_strided_slice %169 {offsets = [0, 64], sizes = [8, 32], strides = [1, 1]} : vector<8x96xf32> to vector<8x32xf32>
    %c0_95 = arith.constant 0 : index
    %c0_96 = arith.constant 0 : index
    %175 = vector.load %arg13[%c0_95, %c0_96] : memref<8x32xf32, #tpu.memory_space<vmem>>, vector<8x32xf32>
    %176 = arith.mulf %173, %175 : vector<8x32xf32>
    %177 = arith.mulf %172, %171 : vector<8x32xf32>
    %178 = arith.addf %176, %177 : vector<8x32xf32>
    %179 = math.tanh %178 : vector<8x32xf32>
    %180 = arith.mulf %174, %179 : vector<8x32xf32>
    %c0_97 = arith.constant 0 : index
    %c0_98 = arith.constant 0 : index
    %181 = vector.load %arg13[%c0_97, %c0_98] : memref<8x32xf32, #tpu.memory_space<vmem>>, vector<8x32xf32>
    tpu.vector_store %arg13[%c0_97, %c0_98], %178 {strides = array<i32>} : memref<8x32xf32, #tpu.memory_space<vmem>>, vector<8x32xf32>,
    %c0_99 = arith.constant 0 : index
    %c0_100 = arith.constant 0 : index
    %182 = vector.load %arg12[%c0_99, %c0_100] : memref<8x32xf32, #tpu.memory_space<vmem>>, vector<8x32xf32>
    tpu.vector_store %arg12[%c0_99, %c0_100], %180 {strides = array<i32>} : memref<8x32xf32, #tpu.memory_space<vmem>>, vector<8x32xf32>,
    %183 = arith.index_cast %157 : i32 to index
    %c0_101 = arith.constant 0 : index
    %184 = vector.load %arg11[%183, %c0_101] : memref<64x32xf32, #tpu.memory_space<vmem>>, vector<8x32xf32>
    tpu.vector_store %arg11[%183, %c0_101], %180 {strides = array<i32>} : memref<64x32xf32, #tpu.memory_space<vmem>>, vector<8x32xf32>,
    %c6_i32 = arith.constant 6 : i32
    %c8_i32_102 = arith.constant 8 : i32
    %185 = arith.muli %c6_i32, %c8_i32_102 : i32
    %186 = tpu.assume_multiple %185, 8 : i32
    %187 = arith.index_cast %186 : i32 to index
    %c0_103 = arith.constant 0 : index
    %188 = vector.load %arg10[%187, %c0_103] : memref<64x128xf32, #tpu.memory_space<vmem>>, vector<8x128xf32>
    %c0_104 = arith.constant 0 : index
    %c0_105 = arith.constant 0 : index
    %189 = vector.load %arg12[%c0_104, %c0_105] : memref<8x32xf32, #tpu.memory_space<vmem>>, vector<8x32xf32>
    %c0_106 = arith.constant 0 : index
    %c0_107 = arith.constant 0 : index
    %190 = vector.load %arg2[%c0_106, %c0_107] : memref<32x128xf32, #tpu.memory_space<vmem>>, vector<32x128xf32>
    %cst_108 = arith.constant dense<0.000000e+00> : vector<8x128xf32>
    %191 = tpu.matmul %189, %190, %cst_108 {dimension_numbers = #tpu.dot_dimension_numbers<[1], [0], [0], [1], [0, 0, 1, 1], [], []>} : vector<8x32xf32>, vector<32x128xf32>, vector<8x128xf32> -> vector<8x128xf32>
    %192 = arith.addf %188, %191 : vector<8x128xf32>
    %193 = vector.extract_strided_slice %192 {offsets = [0, 0], sizes = [8, 96], strides = [1, 1]} : vector<8x128xf32> to vector<8x96xf32>
    %194 = arith.negf %193 : vector<8x96xf32>
    %195 = math.exp %194 : vector<8x96xf32>
    %cst_109 = arith.constant 1.000000e+00 : f32
    %196 = vector.broadcast %cst_109 : f32 to vector<8x96xf32>
    %197 = arith.addf %196, %195 : vector<8x96xf32>
    %198 = arith.divf %196, %197 : vector<8x96xf32>
    %199 = vector.extract_strided_slice %192 {offsets = [0, 96], sizes = [8, 32], strides = [1, 1]} : vector<8x128xf32> to vector<8x32xf32>
    %200 = math.tanh %199 : vector<8x32xf32>
    %201 = vector.extract_strided_slice %198 {offsets = [0, 0], sizes = [8, 32], strides = [1, 1]} : vector<8x96xf32> to vector<8x32xf32>
    %202 = vector.extract_strided_slice %198 {offsets = [0, 32], sizes = [8, 32], strides = [1, 1]} : vector<8x96xf32> to vector<8x32xf32>
    %203 = vector.extract_strided_slice %198 {offsets = [0, 64], sizes = [8, 32], strides = [1, 1]} : vector<8x96xf32> to vector<8x32xf32>
    %c0_110 = arith.constant 0 : index
    %c0_111 = arith.constant 0 : index
    %204 = vector.load %arg13[%c0_110, %c0_111] : memref<8x32xf32, #tpu.memory_space<vmem>>, vector<8x32xf32>
    %205 = arith.mulf %202, %204 : vector<8x32xf32>
    %206 = arith.mulf %201, %200 : vector<8x32xf32>
    %207 = arith.addf %205, %206 : vector<8x32xf32>
    %208 = math.tanh %207 : vector<8x32xf32>
    %209 = arith.mulf %203, %208 : vector<8x32xf32>
    %c0_112 = arith.constant 0 : index
    %c0_113 = arith.constant 0 : index
    %210 = vector.load %arg13[%c0_112, %c0_113] : memref<8x32xf32, #tpu.memory_space<vmem>>, vector<8x32xf32>
    tpu.vector_store %arg13[%c0_112, %c0_113], %207 {strides = array<i32>} : memref<8x32xf32, #tpu.memory_space<vmem>>, vector<8x32xf32>,
    %c0_114 = arith.constant 0 : index
    %c0_115 = arith.constant 0 : index
    %211 = vector.load %arg12[%c0_114, %c0_115] : memref<8x32xf32, #tpu.memory_space<vmem>>, vector<8x32xf32>
    tpu.vector_store %arg12[%c0_114, %c0_115], %209 {strides = array<i32>} : memref<8x32xf32, #tpu.memory_space<vmem>>, vector<8x32xf32>,
    %212 = arith.index_cast %186 : i32 to index
    %c0_116 = arith.constant 0 : index
    %213 = vector.load %arg11[%212, %c0_116] : memref<64x32xf32, #tpu.memory_space<vmem>>, vector<8x32xf32>
    tpu.vector_store %arg11[%212, %c0_116], %209 {strides = array<i32>} : memref<64x32xf32, #tpu.memory_space<vmem>>, vector<8x32xf32>,
    %c7_i32 = arith.constant 7 : i32
    %c8_i32_117 = arith.constant 8 : i32
    %214 = arith.muli %c7_i32, %c8_i32_117 : i32
    %215 = tpu.assume_multiple %214, 8 : i32
    %216 = arith.index_cast %215 : i32 to index
    %c0_118 = arith.constant 0 : index
    %217 = vector.load %arg10[%216, %c0_118] : memref<64x128xf32, #tpu.memory_space<vmem>>, vector<8x128xf32>
    %c0_119 = arith.constant 0 : index
    %c0_120 = arith.constant 0 : index
    %218 = vector.load %arg12[%c0_119, %c0_120] : memref<8x32xf32, #tpu.memory_space<vmem>>, vector<8x32xf32>
    %c0_121 = arith.constant 0 : index
    %c0_122 = arith.constant 0 : index
    %219 = vector.load %arg2[%c0_121, %c0_122] : memref<32x128xf32, #tpu.memory_space<vmem>>, vector<32x128xf32>
    %cst_123 = arith.constant dense<0.000000e+00> : vector<8x128xf32>
    %220 = tpu.matmul %218, %219, %cst_123 {dimension_numbers = #tpu.dot_dimension_numbers<[1], [0], [0], [1], [0, 0, 1, 1], [], []>} : vector<8x32xf32>, vector<32x128xf32>, vector<8x128xf32> -> vector<8x128xf32>
    %221 = arith.addf %217, %220 : vector<8x128xf32>
    %222 = vector.extract_strided_slice %221 {offsets = [0, 0], sizes = [8, 96], strides = [1, 1]} : vector<8x128xf32> to vector<8x96xf32>
    %223 = arith.negf %222 : vector<8x96xf32>
    %224 = math.exp %223 : vector<8x96xf32>
    %cst_124 = arith.constant 1.000000e+00 : f32
    %225 = vector.broadcast %cst_124 : f32 to vector<8x96xf32>
    %226 = arith.addf %225, %224 : vector<8x96xf32>
    %227 = arith.divf %225, %226 : vector<8x96xf32>
    %228 = vector.extract_strided_slice %221 {offsets = [0, 96], sizes = [8, 32], strides = [1, 1]} : vector<8x128xf32> to vector<8x32xf32>
    %229 = math.tanh %228 : vector<8x32xf32>
    %230 = vector.extract_strided_slice %227 {offsets = [0, 0], sizes = [8, 32], strides = [1, 1]} : vector<8x96xf32> to vector<8x32xf32>
    %231 = vector.extract_strided_slice %227 {offsets = [0, 32], sizes = [8, 32], strides = [1, 1]} : vector<8x96xf32> to vector<8x32xf32>
    %232 = vector.extract_strided_slice %227 {offsets = [0, 64], sizes = [8, 32], strides = [1, 1]} : vector<8x96xf32> to vector<8x32xf32>
    %c0_125 = arith.constant 0 : index
    %c0_126 = arith.constant 0 : index
    %233 = vector.load %arg13[%c0_125, %c0_126] : memref<8x32xf32, #tpu.memory_space<vmem>>, vector<8x32xf32>
    %234 = arith.mulf %231, %233 : vector<8x32xf32>
    %235 = arith.mulf %230, %229 : vector<8x32xf32>
    %236 = arith.addf %234, %235 : vector<8x32xf32>
    %237 = math.tanh %236 : vector<8x32xf32>
    %238 = arith.mulf %232, %237 : vector<8x32xf32>
    %c0_127 = arith.constant 0 : index
    %c0_128 = arith.constant 0 : index
    %239 = vector.load %arg13[%c0_127, %c0_128] : memref<8x32xf32, #tpu.memory_space<vmem>>, vector<8x32xf32>
    tpu.vector_store %arg13[%c0_127, %c0_128], %236 {strides = array<i32>} : memref<8x32xf32, #tpu.memory_space<vmem>>, vector<8x32xf32>,
    %c0_129 = arith.constant 0 : index
    %c0_130 = arith.constant 0 : index
    %240 = vector.load %arg12[%c0_129, %c0_130] : memref<8x32xf32, #tpu.memory_space<vmem>>, vector<8x32xf32>
    tpu.vector_store %arg12[%c0_129, %c0_130], %238 {strides = array<i32>} : memref<8x32xf32, #tpu.memory_space<vmem>>, vector<8x32xf32>,
    %241 = arith.index_cast %215 : i32 to index
    %c0_131 = arith.constant 0 : index
    %242 = vector.load %arg11[%241, %c0_131] : memref<64x32xf32, #tpu.memory_space<vmem>>, vector<8x32xf32>
    tpu.vector_store %arg11[%241, %c0_131], %238 {strides = array<i32>} : memref<64x32xf32, #tpu.memory_space<vmem>>, vector<8x32xf32>,
    %c8_i32_132 = arith.constant 8 : i32
    %c0_133 = arith.constant 0 : index
    %c0_134 = arith.constant 0 : index
    %243 = vector.load %arg11[%c0_133, %c0_134] : memref<64x32xf32, #tpu.memory_space<vmem>>, vector<64x32xf32>
    %c0_135 = arith.constant 0 : index
    %c0_136 = arith.constant 0 : index
    %244 = vector.load %arg4[%c0_135, %c0_136] : memref<32x128xf32, #tpu.memory_space<vmem>>, vector<32x128xf32>
    %cst_137 = arith.constant dense<0.000000e+00> : vector<64x128xf32>
    %245 = tpu.matmul %243, %244, %cst_137 {dimension_numbers = #tpu.dot_dimension_numbers<[1], [0], [0], [1], [0, 0, 1, 1], [], []>} : vector<64x32xf32>, vector<32x128xf32>, vector<64x128xf32> -> vector<64x128xf32>
    %c0_138 = arith.constant 0 : index
    %c0_139 = arith.constant 0 : index
    %246 = vector.load %arg6[%c0_138, %c0_139] : memref<1x128xf32, #tpu.memory_space<vmem>>, vector<1x128xf32>
    %247 = vector.broadcast %246 : vector<1x128xf32> to vector<64x128xf32>
    %248 = arith.addf %245, %247 : vector<64x128xf32>
    %c0_140 = arith.constant 0 : index
    %c0_141 = arith.constant 0 : index
    %249 = vector.load %arg10[%c0_140, %c0_141] : memref<64x128xf32, #tpu.memory_space<vmem>>, vector<64x128xf32>
    tpu.vector_store %arg10[%c0_140, %c0_141], %248 {strides = array<i32>} : memref<64x128xf32, #tpu.memory_space<vmem>>, vector<64x128xf32>,
    %cst_142 = arith.constant 0.000000e+00 : f32
    %250 = vector.broadcast %cst_142 : f32 to vector<8x32xf32>
    %c0_143 = arith.constant 0 : index
    %c0_144 = arith.constant 0 : index
    %251 = vector.load %arg12[%c0_143, %c0_144] : memref<8x32xf32, #tpu.memory_space<vmem>>, vector<8x32xf32>
    tpu.vector_store %arg12[%c0_143, %c0_144], %250 {strides = array<i32>} : memref<8x32xf32, #tpu.memory_space<vmem>>, vector<8x32xf32>,
    %cst_145 = arith.constant 0.000000e+00 : f32
    %252 = vector.broadcast %cst_145 : f32 to vector<8x32xf32>
    %c0_146 = arith.constant 0 : index
    %c0_147 = arith.constant 0 : index
    %253 = vector.load %arg13[%c0_146, %c0_147] : memref<8x32xf32, #tpu.memory_space<vmem>>, vector<8x32xf32>
    tpu.vector_store %arg13[%c0_146, %c0_147], %252 {strides = array<i32>} : memref<8x32xf32, #tpu.memory_space<vmem>>, vector<8x32xf32>,
    %c0_i32_148 = arith.constant 0 : i32
    %c8_i32_149 = arith.constant 8 : i32
    %254 = arith.muli %c0_i32_148, %c8_i32_149 : i32
    %255 = tpu.assume_multiple %254, 8 : i32
    %256 = arith.index_cast %255 : i32 to index
    %c0_150 = arith.constant 0 : index
    %257 = vector.load %arg10[%256, %c0_150] : memref<64x128xf32, #tpu.memory_space<vmem>>, vector<8x128xf32>
    %c0_151 = arith.constant 0 : index
    %c0_152 = arith.constant 0 : index
    %258 = vector.load %arg12[%c0_151, %c0_152] : memref<8x32xf32, #tpu.memory_space<vmem>>, vector<8x32xf32>
    %c0_153 = arith.constant 0 : index
    %c0_154 = arith.constant 0 : index
    %259 = vector.load %arg5[%c0_153, %c0_154] : memref<32x128xf32, #tpu.memory_space<vmem>>, vector<32x128xf32>
    %cst_155 = arith.constant dense<0.000000e+00> : vector<8x128xf32>
    %260 = tpu.matmul %258, %259, %cst_155 {dimension_numbers = #tpu.dot_dimension_numbers<[1], [0], [0], [1], [0, 0, 1, 1], [], []>} : vector<8x32xf32>, vector<32x128xf32>, vector<8x128xf32> -> vector<8x128xf32>
    %261 = arith.addf %257, %260 : vector<8x128xf32>
    %262 = vector.extract_strided_slice %261 {offsets = [0, 0], sizes = [8, 96], strides = [1, 1]} : vector<8x128xf32> to vector<8x96xf32>
    %263 = arith.negf %262 : vector<8x96xf32>
    %264 = math.exp %263 : vector<8x96xf32>
    %cst_156 = arith.constant 1.000000e+00 : f32
    %265 = vector.broadcast %cst_156 : f32 to vector<8x96xf32>
    %266 = arith.addf %265, %264 : vector<8x96xf32>
    %267 = arith.divf %265, %266 : vector<8x96xf32>
    %268 = vector.extract_strided_slice %261 {offsets = [0, 96], sizes = [8, 32], strides = [1, 1]} : vector<8x128xf32> to vector<8x32xf32>
    %269 = math.tanh %268 : vector<8x32xf32>
    %270 = vector.extract_strided_slice %267 {offsets = [0, 0], sizes = [8, 32], strides = [1, 1]} : vector<8x96xf32> to vector<8x32xf32>
    %271 = vector.extract_strided_slice %267 {offsets = [0, 32], sizes = [8, 32], strides = [1, 1]} : vector<8x96xf32> to vector<8x32xf32>
    %272 = vector.extract_strided_slice %267 {offsets = [0, 64], sizes = [8, 32], strides = [1, 1]} : vector<8x96xf32> to vector<8x32xf32>
    %c0_157 = arith.constant 0 : index
    %c0_158 = arith.constant 0 : index
    %273 = vector.load %arg13[%c0_157, %c0_158] : memref<8x32xf32, #tpu.memory_space<vmem>>, vector<8x32xf32>
    %274 = arith.mulf %271, %273 : vector<8x32xf32>
    %275 = arith.mulf %270, %269 : vector<8x32xf32>
    %276 = arith.addf %274, %275 : vector<8x32xf32>
    %277 = math.tanh %276 : vector<8x32xf32>
    %278 = arith.mulf %272, %277 : vector<8x32xf32>
    %c0_159 = arith.constant 0 : index
    %c0_160 = arith.constant 0 : index
    %279 = vector.load %arg13[%c0_159, %c0_160] : memref<8x32xf32, #tpu.memory_space<vmem>>, vector<8x32xf32>
    tpu.vector_store %arg13[%c0_159, %c0_160], %276 {strides = array<i32>} : memref<8x32xf32, #tpu.memory_space<vmem>>, vector<8x32xf32>,
    %c0_161 = arith.constant 0 : index
    %c0_162 = arith.constant 0 : index
    %280 = vector.load %arg12[%c0_161, %c0_162] : memref<8x32xf32, #tpu.memory_space<vmem>>, vector<8x32xf32>
    tpu.vector_store %arg12[%c0_161, %c0_162], %278 {strides = array<i32>} : memref<8x32xf32, #tpu.memory_space<vmem>>, vector<8x32xf32>,
    %c1_i32_163 = arith.constant 1 : i32
    %c8_i32_164 = arith.constant 8 : i32
    %281 = arith.muli %c1_i32_163, %c8_i32_164 : i32
    %282 = tpu.assume_multiple %281, 8 : i32
    %283 = arith.index_cast %282 : i32 to index
    %c0_165 = arith.constant 0 : index
    %284 = vector.load %arg10[%283, %c0_165] : memref<64x128xf32, #tpu.memory_space<vmem>>, vector<8x128xf32>
    %c0_166 = arith.constant 0 : index
    %c0_167 = arith.constant 0 : index
    %285 = vector.load %arg12[%c0_166, %c0_167] : memref<8x32xf32, #tpu.memory_space<vmem>>, vector<8x32xf32>
    %c0_168 = arith.constant 0 : index
    %c0_169 = arith.constant 0 : index
    %286 = vector.load %arg5[%c0_168, %c0_169] : memref<32x128xf32, #tpu.memory_space<vmem>>, vector<32x128xf32>
    %cst_170 = arith.constant dense<0.000000e+00> : vector<8x128xf32>
    %287 = tpu.matmul %285, %286, %cst_170 {dimension_numbers = #tpu.dot_dimension_numbers<[1], [0], [0], [1], [0, 0, 1, 1], [], []>} : vector<8x32xf32>, vector<32x128xf32>, vector<8x128xf32> -> vector<8x128xf32>
    %288 = arith.addf %284, %287 : vector<8x128xf32>
    %289 = vector.extract_strided_slice %288 {offsets = [0, 0], sizes = [8, 96], strides = [1, 1]} : vector<8x128xf32> to vector<8x96xf32>
    %290 = arith.negf %289 : vector<8x96xf32>
    %291 = math.exp %290 : vector<8x96xf32>
    %cst_171 = arith.constant 1.000000e+00 : f32
    %292 = vector.broadcast %cst_171 : f32 to vector<8x96xf32>
    %293 = arith.addf %292, %291 : vector<8x96xf32>
    %294 = arith.divf %292, %293 : vector<8x96xf32>
    %295 = vector.extract_strided_slice %288 {offsets = [0, 96], sizes = [8, 32], strides = [1, 1]} : vector<8x128xf32> to vector<8x32xf32>
    %296 = math.tanh %295 : vector<8x32xf32>
    %297 = vector.extract_strided_slice %294 {offsets = [0, 0], sizes = [8, 32], strides = [1, 1]} : vector<8x96xf32> to vector<8x32xf32>
    %298 = vector.extract_strided_slice %294 {offsets = [0, 32], sizes = [8, 32], strides = [1, 1]} : vector<8x96xf32> to vector<8x32xf32>
    %299 = vector.extract_strided_slice %294 {offsets = [0, 64], sizes = [8, 32], strides = [1, 1]} : vector<8x96xf32> to vector<8x32xf32>
    %c0_172 = arith.constant 0 : index
    %c0_173 = arith.constant 0 : index
    %300 = vector.load %arg13[%c0_172, %c0_173] : memref<8x32xf32, #tpu.memory_space<vmem>>, vector<8x32xf32>
    %301 = arith.mulf %298, %300 : vector<8x32xf32>
    %302 = arith.mulf %297, %296 : vector<8x32xf32>
    %303 = arith.addf %301, %302 : vector<8x32xf32>
    %304 = math.tanh %303 : vector<8x32xf32>
    %305 = arith.mulf %299, %304 : vector<8x32xf32>
    %c0_174 = arith.constant 0 : index
    %c0_175 = arith.constant 0 : index
    %306 = vector.load %arg13[%c0_174, %c0_175] : memref<8x32xf32, #tpu.memory_space<vmem>>, vector<8x32xf32>
    tpu.vector_store %arg13[%c0_174, %c0_175], %303 {strides = array<i32>} : memref<8x32xf32, #tpu.memory_space<vmem>>, vector<8x32xf32>,
    %c0_176 = arith.constant 0 : index
    %c0_177 = arith.constant 0 : index
    %307 = vector.load %arg12[%c0_176, %c0_177] : memref<8x32xf32, #tpu.memory_space<vmem>>, vector<8x32xf32>
    tpu.vector_store %arg12[%c0_176, %c0_177], %305 {strides = array<i32>} : memref<8x32xf32, #tpu.memory_space<vmem>>, vector<8x32xf32>,
    %c2_i32_178 = arith.constant 2 : i32
    %c8_i32_179 = arith.constant 8 : i32
    %308 = arith.muli %c2_i32_178, %c8_i32_179 : i32
    %309 = tpu.assume_multiple %308, 8 : i32
    %310 = arith.index_cast %309 : i32 to index
    %c0_180 = arith.constant 0 : index
    %311 = vector.load %arg10[%310, %c0_180] : memref<64x128xf32, #tpu.memory_space<vmem>>, vector<8x128xf32>
    %c0_181 = arith.constant 0 : index
    %c0_182 = arith.constant 0 : index
    %312 = vector.load %arg12[%c0_181, %c0_182] : memref<8x32xf32, #tpu.memory_space<vmem>>, vector<8x32xf32>
    %c0_183 = arith.constant 0 : index
    %c0_184 = arith.constant 0 : index
    %313 = vector.load %arg5[%c0_183, %c0_184] : memref<32x128xf32, #tpu.memory_space<vmem>>, vector<32x128xf32>
    %cst_185 = arith.constant dense<0.000000e+00> : vector<8x128xf32>
    %314 = tpu.matmul %312, %313, %cst_185 {dimension_numbers = #tpu.dot_dimension_numbers<[1], [0], [0], [1], [0, 0, 1, 1], [], []>} : vector<8x32xf32>, vector<32x128xf32>, vector<8x128xf32> -> vector<8x128xf32>
    %315 = arith.addf %311, %314 : vector<8x128xf32>
    %316 = vector.extract_strided_slice %315 {offsets = [0, 0], sizes = [8, 96], strides = [1, 1]} : vector<8x128xf32> to vector<8x96xf32>
    %317 = arith.negf %316 : vector<8x96xf32>
    %318 = math.exp %317 : vector<8x96xf32>
    %cst_186 = arith.constant 1.000000e+00 : f32
    %319 = vector.broadcast %cst_186 : f32 to vector<8x96xf32>
    %320 = arith.addf %319, %318 : vector<8x96xf32>
    %321 = arith.divf %319, %320 : vector<8x96xf32>
    %322 = vector.extract_strided_slice %315 {offsets = [0, 96], sizes = [8, 32], strides = [1, 1]} : vector<8x128xf32> to vector<8x32xf32>
    %323 = math.tanh %322 : vector<8x32xf32>
    %324 = vector.extract_strided_slice %321 {offsets = [0, 0], sizes = [8, 32], strides = [1, 1]} : vector<8x96xf32> to vector<8x32xf32>
    %325 = vector.extract_strided_slice %321 {offsets = [0, 32], sizes = [8, 32], strides = [1, 1]} : vector<8x96xf32> to vector<8x32xf32>
    %326 = vector.extract_strided_slice %321 {offsets = [0, 64], sizes = [8, 32], strides = [1, 1]} : vector<8x96xf32> to vector<8x32xf32>
    %c0_187 = arith.constant 0 : index
    %c0_188 = arith.constant 0 : index
    %327 = vector.load %arg13[%c0_187, %c0_188] : memref<8x32xf32, #tpu.memory_space<vmem>>, vector<8x32xf32>
    %328 = arith.mulf %325, %327 : vector<8x32xf32>
    %329 = arith.mulf %324, %323 : vector<8x32xf32>
    %330 = arith.addf %328, %329 : vector<8x32xf32>
    %331 = math.tanh %330 : vector<8x32xf32>
    %332 = arith.mulf %326, %331 : vector<8x32xf32>
    %c0_189 = arith.constant 0 : index
    %c0_190 = arith.constant 0 : index
    %333 = vector.load %arg13[%c0_189, %c0_190] : memref<8x32xf32, #tpu.memory_space<vmem>>, vector<8x32xf32>
    tpu.vector_store %arg13[%c0_189, %c0_190], %330 {strides = array<i32>} : memref<8x32xf32, #tpu.memory_space<vmem>>, vector<8x32xf32>,
    %c0_191 = arith.constant 0 : index
    %c0_192 = arith.constant 0 : index
    %334 = vector.load %arg12[%c0_191, %c0_192] : memref<8x32xf32, #tpu.memory_space<vmem>>, vector<8x32xf32>
    tpu.vector_store %arg12[%c0_191, %c0_192], %332 {strides = array<i32>} : memref<8x32xf32, #tpu.memory_space<vmem>>, vector<8x32xf32>,
    %c3_i32_193 = arith.constant 3 : i32
    %c8_i32_194 = arith.constant 8 : i32
    %335 = arith.muli %c3_i32_193, %c8_i32_194 : i32
    %336 = tpu.assume_multiple %335, 8 : i32
    %337 = arith.index_cast %336 : i32 to index
    %c0_195 = arith.constant 0 : index
    %338 = vector.load %arg10[%337, %c0_195] : memref<64x128xf32, #tpu.memory_space<vmem>>, vector<8x128xf32>
    %c0_196 = arith.constant 0 : index
    %c0_197 = arith.constant 0 : index
    %339 = vector.load %arg12[%c0_196, %c0_197] : memref<8x32xf32, #tpu.memory_space<vmem>>, vector<8x32xf32>
    %c0_198 = arith.constant 0 : index
    %c0_199 = arith.constant 0 : index
    %340 = vector.load %arg5[%c0_198, %c0_199] : memref<32x128xf32, #tpu.memory_space<vmem>>, vector<32x128xf32>
    %cst_200 = arith.constant dense<0.000000e+00> : vector<8x128xf32>
    %341 = tpu.matmul %339, %340, %cst_200 {dimension_numbers = #tpu.dot_dimension_numbers<[1], [0], [0], [1], [0, 0, 1, 1], [], []>} : vector<8x32xf32>, vector<32x128xf32>, vector<8x128xf32> -> vector<8x128xf32>
    %342 = arith.addf %338, %341 : vector<8x128xf32>
    %343 = vector.extract_strided_slice %342 {offsets = [0, 0], sizes = [8, 96], strides = [1, 1]} : vector<8x128xf32> to vector<8x96xf32>
    %344 = arith.negf %343 : vector<8x96xf32>
    %345 = math.exp %344 : vector<8x96xf32>
    %cst_201 = arith.constant 1.000000e+00 : f32
    %346 = vector.broadcast %cst_201 : f32 to vector<8x96xf32>
    %347 = arith.addf %346, %345 : vector<8x96xf32>
    %348 = arith.divf %346, %347 : vector<8x96xf32>
    %349 = vector.extract_strided_slice %342 {offsets = [0, 96], sizes = [8, 32], strides = [1, 1]} : vector<8x128xf32> to vector<8x32xf32>
    %350 = math.tanh %349 : vector<8x32xf32>
    %351 = vector.extract_strided_slice %348 {offsets = [0, 0], sizes = [8, 32], strides = [1, 1]} : vector<8x96xf32> to vector<8x32xf32>
    %352 = vector.extract_strided_slice %348 {offsets = [0, 32], sizes = [8, 32], strides = [1, 1]} : vector<8x96xf32> to vector<8x32xf32>
    %353 = vector.extract_strided_slice %348 {offsets = [0, 64], sizes = [8, 32], strides = [1, 1]} : vector<8x96xf32> to vector<8x32xf32>
    %c0_202 = arith.constant 0 : index
    %c0_203 = arith.constant 0 : index
    %354 = vector.load %arg13[%c0_202, %c0_203] : memref<8x32xf32, #tpu.memory_space<vmem>>, vector<8x32xf32>
    %355 = arith.mulf %352, %354 : vector<8x32xf32>
    %356 = arith.mulf %351, %350 : vector<8x32xf32>
    %357 = arith.addf %355, %356 : vector<8x32xf32>
    %358 = math.tanh %357 : vector<8x32xf32>
    %359 = arith.mulf %353, %358 : vector<8x32xf32>
    %c0_204 = arith.constant 0 : index
    %c0_205 = arith.constant 0 : index
    %360 = vector.load %arg13[%c0_204, %c0_205] : memref<8x32xf32, #tpu.memory_space<vmem>>, vector<8x32xf32>
    tpu.vector_store %arg13[%c0_204, %c0_205], %357 {strides = array<i32>} : memref<8x32xf32, #tpu.memory_space<vmem>>, vector<8x32xf32>,
    %c0_206 = arith.constant 0 : index
    %c0_207 = arith.constant 0 : index
    %361 = vector.load %arg12[%c0_206, %c0_207] : memref<8x32xf32, #tpu.memory_space<vmem>>, vector<8x32xf32>
    tpu.vector_store %arg12[%c0_206, %c0_207], %359 {strides = array<i32>} : memref<8x32xf32, #tpu.memory_space<vmem>>, vector<8x32xf32>,
    %c4_i32_208 = arith.constant 4 : i32
    %c8_i32_209 = arith.constant 8 : i32
    %362 = arith.muli %c4_i32_208, %c8_i32_209 : i32
    %363 = tpu.assume_multiple %362, 8 : i32
    %364 = arith.index_cast %363 : i32 to index
    %c0_210 = arith.constant 0 : index
    %365 = vector.load %arg10[%364, %c0_210] : memref<64x128xf32, #tpu.memory_space<vmem>>, vector<8x128xf32>
    %c0_211 = arith.constant 0 : index
    %c0_212 = arith.constant 0 : index
    %366 = vector.load %arg12[%c0_211, %c0_212] : memref<8x32xf32, #tpu.memory_space<vmem>>, vector<8x32xf32>
    %c0_213 = arith.constant 0 : index
    %c0_214 = arith.constant 0 : index
    %367 = vector.load %arg5[%c0_213, %c0_214] : memref<32x128xf32, #tpu.memory_space<vmem>>, vector<32x128xf32>
    %cst_215 = arith.constant dense<0.000000e+00> : vector<8x128xf32>
    %368 = tpu.matmul %366, %367, %cst_215 {dimension_numbers = #tpu.dot_dimension_numbers<[1], [0], [0], [1], [0, 0, 1, 1], [], []>} : vector<8x32xf32>, vector<32x128xf32>, vector<8x128xf32> -> vector<8x128xf32>
    %369 = arith.addf %365, %368 : vector<8x128xf32>
    %370 = vector.extract_strided_slice %369 {offsets = [0, 0], sizes = [8, 96], strides = [1, 1]} : vector<8x128xf32> to vector<8x96xf32>
    %371 = arith.negf %370 : vector<8x96xf32>
    %372 = math.exp %371 : vector<8x96xf32>
    %cst_216 = arith.constant 1.000000e+00 : f32
    %373 = vector.broadcast %cst_216 : f32 to vector<8x96xf32>
    %374 = arith.addf %373, %372 : vector<8x96xf32>
    %375 = arith.divf %373, %374 : vector<8x96xf32>
    %376 = vector.extract_strided_slice %369 {offsets = [0, 96], sizes = [8, 32], strides = [1, 1]} : vector<8x128xf32> to vector<8x32xf32>
    %377 = math.tanh %376 : vector<8x32xf32>
    %378 = vector.extract_strided_slice %375 {offsets = [0, 0], sizes = [8, 32], strides = [1, 1]} : vector<8x96xf32> to vector<8x32xf32>
    %379 = vector.extract_strided_slice %375 {offsets = [0, 32], sizes = [8, 32], strides = [1, 1]} : vector<8x96xf32> to vector<8x32xf32>
    %380 = vector.extract_strided_slice %375 {offsets = [0, 64], sizes = [8, 32], strides = [1, 1]} : vector<8x96xf32> to vector<8x32xf32>
    %c0_217 = arith.constant 0 : index
    %c0_218 = arith.constant 0 : index
    %381 = vector.load %arg13[%c0_217, %c0_218] : memref<8x32xf32, #tpu.memory_space<vmem>>, vector<8x32xf32>
    %382 = arith.mulf %379, %381 : vector<8x32xf32>
    %383 = arith.mulf %378, %377 : vector<8x32xf32>
    %384 = arith.addf %382, %383 : vector<8x32xf32>
    %385 = math.tanh %384 : vector<8x32xf32>
    %386 = arith.mulf %380, %385 : vector<8x32xf32>
    %c0_219 = arith.constant 0 : index
    %c0_220 = arith.constant 0 : index
    %387 = vector.load %arg13[%c0_219, %c0_220] : memref<8x32xf32, #tpu.memory_space<vmem>>, vector<8x32xf32>
    tpu.vector_store %arg13[%c0_219, %c0_220], %384 {strides = array<i32>} : memref<8x32xf32, #tpu.memory_space<vmem>>, vector<8x32xf32>,
    %c0_221 = arith.constant 0 : index
    %c0_222 = arith.constant 0 : index
    %388 = vector.load %arg12[%c0_221, %c0_222] : memref<8x32xf32, #tpu.memory_space<vmem>>, vector<8x32xf32>
    tpu.vector_store %arg12[%c0_221, %c0_222], %386 {strides = array<i32>} : memref<8x32xf32, #tpu.memory_space<vmem>>, vector<8x32xf32>,
    %c5_i32_223 = arith.constant 5 : i32
    %c8_i32_224 = arith.constant 8 : i32
    %389 = arith.muli %c5_i32_223, %c8_i32_224 : i32
    %390 = tpu.assume_multiple %389, 8 : i32
    %391 = arith.index_cast %390 : i32 to index
    %c0_225 = arith.constant 0 : index
    %392 = vector.load %arg10[%391, %c0_225] : memref<64x128xf32, #tpu.memory_space<vmem>>, vector<8x128xf32>
    %c0_226 = arith.constant 0 : index
    %c0_227 = arith.constant 0 : index
    %393 = vector.load %arg12[%c0_226, %c0_227] : memref<8x32xf32, #tpu.memory_space<vmem>>, vector<8x32xf32>
    %c0_228 = arith.constant 0 : index
    %c0_229 = arith.constant 0 : index
    %394 = vector.load %arg5[%c0_228, %c0_229] : memref<32x128xf32, #tpu.memory_space<vmem>>, vector<32x128xf32>
    %cst_230 = arith.constant dense<0.000000e+00> : vector<8x128xf32>
    %395 = tpu.matmul %393, %394, %cst_230 {dimension_numbers = #tpu.dot_dimension_numbers<[1], [0], [0], [1], [0, 0, 1, 1], [], []>} : vector<8x32xf32>, vector<32x128xf32>, vector<8x128xf32> -> vector<8x128xf32>
    %396 = arith.addf %392, %395 : vector<8x128xf32>
    %397 = vector.extract_strided_slice %396 {offsets = [0, 0], sizes = [8, 96], strides = [1, 1]} : vector<8x128xf32> to vector<8x96xf32>
    %398 = arith.negf %397 : vector<8x96xf32>
    %399 = math.exp %398 : vector<8x96xf32>
    %cst_231 = arith.constant 1.000000e+00 : f32
    %400 = vector.broadcast %cst_231 : f32 to vector<8x96xf32>
    %401 = arith.addf %400, %399 : vector<8x96xf32>
    %402 = arith.divf %400, %401 : vector<8x96xf32>
    %403 = vector.extract_strided_slice %396 {offsets = [0, 96], sizes = [8, 32], strides = [1, 1]} : vector<8x128xf32> to vector<8x32xf32>
    %404 = math.tanh %403 : vector<8x32xf32>
    %405 = vector.extract_strided_slice %402 {offsets = [0, 0], sizes = [8, 32], strides = [1, 1]} : vector<8x96xf32> to vector<8x32xf32>
    %406 = vector.extract_strided_slice %402 {offsets = [0, 32], sizes = [8, 32], strides = [1, 1]} : vector<8x96xf32> to vector<8x32xf32>
    %407 = vector.extract_strided_slice %402 {offsets = [0, 64], sizes = [8, 32], strides = [1, 1]} : vector<8x96xf32> to vector<8x32xf32>
    %c0_232 = arith.constant 0 : index
    %c0_233 = arith.constant 0 : index
    %408 = vector.load %arg13[%c0_232, %c0_233] : memref<8x32xf32, #tpu.memory_space<vmem>>, vector<8x32xf32>
    %409 = arith.mulf %406, %408 : vector<8x32xf32>
    %410 = arith.mulf %405, %404 : vector<8x32xf32>
    %411 = arith.addf %409, %410 : vector<8x32xf32>
    %412 = math.tanh %411 : vector<8x32xf32>
    %413 = arith.mulf %407, %412 : vector<8x32xf32>
    %c0_234 = arith.constant 0 : index
    %c0_235 = arith.constant 0 : index
    %414 = vector.load %arg13[%c0_234, %c0_235] : memref<8x32xf32, #tpu.memory_space<vmem>>, vector<8x32xf32>
    tpu.vector_store %arg13[%c0_234, %c0_235], %411 {strides = array<i32>} : memref<8x32xf32, #tpu.memory_space<vmem>>, vector<8x32xf32>,
    %c0_236 = arith.constant 0 : index
    %c0_237 = arith.constant 0 : index
    %415 = vector.load %arg12[%c0_236, %c0_237] : memref<8x32xf32, #tpu.memory_space<vmem>>, vector<8x32xf32>
    tpu.vector_store %arg12[%c0_236, %c0_237], %413 {strides = array<i32>} : memref<8x32xf32, #tpu.memory_space<vmem>>, vector<8x32xf32>,
    %c6_i32_238 = arith.constant 6 : i32
    %c8_i32_239 = arith.constant 8 : i32
    %416 = arith.muli %c6_i32_238, %c8_i32_239 : i32
    %417 = tpu.assume_multiple %416, 8 : i32
    %418 = arith.index_cast %417 : i32 to index
    %c0_240 = arith.constant 0 : index
    %419 = vector.load %arg10[%418, %c0_240] : memref<64x128xf32, #tpu.memory_space<vmem>>, vector<8x128xf32>
    %c0_241 = arith.constant 0 : index
    %c0_242 = arith.constant 0 : index
    %420 = vector.load %arg12[%c0_241, %c0_242] : memref<8x32xf32, #tpu.memory_space<vmem>>, vector<8x32xf32>
    %c0_243 = arith.constant 0 : index
    %c0_244 = arith.constant 0 : index
    %421 = vector.load %arg5[%c0_243, %c0_244] : memref<32x128xf32, #tpu.memory_space<vmem>>, vector<32x128xf32>
    %cst_245 = arith.constant dense<0.000000e+00> : vector<8x128xf32>
    %422 = tpu.matmul %420, %421, %cst_245 {dimension_numbers = #tpu.dot_dimension_numbers<[1], [0], [0], [1], [0, 0, 1, 1], [], []>} : vector<8x32xf32>, vector<32x128xf32>, vector<8x128xf32> -> vector<8x128xf32>
    %423 = arith.addf %419, %422 : vector<8x128xf32>
    %424 = vector.extract_strided_slice %423 {offsets = [0, 0], sizes = [8, 96], strides = [1, 1]} : vector<8x128xf32> to vector<8x96xf32>
    %425 = arith.negf %424 : vector<8x96xf32>
    %426 = math.exp %425 : vector<8x96xf32>
    %cst_246 = arith.constant 1.000000e+00 : f32
    %427 = vector.broadcast %cst_246 : f32 to vector<8x96xf32>
    %428 = arith.addf %427, %426 : vector<8x96xf32>
    %429 = arith.divf %427, %428 : vector<8x96xf32>
    %430 = vector.extract_strided_slice %423 {offsets = [0, 96], sizes = [8, 32], strides = [1, 1]} : vector<8x128xf32> to vector<8x32xf32>
    %431 = math.tanh %430 : vector<8x32xf32>
    %432 = vector.extract_strided_slice %429 {offsets = [0, 0], sizes = [8, 32], strides = [1, 1]} : vector<8x96xf32> to vector<8x32xf32>
    %433 = vector.extract_strided_slice %429 {offsets = [0, 32], sizes = [8, 32], strides = [1, 1]} : vector<8x96xf32> to vector<8x32xf32>
    %434 = vector.extract_strided_slice %429 {offsets = [0, 64], sizes = [8, 32], strides = [1, 1]} : vector<8x96xf32> to vector<8x32xf32>
    %c0_247 = arith.constant 0 : index
    %c0_248 = arith.constant 0 : index
    %435 = vector.load %arg13[%c0_247, %c0_248] : memref<8x32xf32, #tpu.memory_space<vmem>>, vector<8x32xf32>
    %436 = arith.mulf %433, %435 : vector<8x32xf32>
    %437 = arith.mulf %432, %431 : vector<8x32xf32>
    %438 = arith.addf %436, %437 : vector<8x32xf32>
    %439 = math.tanh %438 : vector<8x32xf32>
    %440 = arith.mulf %434, %439 : vector<8x32xf32>
    %c0_249 = arith.constant 0 : index
    %c0_250 = arith.constant 0 : index
    %441 = vector.load %arg13[%c0_249, %c0_250] : memref<8x32xf32, #tpu.memory_space<vmem>>, vector<8x32xf32>
    tpu.vector_store %arg13[%c0_249, %c0_250], %438 {strides = array<i32>} : memref<8x32xf32, #tpu.memory_space<vmem>>, vector<8x32xf32>,
    %c0_251 = arith.constant 0 : index
    %c0_252 = arith.constant 0 : index
    %442 = vector.load %arg12[%c0_251, %c0_252] : memref<8x32xf32, #tpu.memory_space<vmem>>, vector<8x32xf32>
    tpu.vector_store %arg12[%c0_251, %c0_252], %440 {strides = array<i32>} : memref<8x32xf32, #tpu.memory_space<vmem>>, vector<8x32xf32>,
    %c7_i32_253 = arith.constant 7 : i32
    %c8_i32_254 = arith.constant 8 : i32
    %443 = arith.muli %c7_i32_253, %c8_i32_254 : i32
    %444 = tpu.assume_multiple %443, 8 : i32
    %445 = arith.index_cast %444 : i32 to index
    %c0_255 = arith.constant 0 : index
    %446 = vector.load %arg10[%445, %c0_255] : memref<64x128xf32, #tpu.memory_space<vmem>>, vector<8x128xf32>
    %c0_256 = arith.constant 0 : index
    %c0_257 = arith.constant 0 : index
    %447 = vector.load %arg12[%c0_256, %c0_257] : memref<8x32xf32, #tpu.memory_space<vmem>>, vector<8x32xf32>
    %c0_258 = arith.constant 0 : index
    %c0_259 = arith.constant 0 : index
    %448 = vector.load %arg5[%c0_258, %c0_259] : memref<32x128xf32, #tpu.memory_space<vmem>>, vector<32x128xf32>
    %cst_260 = arith.constant dense<0.000000e+00> : vector<8x128xf32>
    %449 = tpu.matmul %447, %448, %cst_260 {dimension_numbers = #tpu.dot_dimension_numbers<[1], [0], [0], [1], [0, 0, 1, 1], [], []>} : vector<8x32xf32>, vector<32x128xf32>, vector<8x128xf32> -> vector<8x128xf32>
    %450 = arith.addf %446, %449 : vector<8x128xf32>
    %451 = vector.extract_strided_slice %450 {offsets = [0, 0], sizes = [8, 96], strides = [1, 1]} : vector<8x128xf32> to vector<8x96xf32>
    %452 = arith.negf %451 : vector<8x96xf32>
    %453 = math.exp %452 : vector<8x96xf32>
    %cst_261 = arith.constant 1.000000e+00 : f32
    %454 = vector.broadcast %cst_261 : f32 to vector<8x96xf32>
    %455 = arith.addf %454, %453 : vector<8x96xf32>
    %456 = arith.divf %454, %455 : vector<8x96xf32>
    %457 = vector.extract_strided_slice %450 {offsets = [0, 96], sizes = [8, 32], strides = [1, 1]} : vector<8x128xf32> to vector<8x32xf32>
    %458 = math.tanh %457 : vector<8x32xf32>
    %459 = vector.extract_strided_slice %456 {offsets = [0, 0], sizes = [8, 32], strides = [1, 1]} : vector<8x96xf32> to vector<8x32xf32>
    %460 = vector.extract_strided_slice %456 {offsets = [0, 32], sizes = [8, 32], strides = [1, 1]} : vector<8x96xf32> to vector<8x32xf32>
    %461 = vector.extract_strided_slice %456 {offsets = [0, 64], sizes = [8, 32], strides = [1, 1]} : vector<8x96xf32> to vector<8x32xf32>
    %c0_262 = arith.constant 0 : index
    %c0_263 = arith.constant 0 : index
    %462 = vector.load %arg13[%c0_262, %c0_263] : memref<8x32xf32, #tpu.memory_space<vmem>>, vector<8x32xf32>
    %463 = arith.mulf %460, %462 : vector<8x32xf32>
    %464 = arith.mulf %459, %458 : vector<8x32xf32>
    %465 = arith.addf %463, %464 : vector<8x32xf32>
    %466 = math.tanh %465 : vector<8x32xf32>
    %467 = arith.mulf %461, %466 : vector<8x32xf32>
    %c0_264 = arith.constant 0 : index
    %c0_265 = arith.constant 0 : index
    %468 = vector.load %arg13[%c0_264, %c0_265] : memref<8x32xf32, #tpu.memory_space<vmem>>, vector<8x32xf32>
    tpu.vector_store %arg13[%c0_264, %c0_265], %465 {strides = array<i32>} : memref<8x32xf32, #tpu.memory_space<vmem>>, vector<8x32xf32>,
    %c0_266 = arith.constant 0 : index
    %c0_267 = arith.constant 0 : index
    %469 = vector.load %arg12[%c0_266, %c0_267] : memref<8x32xf32, #tpu.memory_space<vmem>>, vector<8x32xf32>
    tpu.vector_store %arg12[%c0_266, %c0_267], %467 {strides = array<i32>} : memref<8x32xf32, #tpu.memory_space<vmem>>, vector<8x32xf32>,
    %c8_i32_268 = arith.constant 8 : i32
    %c0_269 = arith.constant 0 : index
    %c0_270 = arith.constant 0 : index
    %470 = vector.load %arg12[%c0_269, %c0_270] : memref<8x32xf32, #tpu.memory_space<vmem>>, vector<8x32xf32>
    %c0_271 = arith.constant 0 : index
    %c0_272 = arith.constant 0 : index
    %471 = vector.load %arg7[%c0_271, %c0_272] : memref<32x1xf32, #tpu.memory_space<vmem>>, vector<32x1xf32>
    %cst_273 = arith.constant dense<0.000000e+00> : vector<8x1xf32>
    %472 = tpu.matmul %470, %471, %cst_273 {dimension_numbers = #tpu.dot_dimension_numbers<[1], [0], [0], [1], [0, 0, 1, 1], [], []>} : vector<8x32xf32>, vector<32x1xf32>, vector<8x1xf32> -> vector<8x1xf32>
    %c0_274 = arith.constant 0 : index
    %c0_275 = arith.constant 0 : index
    %473 = vector.load %arg8[%c0_274, %c0_275] : memref<1x1xf32, #tpu.memory_space<vmem>>, vector<1x1xf32>
    %474 = vector.broadcast %473 : vector<1x1xf32> to vector<8x1xf32>
    %475 = arith.addf %472, %474 : vector<8x1xf32>
    %c0_276 = arith.constant 0 : index
    %c0_277 = arith.constant 0 : index
    %476 = vector.load %arg9[%c0_276, %c0_277] : memref<8x1xf32, #tpu.memory_space<vmem>>, vector<8x1xf32>
    tpu.vector_store %arg9[%c0_276, %c0_277], %475 {strides = array<i32>} : memref<8x1xf32, #tpu.memory_space<vmem>>, vector<8x1xf32>,
    return
  }
}

</mosaic_0001>

<llo_original>
// kernel: tpu_custom_call.1
$region0: #{tpu_custom_call.1}
  #allocation0 [shape = 'u32[]', space=smem, size = 0x4, offset = 0x4, fixed_abs, tag = 'smem constant byte address 0x4 - core index']
  #allocation1 [shape = 'u32[144,128]{1,0:T(1,128)}', space=vmem, size = 0x12000, scoped, tag = 'internal scratch']
  #allocation2 [shape = 'f32[64,128]{1,0:T(8,128)}', space=vmem, size = 0x8000, scoped, tag = 'scratch operand']
  #allocation3 [shape = 'f32[64,32]{1,0:T(8,128)}', space=vmem, size = 0x8000, scoped, tag = 'scratch operand']
  #allocation4 [shape = 'f32[8,32]{1,0:T(8,128)}', space=vmem, size = 0x1000, scoped, tag = 'scratch operand']
  #allocation5 [shape = 'f32[8,32]{1,0:T(8,128)}', space=vmem, size = 0x1000, scoped, tag = 'scratch operand']
  #allocation6 [shape = 'f32[1,1]{1,0:T(1,128)S(1)}', space=vmem, size = 0x200, scoped, tag = 'scoped memory for tpu_custom_call.1']
  %s0 = inlined_call_operand.vmem [shape: f32[64,16], index: 0, kind: input, shape index: {}]
  %s1 = inlined_call_operand.hbm [shape: f32[16,128], index: 1, kind: input, shape index: {}]
  %s2 = inlined_call_operand.vmem [shape: f32[32,128], index: 2, kind: input, shape index: {}]
  %s3 = inlined_call_operand.vmem [shape: f32[1,128], index: 3, kind: input, shape index: {}]
  %s4 = inlined_call_operand.vmem [shape: f32[32,128], index: 4, kind: input, shape index: {}]
  %s5 = inlined_call_operand.vmem [shape: f32[32,128], index: 5, kind: input, shape index: {}]
  %s6 = inlined_call_operand.vmem [shape: f32[1,128], index: 6, kind: input, shape index: {}]
  %s7 = inlined_call_operand.vmem [shape: f32[32,1], index: 7, kind: input, shape index: {}]
  %s8 = inlined_call_operand.<no memory space> [shape: f32[1,1], index: 8, kind: input, shape index: {}]
  %s9 = inlined_call_operand.vmem [shape: f32[8,1], index: 9, kind: output, shape index: {}]
  %s10 = sld [smem:[#allocation0]]
  $region50: #{tpu_custom_call.1} parent=0
    _
  %s12 = ssub.s32 1, %s10
  %s13 = scalar_select 0, %s12, %s10
  %v14 = vstv %s8
  %15 = vst [vmem:[#allocation6] sm:$0x1] %v14
  $region1: #{tpu_custom_call.1} parent=0
    #allocation7 [shape = 'u8[8192]{0}', space=vmem, size = 0x2000, scoped, tag = 'input window, operand 1, single buffered']
    #allocation8 [shape = 's32[1]{0}', space=sflag, size = 0x4, scoped, tag = 'scoped memory for tpu_custom_call.1']
    %16 = vsyncpa [#allocation8], 0
    // Predicated region
    $region2: #{tpu_custom_call.1} parent=1 // pred_check
      _
    $region3: #{tpu_custom_call.1} parent=1 // pred_check_branch
      %18 = sbr.rel (0) target = $region5
    $region4: #{tpu_custom_call.1} parent=1 // pred_region
      _
    $region5: #{tpu_custom_call.1} parent=1 // pred_fallthru
      _
    // Predicated region
    $region6: #{tpu_custom_call.1} parent=1 // pred_check
      _
    $region7: #{tpu_custom_call.1} parent=1 // pred_check_branch
      %20 = sbr.rel (0) target = $region9
    $region8: #{tpu_custom_call.1} parent=1 // pred_region
      %s22 = ssub.s32 256, 256
      %23 = vsyncadd [#allocation8], %s22
      %s24 = sshll.u32 [#allocation7], 4
      %s25 = int_to_ptr.vmem [resolvable:$true] %s24
      %30 = dma.hbm_to_vmem [thread:$0]  %s1, 256, %s25, [#allocation8], 128, 128, 8
    $region9: #{tpu_custom_call.1} parent=1 // pred_fallthru
      _
    // Predicated region
    $region10: #{tpu_custom_call.1} parent=1 // pred_check
      _
    $region11: #{tpu_custom_call.1} parent=1 // pred_check_branch
      %32 = sbr.rel (0) target = $region13
    $region12: #{tpu_custom_call.1} parent=1 // pred_region
      _
    $region13: #{tpu_custom_call.1} parent=1 // pred_fallthru
      _
    // Predicated region
    $region14: #{tpu_custom_call.1} parent=1 // pred_check
      _
    $region15: #{tpu_custom_call.1} parent=1 // pred_check_branch
      %34 = sbr.rel (0) target = $region17
    $region16: #{tpu_custom_call.1} parent=1 // pred_region
      _
    $region17: #{tpu_custom_call.1} parent=1 // pred_fallthru
      _
    // Predicated region
    $region18: #{tpu_custom_call.1} parent=1 // pred_check
      _
    $region19: #{tpu_custom_call.1} parent=1 // pred_check_branch
      %36 = sbr.rel (0) target = $region21
    $region20: #{tpu_custom_call.1} parent=1 // pred_region
      _
    $region21: #{tpu_custom_call.1} parent=1 // pred_fallthru
      _
    // Predicated region
    $region22: #{tpu_custom_call.1} parent=1 // pred_check
      _
    $region23: #{tpu_custom_call.1} parent=1 // pred_check_branch
      %38 = sbr.rel (0) target = $region25
    $region24: #{tpu_custom_call.1} parent=1 // pred_region
      _
    $region25: #{tpu_custom_call.1} parent=1 // pred_fallthru
      _
    // Predicated region
    $region26: #{tpu_custom_call.1} parent=1 // pred_check
      _
    $region27: #{tpu_custom_call.1} parent=1 // pred_check_branch
      %40 = sbr.rel (0) target = $region29
    $region28: #{tpu_custom_call.1} parent=1 // pred_region
      _
    $region29: #{tpu_custom_call.1} parent=1 // pred_fallthru
      _
    // Predicated region
    $region30: #{tpu_custom_call.1} parent=1 // pred_check
      _
    $region31: #{tpu_custom_call.1} parent=1 // pred_check_branch
      %42 = sbr.rel (0) target = $region33
    $region32: #{tpu_custom_call.1} parent=1 // pred_region
      _
    $region33: #{tpu_custom_call.1} parent=1 // pred_fallthru
      _
    // Predicated region
    $region34: #{tpu_custom_call.1} parent=1 // pred_check
      _
    $region35: #{tpu_custom_call.1} parent=1 // pred_check_branch
      %44 = sbr.rel (0) target = $region37
    $region36: #{tpu_custom_call.1} parent=1 // pred_region
      _
    $region37: #{tpu_custom_call.1} parent=1 // pred_fallthru
      _
    // Predicated region
    $region38: #{tpu_custom_call.1} parent=1 // pred_check
      _
    $region39: #{tpu_custom_call.1} parent=1 // pred_check_branch
      %46 = sbr.rel (0) target = $region41
    $region40: #{tpu_custom_call.1} parent=1 // pred_region
      %47 = dma.done [#allocation8], 256
    $region41: #{tpu_custom_call.1} parent=1 // pred_fallthru
      _
    %v48 = vld [vmem:[%s0] sm:$0xff]
    %v49 = vld [vmem:[%s0 + $0x8] sm:$0xff]
    %v50 = vld [vmem:[%s0 + $0x10] sm:$0xff]
    %v51 = vld [vmem:[%s0 + $0x18] sm:$0xff]
    %v52 = vld [vmem:[%s0 + $0x20] sm:$0xff]
    %v53 = vld [vmem:[%s0 + $0x28] sm:$0xff]
    %v54 = vld [vmem:[%s0 + $0x30] sm:$0xff]
    %v55 = vld [vmem:[%s0 + $0x38] sm:$0xff]
    %v56 = vld [vmem:[#allocation7] sm:$0xff]
    %v57 = vld [vmem:[#allocation7 + $0x8] sm:$0xff]
    %v58 = vld [vmem:[%s3] sm:$0x1]
    %v60 = vlaneseq
    %v61 = vshrl.u32 %v60, 7
    %v62 = vsub.s32 0, %v61
    %v63 = vrot.slane %v58, %v62
    %vm65 = vcmask 130048
    %v67 = vsel %vm65, %v48, 0
    %v70 = vsel %vm65, %v49, 0
    %v73 = vsel %vm65, %v50, 0
    %v76 = vsel %vm65, %v51, 0
    %v79 = vsel %vm65, %v52, 0
    %v82 = vsel %vm65, %v53, 0
    %v85 = vsel %vm65, %v54, 0
    %v88 = vsel %vm65, %v55, 0
    %90 = vmatprep.subr.mxu0 0.0
    %91 = vmatpush1.msra.mxu0 %v56
    %92 = vmatprep.subr.mxu0 0.0
    %93 = vmatpush1.msra.mxu0 %v57
    %94 = vmatprep.subr.mxu0 0.0
    %95 = vmatpush1.msra.mxu0 0.0
    %96 = vmatprep.subr.mxu0 0.0
    %97 = vmatpush1.msra.mxu0 0.0
    %98 = vmatprep.subr.mxu0 0.0
    %99 = vmatpush1.msra.mxu0 0.0
    %100 = vmatprep.subr.mxu0 0.0
    %101 = vmatpush1.msra.mxu0 0.0
    %102 = vmatprep.subr.mxu0 0.0
    %103 = vmatpush1.msra.mxu0 0.0
    %104 = vmatprep.subr.mxu0 0.0
    %105 = vmatpush1.msra.mxu0 0.0
    %106 = vmatprep.subr.mxu0 0.0
    %107 = vmatpush1.msra.mxu0 0.0
    %108 = vmatprep.subr.mxu0 0.0
    %109 = vmatpush1.msra.mxu0 0.0
    %110 = vmatprep.subr.mxu0 0.0
    %111 = vmatpush1.msra.mxu0 0.0
    %112 = vmatprep.subr.mxu0 0.0
    %113 = vmatpush1.msra.mxu0 0.0
    %114 = vmatprep.subr.mxu0 0.0
    %115 = vmatpush1.msra.mxu0 0.0
    %116 = vmatprep.subr.mxu0 0.0
    %117 = vmatpush1.msra.mxu0 0.0
    %118 = vmatprep.subr.mxu0 0.0
    %119 = vmatpush1.msra.mxu0 0.0
    %120 = vmatprep.subr.mxu0 0.0
    %121 = vmatpush1.msra.mxu0 0.0
    %122 = vmatprep.subr.mxu0 0.0
    %123 = vmatpush1.msra.mxu0 0.0
    %124 = vmatprep.subr.mxu0 0.0
    %125 = vmatpush1.msra.mxu0 0.0
    %126 = vmatprep.subr.mxu0 0.0
    %127 = vmatpush1.msra.mxu0 0.0
    %128 = vmatprep.subr.mxu0 0.0
    %129 = vmatpush1.msra.mxu0 0.0
    %130 = vmatprep.subr.mxu0 0.0
    %131 = vmatpush1.msra.mxu0 0.0
    %132 = vmatprep.subr.mxu0 0.0
    %133 = vmatpush1.msra.mxu0 0.0
    %134 = vmatprep.subr.mxu0 0.0
    %135 = vmatpush1.msra.mxu0 0.0
    %136 = vmatprep.subr.mxu0 0.0
    %137 = vmatpush1.msra.mxu0 0.0
    %138 = vmatprep.subr.mxu0 0.0
    %139 = vmatpush1.msra.mxu0 0.0
    %140 = vmatprep.subr.mxu0 0.0
    %141 = vmatpush1.msra.mxu0 0.0
    %142 = vmatprep.subr.mxu0 0.0
    %143 = vmatpush1.msra.mxu0 0.0
    %144 = vmatprep.subr.mxu0 0.0
    %145 = vmatpush1.msra.mxu0 0.0
    %146 = vmatprep.subr.mxu0 0.0
    %147 = vmatpush1.msra.mxu0 0.0
    %148 = vmatprep.subr.mxu0 0.0
    %149 = vmatpush1.msra.mxu0 0.0
    %150 = vmatprep.subr.mxu0 0.0
    %151 = vmatpush1.msra.mxu0 0.0
    %152 = vmatprep.subr.mxu0 0.0
    %153 = vmatpush1.msra.mxu0 0.0
    %154 = vmatprep.mubr.f32.mxu0 0.0
    %155 = vmatmul.mubr.f32.gmra.mrb[0].mxu0 %v67
    %v156 = vpop.f32.mrb[0].mxu0
    %v157 = vadd.f32 %v63, %v156
    %v158 = vpop.f32.mrb[0].mxu0
    %159 = vmatprep.mubr.f32.mxu0 0.0
    %160 = vmatmul.mubr.f32.gmra.mrb[0].mxu0 %v70
    %v161 = vpop.f32.mrb[0].mxu0
    %v162 = vadd.f32 %v63, %v161
    %v163 = vpop.f32.mrb[0].mxu0
    %164 = vmatprep.mubr.f32.mxu0 0.0
    %165 = vmatmul.mubr.f32.gmra.mrb[0].mxu0 %v73
    %v166 = vpop.f32.mrb[0].mxu0
    %v167 = vadd.f32 %v63, %v166
    %v168 = vpop.f32.mrb[0].mxu0
    %169 = vmatprep.mubr.f32.mxu0 0.0
    %170 = vmatmul.mubr.f32.gmra.mrb[0].mxu0 %v76
    %v171 = vpop.f32.mrb[0].mxu0
    %v172 = vadd.f32 %v63, %v171
    %v173 = vpop.f32.mrb[0].mxu0
    %174 = vmatprep.mubr.f32.mxu0 0.0
    %175 = vmatmul.mubr.f32.gmra.mrb[0].mxu0 %v79
    %v176 = vpop.f32.mrb[0].mxu0
    %v177 = vadd.f32 %v63, %v176
    %v178 = vpop.f32.mrb[0].mxu0
    %179 = vmatprep.mubr.f32.mxu0 0.0
    %180 = vmatmul.mubr.f32.gmra.mrb[0].mxu0 %v82
    %v181 = vpop.f32.mrb[0].mxu0
    %v182 = vadd.f32 %v63, %v181
    %v183 = vpop.f32.mrb[0].mxu0
    %184 = vmatprep.mubr.f32.mxu0 0.0
    %185 = vmatmul.mubr.f32.gmra.mrb[0].mxu0 %v85
    %v186 = vpop.f32.mrb[0].mxu0
    %v187 = vadd.f32 %v63, %v186
    %v188 = vpop.f32.mrb[0].mxu0
    %189 = vmatprep.mubr.f32.mxu0 0.0
    %190 = vmatmul.mubr.f32.gmra.mrb[0].mxu0 %v88
    %v191 = vpop.f32.mrb[0].mxu0
    %v192 = vadd.f32 %v63, %v191
    %v193 = vpop.f32.mrb[0].mxu0
    %194 = vdwg.mxu0
    %195 = vst [vmem:[#allocation2] sm:$0xff] %v157
    %196 = vst [vmem:[#allocation2 + $0x8] sm:$0xff] %v162
    %197 = vst [vmem:[#allocation2 + $0x10] sm:$0xff] %v167
    %198 = vst [vmem:[#allocation2 + $0x18] sm:$0xff] %v172
    %199 = vst [vmem:[#allocation2 + $0x20] sm:$0xff] %v177
    %200 = vst [vmem:[#allocation2 + $0x28] sm:$0xff] %v182
    %201 = vst [vmem:[#allocation2 + $0x30] sm:$0xff] %v187
    %202 = vst [vmem:[#allocation2 + $0x38] sm:$0xff] %v192
    %vm203 = vcmask 261120
    %204 = vst.msk [vmem:[#allocation4] sm:$0xff] %vm203, 0.0
    %205 = vst.msk [vmem:[#allocation5] sm:$0xff] %vm203, 0.0
    %v206 = vld [vmem:[#allocation2] sm:$0xff]
    %v207 = vld [vmem:[#allocation4] sm:$0xff]
    %v208 = vld [vmem:[%s2] sm:$0xff]
    %v209 = vld [vmem:[%s2 + $0x8] sm:$0xff]
    %v210 = vld [vmem:[%s2 + $0x10] sm:$0xff]
    %v211 = vld [vmem:[%s2 + $0x18] sm:$0xff]
    %v213 = vsel %vm203, %v207, 0
    %215 = vmatprep.subr.mxu0 0.0
    %216 = vmatpush1.msra.mxu0 %v208
    %217 = vmatprep.subr.mxu0 0.0
    %218 = vmatpush1.msra.mxu0 %v209
    %219 = vmatprep.subr.mxu0 0.0
    %220 = vmatpush1.msra.mxu0 %v210
    %221 = vmatprep.subr.mxu0 0.0
    %222 = vmatpush1.msra.mxu0 %v211
    %223 = vmatprep.subr.mxu0 0.0
    %224 = vmatpush1.msra.mxu0 0.0
    %225 = vmatprep.subr.mxu0 0.0
    %226 = vmatpush1.msra.mxu0 0.0
    %227 = vmatprep.subr.mxu0 0.0
    %228 = vmatpush1.msra.mxu0 0.0
    %229 = vmatprep.subr.mxu0 0.0
    %230 = vmatpush1.msra.mxu0 0.0
    %231 = vmatprep.subr.mxu0 0.0
    %232 = vmatpush1.msra.mxu0 0.0
    %233 = vmatprep.subr.mxu0 0.0
    %234 = vmatpush1.msra.mxu0 0.0
    %235 = vmatprep.subr.mxu0 0.0
    %236 = vmatpush1.msra.mxu0 0.0
    %237 = vmatprep.subr.mxu0 0.0
    %238 = vmatpush1.msra.mxu0 0.0
    %239 = vmatprep.subr.mxu0 0.0
    %240 = vmatpush1.msra.mxu0 0.0
    %241 = vmatprep.subr.mxu0 0.0
    %242 = vmatpush1.msra.mxu0 0.0
    %243 = vmatprep.subr.mxu0 0.0
    %244 = vmatpush1.msra.mxu0 0.0
    %245 = vmatprep.subr.mxu0 0.0
    %246 = vmatpush1.msra.mxu0 0.0
    %247 = vmatprep.subr.mxu0 0.0
    %248 = vmatpush1.msra.mxu0 0.0
    %249 = vmatprep.subr.mxu0 0.0
    %250 = vmatpush1.msra.mxu0 0.0
    %251 = vmatprep.subr.mxu0 0.0
    %252 = vmatpush1.msra.mxu0 0.0
    %253 = vmatprep.subr.mxu0 0.0
    %254 = vmatpush1.msra.mxu0 0.0
    %255 = vmatprep.subr.mxu0 0.0
    %256 = vmatpush1.msra.mxu0 0.0
    %257 = vmatprep.subr.mxu0 0.0
    %258 = vmatpush1.msra.mxu0 0.0
    %259 = vmatprep.subr.mxu0 0.0
    %260 = vmatpush1.msra.mxu0 0.0
    %261 = vmatprep.subr.mxu0 0.0
    %262 = vmatpush1.msra.mxu0 0.0
    %263 = vmatprep.subr.mxu0 0.0
    %264 = vmatpush1.msra.mxu0 0.0
    %265 = vmatprep.subr.mxu0 0.0
    %266 = vmatpush1.msra.mxu0 0.0
    %267 = vmatprep.subr.mxu0 0.0
    %268 = vmatpush1.msra.mxu0 0.0
    %269 = vmatprep.subr.mxu0 0.0
    %270 = vmatpush1.msra.mxu0 0.0
    %271 = vmatprep.subr.mxu0 0.0
    %272 = vmatpush1.msra.mxu0 0.0
    %273 = vmatprep.subr.mxu0 0.0
    %274 = vmatpush1.msra.mxu0 0.0
    %275 = vmatprep.subr.mxu0 0.0
    %276 = vmatpush1.msra.mxu0 0.0
    %277 = vmatprep.subr.mxu0 0.0
    %278 = vmatpush1.msra.mxu0 0.0
    %279 = vmatprep.mubr.f32.mxu0 0.0
    %280 = vmatmul.mubr.f32.gmra.mrb[0].mxu0 %v213
    %v281 = vpop.f32.mrb[0].mxu0
    %v282 = vadd.f32 0.0, %v281
    %v283 = vpop.f32.mrb[0].mxu0
    %284 = vdwg.mxu0
    %v285 = vadd.f32 %v206, %v282
    %v286 = vxor.u32 %v285, 2147483648
    %v287 = vmul.f32 %v286, 1.442695
    %v288 = vpow.pop %v287
    %v289 = vadd.f32 %v288, 1.0
    %v290 = vrcp.pop %v289
    %v291 = vmul.f32 1.0, %v290
    %v292 = vtanh.pop %v285
    %v293 = vld [vmem:[#allocation5] sm:$0xff]
    %295 = vrot.lane.b32.xlu0 %v293, 32
    %v296 = vpop.permute.xlu0 %295
    %v298 = vmul.f32 %v291, %v296
    %300 = vrot.lane.b32.xlu0 %v292, 32
    %v301 = vpop.permute.xlu0 %300
    %v303 = vmul.f32 %v291, %v301
    %305 = vrot.lane.b32.xlu0 %v303, 32
    %v306 = vpop.permute.xlu0 %305
    %v308 = vadd.f32 %v298, %v306
    %v309 = vtanh.pop %v308
    %311 = vrot.lane.b32.xlu0 %v309, 32
    %v312 = vpop.permute.xlu0 %311
    %v314 = vmul.f32 %v291, %v312
    %316 = vrot.lane.b32.xlu0 %v308, 96
    %v317 = vpop.permute.xlu0 %316
    %319 = vst.msk [vmem:[#allocation5] sm:$0xff] %vm203, %v317
    %321 = vrot.lane.b32.xlu0 %v314, 64
    %v322 = vpop.permute.xlu0 %321
    %324 = vst.msk [vmem:[#allocation4] sm:$0xff] %vm203, %v322
    %325 = vst.msk [vmem:[#allocation3] sm:$0xff] %vm203, %v322
    %s326 = scalar_lea.vmem [#allocation2], 8
    %v327 = vld [vmem:[%s326] sm:$0xff]
    %v328 = vld [vmem:[#allocation4] sm:$0xff]
    %v329 = vld [vmem:[%s2] sm:$0xff]
    %v330 = vld [vmem:[%s2 + $0x8] sm:$0xff]
    %v331 = vld [vmem:[%s2 + $0x10] sm:$0xff]
    %v332 = vld [vmem:[%s2 + $0x18] sm:$0xff]
    %v334 = vsel %vm203, %v328, 0
    %336 = vmatprep.subr.mxu0 0.0
    %337 = vmatpush1.msra.mxu0 %v329
    %338 = vmatprep.subr.mxu0 0.0
    %339 = vmatpush1.msra.mxu0 %v330
    %340 = vmatprep.subr.mxu0 0.0
    %341 = vmatpush1.msra.mxu0 %v331
    %342 = vmatprep.subr.mxu0 0.0
    %343 = vmatpush1.msra.mxu0 %v332
    %344 = vmatprep.subr.mxu0 0.0
    %345 = vmatpush1.msra.mxu0 0.0
    %346 = vmatprep.subr.mxu0 0.0
    %347 = vmatpush1.msra.mxu0 0.0
    %348 = vmatprep.subr.mxu0 0.0
    %349 = vmatpush1.msra.mxu0 0.0
    %350 = vmatprep.subr.mxu0 0.0
    %351 = vmatpush1.msra.mxu0 0.0
    %352 = vmatprep.subr.mxu0 0.0
    %353 = vmatpush1.msra.mxu0 0.0
    %354 = vmatprep.subr.mxu0 0.0
    %355 = vmatpush1.msra.mxu0 0.0
    %356 = vmatprep.subr.mxu0 0.0
    %357 = vmatpush1.msra.mxu0 0.0
    %358 = vmatprep.subr.mxu0 0.0
    %359 = vmatpush1.msra.mxu0 0.0
    %360 = vmatprep.subr.mxu0 0.0
    %361 = vmatpush1.msra.mxu0 0.0
    %362 = vmatprep.subr.mxu0 0.0
    %363 = vmatpush1.msra.mxu0 0.0
    %364 = vmatprep.subr.mxu0 0.0
    %365 = vmatpush1.msra.mxu0 0.0
    %366 = vmatprep.subr.mxu0 0.0
    %367 = vmatpush1.msra.mxu0 0.0
    %368 = vmatprep.subr.mxu0 0.0
    %369 = vmatpush1.msra.mxu0 0.0
    %370 = vmatprep.subr.mxu0 0.0
    %371 = vmatpush1.msra.mxu0 0.0
    %372 = vmatprep.subr.mxu0 0.0
    %373 = vmatpush1.msra.mxu0 0.0
    %374 = vmatprep.subr.mxu0 0.0
    %375 = vmatpush1.msra.mxu0 0.0
    %376 = vmatprep.subr.mxu0 0.0
    %377 = vmatpush1.msra.mxu0 0.0
    %378 = vmatprep.subr.mxu0 0.0
    %379 = vmatpush1.msra.mxu0 0.0
    %380 = vmatprep.subr.mxu0 0.0
    %381 = vmatpush1.msra.mxu0 0.0
    %382 = vmatprep.subr.mxu0 0.0
    %383 = vmatpush1.msra.mxu0 0.0
    %384 = vmatprep.subr.mxu0 0.0
    %385 = vmatpush1.msra.mxu0 0.0
    %386 = vmatprep.subr.mxu0 0.0
    %387 = vmatpush1.msra.mxu0 0.0
    %388 = vmatprep.subr.mxu0 0.0
    %389 = vmatpush1.msra.mxu0 0.0
    %390 = vmatprep.subr.mxu0 0.0
    %391 = vmatpush1.msra.mxu0 0.0
    %392 = vmatprep.subr.mxu0 0.0
    %393 = vmatpush1.msra.mxu0 0.0
    %394 = vmatprep.subr.mxu0 0.0
    %395 = vmatpush1.msra.mxu0 0.0
    %396 = vmatprep.subr.mxu0 0.0
    %397 = vmatpush1.msra.mxu0 0.0
    %398 = vmatprep.subr.mxu0 0.0
    %399 = vmatpush1.msra.mxu0 0.0
    %400 = vmatprep.mubr.f32.mxu0 0.0
    %401 = vmatmul.mubr.f32.gmra.mrb[0].mxu0 %v334
    %v402 = vpop.f32.mrb[0].mxu0
    %v403 = vadd.f32 0.0, %v402
    %v404 = vpop.f32.mrb[0].mxu0
    %405 = vdwg.mxu0
    %v406 = vadd.f32 %v327, %v403
    %v407 = vxor.u32 %v406, 2147483648
    %v408 = vmul.f32 %v407, 1.442695
    %v409 = vpow.pop %v408
    %v410 = vadd.f32 %v409, 1.0
    %v411 = vrcp.pop %v410
    %v412 = vmul.f32 1.0, %v411
    %v413 = vtanh.pop %v406
    %v414 = vld [vmem:[#allocation5] sm:$0xff]
    %416 = vrot.lane.b32.xlu0 %v414, 32
    %v417 = vpop.permute.xlu0 %416
    %v419 = vmul.f32 %v412, %v417
    %421 = vrot.lane.b32.xlu0 %v413, 32
    %v422 = vpop.permute.xlu0 %421
    %v424 = vmul.f32 %v412, %v422
    %426 = vrot.lane.b32.xlu0 %v424, 32
    %v427 = vpop.permute.xlu0 %426
    %v429 = vadd.f32 %v419, %v427
    %v430 = vtanh.pop %v429
    %432 = vrot.lane.b32.xlu0 %v430, 32
    %v433 = vpop.permute.xlu0 %432
    %v435 = vmul.f32 %v412, %v433
    %437 = vrot.lane.b32.xlu0 %v429, 96
    %v438 = vpop.permute.xlu0 %437
    %440 = vst.msk [vmem:[#allocation5] sm:$0xff] %vm203, %v438
    %442 = vrot.lane.b32.xlu0 %v435, 64
    %v443 = vpop.permute.xlu0 %442
    %445 = vst.msk [vmem:[#allocation4] sm:$0xff] %vm203, %v443
    %s446 = scalar_lea.vmem [#allocation3], 8
    %447 = vst.msk [vmem:[%s446] sm:$0xff] %vm203, %v443
    %s448 = scalar_lea.vmem [#allocation2], 16
    %v449 = vld [vmem:[%s448] sm:$0xff]
    %v450 = vld [vmem:[#allocation4] sm:$0xff]
    %v451 = vld [vmem:[%s2] sm:$0xff]
    %v452 = vld [vmem:[%s2 + $0x8] sm:$0xff]
    %v453 = vld [vmem:[%s2 + $0x10] sm:$0xff]
    %v454 = vld [vmem:[%s2 + $0x18] sm:$0xff]
    %v456 = vsel %vm203, %v450, 0
    %458 = vmatprep.subr.mxu0 0.0
    %459 = vmatpush1.msra.mxu0 %v451
    %460 = vmatprep.subr.mxu0 0.0
    %461 = vmatpush1.msra.mxu0 %v452
    %462 = vmatprep.subr.mxu0 0.0
    %463 = vmatpush1.msra.mxu0 %v453
    %464 = vmatprep.subr.mxu0 0.0
    %465 = vmatpush1.msra.mxu0 %v454
    %466 = vmatprep.subr.mxu0 0.0
    %467 = vmatpush1.msra.mxu0 0.0
    %468 = vmatprep.subr.mxu0 0.0
    %469 = vmatpush1.msra.mxu0 0.0
    %470 = vmatprep.subr.mxu0 0.0
    %471 = vmatpush1.msra.mxu0 0.0
    %472 = vmatprep.subr.mxu0 0.0
    %473 = vmatpush1.msra.mxu0 0.0
    %474 = vmatprep.subr.mxu0 0.0
    %475 = vmatpush1.msra.mxu0 0.0
    %476 = vmatprep.subr.mxu0 0.0
    %477 = vmatpush1.msra.mxu0 0.0
    %478 = vmatprep.subr.mxu0 0.0
    %479 = vmatpush1.msra.mxu0 0.0
    %480 = vmatprep.subr.mxu0 0.0
    %481 = vmatpush1.msra.mxu0 0.0
    %482 = vmatprep.subr.mxu0 0.0
    %483 = vmatpush1.msra.mxu0 0.0
    %484 = vmatprep.subr.mxu0 0.0
    %485 = vmatpush1.msra.mxu0 0.0
    %486 = vmatprep.subr.mxu0 0.0
    %487 = vmatpush1.msra.mxu0 0.0
    %488 = vmatprep.subr.mxu0 0.0
    %489 = vmatpush1.msra.mxu0 0.0
    %490 = vmatprep.subr.mxu0 0.0
    %491 = vmatpush1.msra.mxu0 0.0
    %492 = vmatprep.subr.mxu0 0.0
    %493 = vmatpush1.msra.mxu0 0.0
    %494 = vmatprep.subr.mxu0 0.0
    %495 = vmatpush1.msra.mxu0 0.0
    %496 = vmatprep.subr.mxu0 0.0
    %497 = vmatpush1.msra.mxu0 0.0
    %498 = vmatprep.subr.mxu0 0.0
    %499 = vmatpush1.msra.mxu0 0.0
    %500 = vmatprep.subr.mxu0 0.0
    %501 = vmatpush1.msra.mxu0 0.0
    %502 = vmatprep.subr.mxu0 0.0
    %503 = vmatpush1.msra.mxu0 0.0
    %504 = vmatprep.subr.mxu0 0.0
    %505 = vmatpush1.msra.mxu0 0.0
    %506 = vmatprep.subr.mxu0 0.0
    %507 = vmatpush1.msra.mxu0 0.0
    %508 = vmatprep.subr.mxu0 0.0
    %509 = vmatpush1.msra.mxu0 0.0
    %510 = vmatprep.subr.mxu0 0.0
    %511 = vmatpush1.msra.mxu0 0.0
    %512 = vmatprep.subr.mxu0 0.0
    %513 = vmatpush1.msra.mxu0 0.0
    %514 = vmatprep.subr.mxu0 0.0
    %515 = vmatpush1.msra.mxu0 0.0
    %516 = vmatprep.subr.mxu0 0.0
    %517 = vmatpush1.msra.mxu0 0.0
    %518 = vmatprep.subr.mxu0 0.0
    %519 = vmatpush1.msra.mxu0 0.0
    %520 = vmatprep.subr.mxu0 0.0
    %521 = vmatpush1.msra.mxu0 0.0
    %522 = vmatprep.mubr.f32.mxu0 0.0
    %523 = vmatmul.mubr.f32.gmra.mrb[0].mxu0 %v456
    %v524 = vpop.f32.mrb[0].mxu0
    %v525 = vadd.f32 0.0, %v524
    %v526 = vpop.f32.mrb[0].mxu0
    %527 = vdwg.mxu0
    %v528 = vadd.f32 %v449, %v525
    %v529 = vxor.u32 %v528, 2147483648
    %v530 = vmul.f32 %v529, 1.442695
    %v531 = vpow.pop %v530
    %v532 = vadd.f32 %v531, 1.0
    %v533 = vrcp.pop %v532
    %v534 = vmul.f32 1.0, %v533
    %v535 = vtanh.pop %v528
    %v536 = vld [vmem:[#allocation5] sm:$0xff]
    %538 = vrot.lane.b32.xlu0 %v536, 32
    %v539 = vpop.permute.xlu0 %538
    %v541 = vmul.f32 %v534, %v539
    %543 = vrot.lane.b32.xlu0 %v535, 32
    %v544 = vpop.permute.xlu0 %543
    %v546 = vmul.f32 %v534, %v544
    %548 = vrot.lane.b32.xlu0 %v546, 32
    %v549 = vpop.permute.xlu0 %548
    %v551 = vadd.f32 %v541, %v549
    %v552 = vtanh.pop %v551
    %554 = vrot.lane.b32.xlu0 %v552, 32
    %v555 = vpop.permute.xlu0 %554
    %v557 = vmul.f32 %v534, %v555
    %559 = vrot.lane.b32.xlu0 %v551, 96
    %v560 = vpop.permute.xlu0 %559
    %562 = vst.msk [vmem:[#allocation5] sm:$0xff] %vm203, %v560
    %564 = vrot.lane.b32.xlu0 %v557, 64
    %v565 = vpop.permute.xlu0 %564
    %567 = vst.msk [vmem:[#allocation4] sm:$0xff] %vm203, %v565
    %s568 = scalar_lea.vmem [#allocation3], 16
    %569 = vst.msk [vmem:[%s568] sm:$0xff] %vm203, %v565
    %s570 = scalar_lea.vmem [#allocation2], 24
    %v571 = vld [vmem:[%s570] sm:$0xff]
    %v572 = vld [vmem:[#allocation4] sm:$0xff]
    %v573 = vld [vmem:[%s2] sm:$0xff]
    %v574 = vld [vmem:[%s2 + $0x8] sm:$0xff]
    %v575 = vld [vmem:[%s2 + $0x10] sm:$0xff]
    %v576 = vld [vmem:[%s2 + $0x18] sm:$0xff]
    %v578 = vsel %vm203, %v572, 0
    %580 = vmatprep.subr.mxu0 0.0
    %581 = vmatpush1.msra.mxu0 %v573
    %582 = vmatprep.subr.mxu0 0.0
    %583 = vmatpush1.msra.mxu0 %v574
    %584 = vmatprep.subr.mxu0 0.0
    %585 = vmatpush1.msra.mxu0 %v575
    %586 = vmatprep.subr.mxu0 0.0
    %587 = vmatpush1.msra.mxu0 %v576
    %588 = vmatprep.subr.mxu0 0.0
    %589 = vmatpush1.msra.mxu0 0.0
    %590 = vmatprep.subr.mxu0 0.0
    %591 = vmatpush1.msra.mxu0 0.0
    %592 = vmatprep.subr.mxu0 0.0
    %593 = vmatpush1.msra.mxu0 0.0
    %594 = vmatprep.subr.mxu0 0.0
    %595 = vmatpush1.msra.mxu0 0.0
    %596 = vmatprep.subr.mxu0 0.0
    %597 = vmatpush1.msra.mxu0 0.0
    %598 = vmatprep.subr.mxu0 0.0
    %599 = vmatpush1.msra.mxu0 0.0
    %600 = vmatprep.subr.mxu0 0.0
    %601 = vmatpush1.msra.mxu0 0.0
    %602 = vmatprep.subr.mxu0 0.0
    %603 = vmatpush1.msra.mxu0 0.0
    %604 = vmatprep.subr.mxu0 0.0
    %605 = vmatpush1.msra.mxu0 0.0
    %606 = vmatprep.subr.mxu0 0.0
    %607 = vmatpush1.msra.mxu0 0.0
    %608 = vmatprep.subr.mxu0 0.0
    %609 = vmatpush1.msra.mxu0 0.0
    %610 = vmatprep.subr.mxu0 0.0
    %611 = vmatpush1.msra.mxu0 0.0
    %612 = vmatprep.subr.mxu0 0.0
    %613 = vmatpush1.msra.mxu0 0.0
    %614 = vmatprep.subr.mxu0 0.0
    %615 = vmatpush1.msra.mxu0 0.0
    %616 = vmatprep.subr.mxu0 0.0
    %617 = vmatpush1.msra.mxu0 0.0
    %618 = vmatprep.subr.mxu0 0.0
    %619 = vmatpush1.msra.mxu0 0.0
    %620 = vmatprep.subr.mxu0 0.0
    %621 = vmatpush1.msra.mxu0 0.0
    %622 = vmatprep.subr.mxu0 0.0
    %623 = vmatpush1.msra.mxu0 0.0
    %624 = vmatprep.subr.mxu0 0.0
    %625 = vmatpush1.msra.mxu0 0.0
    %626 = vmatprep.subr.mxu0 0.0
    %627 = vmatpush1.msra.mxu0 0.0
    %628 = vmatprep.subr.mxu0 0.0
    %629 = vmatpush1.msra.mxu0 0.0
    %630 = vmatprep.subr.mxu0 0.0
    %631 = vmatpush1.msra.mxu0 0.0
    %632 = vmatprep.subr.mxu0 0.0
    %633 = vmatpush1.msra.mxu0 0.0
    %634 = vmatprep.subr.mxu0 0.0
    %635 = vmatpush1.msra.mxu0 0.0
    %636 = vmatprep.subr.mxu0 0.0
    %637 = vmatpush1.msra.mxu0 0.0
    %638 = vmatprep.subr.mxu0 0.0
    %639 = vmatpush1.msra.mxu0 0.0
    %640 = vmatprep.subr.mxu0 0.0
    %641 = vmatpush1.msra.mxu0 0.0
    %642 = vmatprep.subr.mxu0 0.0
    %643 = vmatpush1.msra.mxu0 0.0
    %644 = vmatprep.mubr.f32.mxu0 0.0
    %645 = vmatmul.mubr.f32.gmra.mrb[0].mxu0 %v578
    %v646 = vpop.f32.mrb[0].mxu0
    %v647 = vadd.f32 0.0, %v646
    %v648 = vpop.f32.mrb[0].mxu0
    %649 = vdwg.mxu0
    %v650 = vadd.f32 %v571, %v647
    %v651 = vxor.u32 %v650, 2147483648
    %v652 = vmul.f32 %v651, 1.442695
    %v653 = vpow.pop %v652
    %v654 = vadd.f32 %v653, 1.0
    %v655 = vrcp.pop %v654
    %v656 = vmul.f32 1.0, %v655
    %v657 = vtanh.pop %v650
    %v658 = vld [vmem:[#allocation5] sm:$0xff]
    %660 = vrot.lane.b32.xlu0 %v658, 32
    %v661 = vpop.permute.xlu0 %660
    %v663 = vmul.f32 %v656, %v661
    %665 = vrot.lane.b32.xlu0 %v657, 32
    %v666 = vpop.permute.xlu0 %665
    %v668 = vmul.f32 %v656, %v666
    %670 = vrot.lane.b32.xlu0 %v668, 32
    %v671 = vpop.permute.xlu0 %670
    %v673 = vadd.f32 %v663, %v671
    %v674 = vtanh.pop %v673
    %676 = vrot.lane.b32.xlu0 %v674, 32
    %v677 = vpop.permute.xlu0 %676
    %v679 = vmul.f32 %v656, %v677
    %681 = vrot.lane.b32.xlu0 %v673, 96
    %v682 = vpop.permute.xlu0 %681
    %684 = vst.msk [vmem:[#allocation5] sm:$0xff] %vm203, %v682
    %686 = vrot.lane.b32.xlu0 %v679, 64
    %v687 = vpop.permute.xlu0 %686
    %689 = vst.msk [vmem:[#allocation4] sm:$0xff] %vm203, %v687
    %s690 = scalar_lea.vmem [#allocation3], 24
    %691 = vst.msk [vmem:[%s690] sm:$0xff] %vm203, %v687
    %s692 = scalar_lea.vmem [#allocation2], 32
    %v693 = vld [vmem:[%s692] sm:$0xff]
    %v694 = vld [vmem:[#allocation4] sm:$0xff]
    %v695 = vld [vmem:[%s2] sm:$0xff]
    %v696 = vld [vmem:[%s2 + $0x8] sm:$0xff]
    %v697 = vld [vmem:[%s2 + $0x10] sm:$0xff]
    %v698 = vld [vmem:[%s2 + $0x18] sm:$0xff]
    %v700 = vsel %vm203, %v694, 0
    %702 = vmatprep.subr.mxu0 0.0
    %703 = vmatpush1.msra.mxu0 %v695
    %704 = vmatprep.subr.mxu0 0.0
    %705 = vmatpush1.msra.mxu0 %v696
    %706 = vmatprep.subr.mxu0 0.0
    %707 = vmatpush1.msra.mxu0 %v697
    %708 = vmatprep.subr.mxu0 0.0
    %709 = vmatpush1.msra.mxu0 %v698
    %710 = vmatprep.subr.mxu0 0.0
    %711 = vmatpush1.msra.mxu0 0.0
    %712 = vmatprep.subr.mxu0 0.0
    %713 = vmatpush1.msra.mxu0 0.0
    %714 = vmatprep.subr.mxu0 0.0
    %715 = vmatpush1.msra.mxu0 0.0
    %716 = vmatprep.subr.mxu0 0.0
    %717 = vmatpush1.msra.mxu0 0.0
    %718 = vmatprep.subr.mxu0 0.0
    %719 = vmatpush1.msra.mxu0 0.0
    %720 = vmatprep.subr.mxu0 0.0
    %721 = vmatpush1.msra.mxu0 0.0
    %722 = vmatprep.subr.mxu0 0.0
    %723 = vmatpush1.msra.mxu0 0.0
    %724 = vmatprep.subr.mxu0 0.0
    %725 = vmatpush1.msra.mxu0 0.0
    %726 = vmatprep.subr.mxu0 0.0
    %727 = vmatpush1.msra.mxu0 0.0
    %728 = vmatprep.subr.mxu0 0.0
    %729 = vmatpush1.msra.mxu0 0.0
    %730 = vmatprep.subr.mxu0 0.0
    %731 = vmatpush1.msra.mxu0 0.0
    %732 = vmatprep.subr.mxu0 0.0
    %733 = vmatpush1.msra.mxu0 0.0
    %734 = vmatprep.subr.mxu0 0.0
    %735 = vmatpush1.msra.mxu0 0.0
    %736 = vmatprep.subr.mxu0 0.0
    %737 = vmatpush1.msra.mxu0 0.0
    %738 = vmatprep.subr.mxu0 0.0
    %739 = vmatpush1.msra.mxu0 0.0
    %740 = vmatprep.subr.mxu0 0.0
    %741 = vmatpush1.msra.mxu0 0.0
    %742 = vmatprep.subr.mxu0 0.0
    %743 = vmatpush1.msra.mxu0 0.0
    %744 = vmatprep.subr.mxu0 0.0
    %745 = vmatpush1.msra.mxu0 0.0
    %746 = vmatprep.subr.mxu0 0.0
    %747 = vmatpush1.msra.mxu0 0.0
    %748 = vmatprep.subr.mxu0 0.0
    %749 = vmatpush1.msra.mxu0 0.0
    %750 = vmatprep.subr.mxu0 0.0
    %751 = vmatpush1.msra.mxu0 0.0
    %752 = vmatprep.subr.mxu0 0.0
    %753 = vmatpush1.msra.mxu0 0.0
    %754 = vmatprep.subr.mxu0 0.0
    %755 = vmatpush1.msra.mxu0 0.0
    %756 = vmatprep.subr.mxu0 0.0
    %757 = vmatpush1.msra.mxu0 0.0
    %758 = vmatprep.subr.mxu0 0.0
    %759 = vmatpush1.msra.mxu0 0.0
    %760 = vmatprep.subr.mxu0 0.0
    %761 = vmatpush1.msra.mxu0 0.0
    %762 = vmatprep.subr.mxu0 0.0
    %763 = vmatpush1.msra.mxu0 0.0
    %764 = vmatprep.subr.mxu0 0.0
    %765 = vmatpush1.msra.mxu0 0.0
    %766 = vmatprep.mubr.f32.mxu0 0.0
    %767 = vmatmul.mubr.f32.gmra.mrb[0].mxu0 %v700
    %v768 = vpop.f32.mrb[0].mxu0
    %v769 = vadd.f32 0.0, %v768
    %v770 = vpop.f32.mrb[0].mxu0
    %771 = vdwg.mxu0
    %v772 = vadd.f32 %v693, %v769
    %v773 = vxor.u32 %v772, 2147483648
    %v774 = vmul.f32 %v773, 1.442695
    %v775 = vpow.pop %v774
    %v776 = vadd.f32 %v775, 1.0
    %v777 = vrcp.pop %v776
    %v778 = vmul.f32 1.0, %v777
    %v779 = vtanh.pop %v772
    %v780 = vld [vmem:[#allocation5] sm:$0xff]
    %782 = vrot.lane.b32.xlu0 %v780, 32
    %v783 = vpop.permute.xlu0 %782
    %v785 = vmul.f32 %v778, %v783
    %787 = vrot.lane.b32.xlu0 %v779, 32
    %v788 = vpop.permute.xlu0 %787
    %v790 = vmul.f32 %v778, %v788
    %792 = vrot.lane.b32.xlu0 %v790, 32
    %v793 = vpop.permute.xlu0 %792
    %v795 = vadd.f32 %v785, %v793
    %v796 = vtanh.pop %v795
    %798 = vrot.lane.b32.xlu0 %v796, 32
    %v799 = vpop.permute.xlu0 %798
    %v801 = vmul.f32 %v778, %v799
    %803 = vrot.lane.b32.xlu0 %v795, 96
    %v804 = vpop.permute.xlu0 %803
    %806 = vst.msk [vmem:[#allocation5] sm:$0xff] %vm203, %v804
    %808 = vrot.lane.b32.xlu0 %v801, 64
    %v809 = vpop.permute.xlu0 %808
    %811 = vst.msk [vmem:[#allocation4] sm:$0xff] %vm203, %v809
    %s812 = scalar_lea.vmem [#allocation3], 32
    %813 = vst.msk [vmem:[%s812] sm:$0xff] %vm203, %v809
    %s814 = scalar_lea.vmem [#allocation2], 40
    %v815 = vld [vmem:[%s814] sm:$0xff]
    %v816 = vld [vmem:[#allocation4] sm:$0xff]
    %v817 = vld [vmem:[%s2] sm:$0xff]
    %v818 = vld [vmem:[%s2 + $0x8] sm:$0xff]
    %v819 = vld [vmem:[%s2 + $0x10] sm:$0xff]
    %v820 = vld [vmem:[%s2 + $0x18] sm:$0xff]
    %v822 = vsel %vm203, %v816, 0
    %824 = vmatprep.subr.mxu0 0.0
    %825 = vmatpush1.msra.mxu0 %v817
    %826 = vmatprep.subr.mxu0 0.0
    %827 = vmatpush1.msra.mxu0 %v818
    %828 = vmatprep.subr.mxu0 0.0
    %829 = vmatpush1.msra.mxu0 %v819
    %830 = vmatprep.subr.mxu0 0.0
    %831 = vmatpush1.msra.mxu0 %v820
    %832 = vmatprep.subr.mxu0 0.0
    %833 = vmatpush1.msra.mxu0 0.0
    %834 = vmatprep.subr.mxu0 0.0
    %835 = vmatpush1.msra.mxu0 0.0
    %836 = vmatprep.subr.mxu0 0.0
    %837 = vmatpush1.msra.mxu0 0.0
    %838 = vmatprep.subr.mxu0 0.0
    %839 = vmatpush1.msra.mxu0 0.0
    %840 = vmatprep.subr.mxu0 0.0
    %841 = vmatpush1.msra.mxu0 0.0
    %842 = vmatprep.subr.mxu0 0.0
    %843 = vmatpush1.msra.mxu0 0.0
    %844 = vmatprep.subr.mxu0 0.0
    %845 = vmatpush1.msra.mxu0 0.0
    %846 = vmatprep.subr.mxu0 0.0
    %847 = vmatpush1.msra.mxu0 0.0
    %848 = vmatprep.subr.mxu0 0.0
    %849 = vmatpush1.msra.mxu0 0.0
    %850 = vmatprep.subr.mxu0 0.0
    %851 = vmatpush1.msra.mxu0 0.0
    %852 = vmatprep.subr.mxu0 0.0
    %853 = vmatpush1.msra.mxu0 0.0
    %854 = vmatprep.subr.mxu0 0.0
    %855 = vmatpush1.msra.mxu0 0.0
    %856 = vmatprep.subr.mxu0 0.0
    %857 = vmatpush1.msra.mxu0 0.0
    %858 = vmatprep.subr.mxu0 0.0
    %859 = vmatpush1.msra.mxu0 0.0
    %860 = vmatprep.subr.mxu0 0.0
    %861 = vmatpush1.msra.mxu0 0.0
    %862 = vmatprep.subr.mxu0 0.0
    %863 = vmatpush1.msra.mxu0 0.0
    %864 = vmatprep.subr.mxu0 0.0
    %865 = vmatpush1.msra.mxu0 0.0
    %866 = vmatprep.subr.mxu0 0.0
    %867 = vmatpush1.msra.mxu0 0.0
    %868 = vmatprep.subr.mxu0 0.0
    %869 = vmatpush1.msra.mxu0 0.0
    %870 = vmatprep.subr.mxu0 0.0
    %871 = vmatpush1.msra.mxu0 0.0
    %872 = vmatprep.subr.mxu0 0.0
    %873 = vmatpush1.msra.mxu0 0.0
    %874 = vmatprep.subr.mxu0 0.0
    %875 = vmatpush1.msra.mxu0 0.0
    %876 = vmatprep.subr.mxu0 0.0
    %877 = vmatpush1.msra.mxu0 0.0
    %878 = vmatprep.subr.mxu0 0.0
    %879 = vmatpush1.msra.mxu0 0.0
    %880 = vmatprep.subr.mxu0 0.0
    %881 = vmatpush1.msra.mxu0 0.0
    %882 = vmatprep.subr.mxu0 0.0
    %883 = vmatpush1.msra.mxu0 0.0
    %884 = vmatprep.subr.mxu0 0.0
    %885 = vmatpush1.msra.mxu0 0.0
    %886 = vmatprep.subr.mxu0 0.0
    %887 = vmatpush1.msra.mxu0 0.0
    %888 = vmatprep.mubr.f32.mxu0 0.0
    %889 = vmatmul.mubr.f32.gmra.mrb[0].mxu0 %v822
    %v890 = vpop.f32.mrb[0].mxu0
    %v891 = vadd.f32 0.0, %v890
    %v892 = vpop.f32.mrb[0].mxu0
    %893 = vdwg.mxu0
    %v894 = vadd.f32 %v815, %v891
    %v895 = vxor.u32 %v894, 2147483648
    %v896 = vmul.f32 %v895, 1.442695
    %v897 = vpow.pop %v896
    %v898 = vadd.f32 %v897, 1.0
    %v899 = vrcp.pop %v898
    %v900 = vmul.f32 1.0, %v899
    %v901 = vtanh.pop %v894
    %v902 = vld [vmem:[#allocation5] sm:$0xff]
    %904 = vrot.lane.b32.xlu0 %v902, 32
    %v905 = vpop.permute.xlu0 %904
    %v907 = vmul.f32 %v900, %v905
    %909 = vrot.lane.b32.xlu0 %v901, 32
    %v910 = vpop.permute.xlu0 %909
    %v912 = vmul.f32 %v900, %v910
    %914 = vrot.lane.b32.xlu0 %v912, 32
    %v915 = vpop.permute.xlu0 %914
    %v917 = vadd.f32 %v907, %v915
    %v918 = vtanh.pop %v917
    %920 = vrot.lane.b32.xlu0 %v918, 32
    %v921 = vpop.permute.xlu0 %920
    %v923 = vmul.f32 %v900, %v921
    %925 = vrot.lane.b32.xlu0 %v917, 96
    %v926 = vpop.permute.xlu0 %925
    %928 = vst.msk [vmem:[#allocation5] sm:$0xff] %vm203, %v926
    %930 = vrot.lane.b32.xlu0 %v923, 64
    %v931 = vpop.permute.xlu0 %930
    %933 = vst.msk [vmem:[#allocation4] sm:$0xff] %vm203, %v931
    %s934 = scalar_lea.vmem [#allocation3], 40
    %935 = vst.msk [vmem:[%s934] sm:$0xff] %vm203, %v931
    %s936 = scalar_lea.vmem [#allocation2], 48
    %v937 = vld [vmem:[%s936] sm:$0xff]
    %v938 = vld [vmem:[#allocation4] sm:$0xff]
    %v939 = vld [vmem:[%s2] sm:$0xff]
    %v940 = vld [vmem:[%s2 + $0x8] sm:$0xff]
    %v941 = vld [vmem:[%s2 + $0x10] sm:$0xff]
    %v942 = vld [vmem:[%s2 + $0x18] sm:$0xff]
    %v944 = vsel %vm203, %v938, 0
    %946 = vmatprep.subr.mxu0 0.0
    %947 = vmatpush1.msra.mxu0 %v939
    %948 = vmatprep.subr.mxu0 0.0
    %949 = vmatpush1.msra.mxu0 %v940
    %950 = vmatprep.subr.mxu0 0.0
    %951 = vmatpush1.msra.mxu0 %v941
    %952 = vmatprep.subr.mxu0 0.0
    %953 = vmatpush1.msra.mxu0 %v942
    %954 = vmatprep.subr.mxu0 0.0
    %955 = vmatpush1.msra.mxu0 0.0
    %956 = vmatprep.subr.mxu0 0.0
    %957 = vmatpush1.msra.mxu0 0.0
    %958 = vmatprep.subr.mxu0 0.0
    %959 = vmatpush1.msra.mxu0 0.0
    %960 = vmatprep.subr.mxu0 0.0
    %961 = vmatpush1.msra.mxu0 0.0
    %962 = vmatprep.subr.mxu0 0.0
    %963 = vmatpush1.msra.mxu0 0.0
    %964 = vmatprep.subr.mxu0 0.0
    %965 = vmatpush1.msra.mxu0 0.0
    %966 = vmatprep.subr.mxu0 0.0
    %967 = vmatpush1.msra.mxu0 0.0
    %968 = vmatprep.subr.mxu0 0.0
    %969 = vmatpush1.msra.mxu0 0.0
    %970 = vmatprep.subr.mxu0 0.0
    %971 = vmatpush1.msra.mxu0 0.0
    %972 = vmatprep.subr.mxu0 0.0
    %973 = vmatpush1.msra.mxu0 0.0
    %974 = vmatprep.subr.mxu0 0.0
    %975 = vmatpush1.msra.mxu0 0.0
    %976 = vmatprep.subr.mxu0 0.0
    %977 = vmatpush1.msra.mxu0 0.0
    %978 = vmatprep.subr.mxu0 0.0
    %979 = vmatpush1.msra.mxu0 0.0
    %980 = vmatprep.subr.mxu0 0.0
    %981 = vmatpush1.msra.mxu0 0.0
    %982 = vmatprep.subr.mxu0 0.0
    %983 = vmatpush1.msra.mxu0 0.0
    %984 = vmatprep.subr.mxu0 0.0
    %985 = vmatpush1.msra.mxu0 0.0
    %986 = vmatprep.subr.mxu0 0.0
    %987 = vmatpush1.msra.mxu0 0.0
    %988 = vmatprep.subr.mxu0 0.0
    %989 = vmatpush1.msra.mxu0 0.0
    %990 = vmatprep.subr.mxu0 0.0
    %991 = vmatpush1.msra.mxu0 0.0
    %992 = vmatprep.subr.mxu0 0.0
    %993 = vmatpush1.msra.mxu0 0.0
    %994 = vmatprep.subr.mxu0 0.0
    %995 = vmatpush1.msra.mxu0 0.0
    %996 = vmatprep.subr.mxu0 0.0
    %997 = vmatpush1.msra.mxu0 0.0
    %998 = vmatprep.subr.mxu0 0.0
    %999 = vmatpush1.msra.mxu0 0.0
    %1000 = vmatprep.subr.mxu0 0.0
    %1001 = vmatpush1.msra.mxu0 0.0
    %1002 = vmatprep.subr.mxu0 0.0
    %1003 = vmatpush1.msra.mxu0 0.0
    %1004 = vmatprep.subr.mxu0 0.0
    %1005 = vmatpush1.msra.mxu0 0.0
    %1006 = vmatprep.subr.mxu0 0.0
    %1007 = vmatpush1.msra.mxu0 0.0
    %1008 = vmatprep.subr.mxu0 0.0
    %1009 = vmatpush1.msra.mxu0 0.0
    %1010 = vmatprep.mubr.f32.mxu0 0.0
    %1011 = vmatmul.mubr.f32.gmra.mrb[0].mxu0 %v944
    %v1012 = vpop.f32.mrb[0].mxu0
    %v1013 = vadd.f32 0.0, %v1012
    %v1014 = vpop.f32.mrb[0].mxu0
    %1015 = vdwg.mxu0
    %v1016 = vadd.f32 %v937, %v1013
    %v1017 = vxor.u32 %v1016, 2147483648
    %v1018 = vmul.f32 %v1017, 1.442695
    %v1019 = vpow.pop %v1018
    %v1020 = vadd.f32 %v1019, 1.0
    %v1021 = vrcp.pop %v1020
    %v1022 = vmul.f32 1.0, %v1021
    %v1023 = vtanh.pop %v1016
    %v1024 = vld [vmem:[#allocation5] sm:$0xff]
    %1026 = vrot.lane.b32.xlu0 %v1024, 32
    %v1027 = vpop.permute.xlu0 %1026
    %v1029 = vmul.f32 %v1022, %v1027
    %1031 = vrot.lane.b32.xlu0 %v1023, 32
    %v1032 = vpop.permute.xlu0 %1031
    %v1034 = vmul.f32 %v1022, %v1032
    %1036 = vrot.lane.b32.xlu0 %v1034, 32
    %v1037 = vpop.permute.xlu0 %1036
    %v1039 = vadd.f32 %v1029, %v1037
    %v1040 = vtanh.pop %v1039
    %1042 = vrot.lane.b32.xlu0 %v1040, 32
    %v1043 = vpop.permute.xlu0 %1042
    %v1045 = vmul.f32 %v1022, %v1043
    %1047 = vrot.lane.b32.xlu0 %v1039, 96
    %v1048 = vpop.permute.xlu0 %1047
    %1050 = vst.msk [vmem:[#allocation5] sm:$0xff] %vm203, %v1048
    %1052 = vrot.lane.b32.xlu0 %v1045, 64
    %v1053 = vpop.permute.xlu0 %1052
    %1055 = vst.msk [vmem:[#allocation4] sm:$0xff] %vm203, %v1053
    %s1056 = scalar_lea.vmem [#allocation3], 48
    %1057 = vst.msk [vmem:[%s1056] sm:$0xff] %vm203, %v1053
    %s1058 = scalar_lea.vmem [#allocation2], 56
    %v1059 = vld [vmem:[%s1058] sm:$0xff]
    %v1060 = vld [vmem:[#allocation4] sm:$0xff]
    %v1061 = vld [vmem:[%s2] sm:$0xff]
    %v1062 = vld [vmem:[%s2 + $0x8] sm:$0xff]
    %v1063 = vld [vmem:[%s2 + $0x10] sm:$0xff]
    %v1064 = vld [vmem:[%s2 + $0x18] sm:$0xff]
    %v1066 = vsel %vm203, %v1060, 0
    %1068 = vmatprep.subr.mxu0 0.0
    %1069 = vmatpush1.msra.mxu0 %v1061
    %1070 = vmatprep.subr.mxu0 0.0
    %1071 = vmatpush1.msra.mxu0 %v1062
    %1072 = vmatprep.subr.mxu0 0.0
    %1073 = vmatpush1.msra.mxu0 %v1063
    %1074 = vmatprep.subr.mxu0 0.0
    %1075 = vmatpush1.msra.mxu0 %v1064
    %1076 = vmatprep.subr.mxu0 0.0
    %1077 = vmatpush1.msra.mxu0 0.0
    %1078 = vmatprep.subr.mxu0 0.0
    %1079 = vmatpush1.msra.mxu0 0.0
    %1080 = vmatprep.subr.mxu0 0.0
    %1081 = vmatpush1.msra.mxu0 0.0
    %1082 = vmatprep.subr.mxu0 0.0
    %1083 = vmatpush1.msra.mxu0 0.0
    %1084 = vmatprep.subr.mxu0 0.0
    %1085 = vmatpush1.msra.mxu0 0.0
    %1086 = vmatprep.subr.mxu0 0.0
    %1087 = vmatpush1.msra.mxu0 0.0
    %1088 = vmatprep.subr.mxu0 0.0
    %1089 = vmatpush1.msra.mxu0 0.0
    %1090 = vmatprep.subr.mxu0 0.0
    %1091 = vmatpush1.msra.mxu0 0.0
    %1092 = vmatprep.subr.mxu0 0.0
    %1093 = vmatpush1.msra.mxu0 0.0
    %1094 = vmatprep.subr.mxu0 0.0
    %1095 = vmatpush1.msra.mxu0 0.0
    %1096 = vmatprep.subr.mxu0 0.0
    %1097 = vmatpush1.msra.mxu0 0.0
    %1098 = vmatprep.subr.mxu0 0.0
    %1099 = vmatpush1.msra.mxu0 0.0
    %1100 = vmatprep.subr.mxu0 0.0
    %1101 = vmatpush1.msra.mxu0 0.0
    %1102 = vmatprep.subr.mxu0 0.0
    %1103 = vmatpush1.msra.mxu0 0.0
    %1104 = vmatprep.subr.mxu0 0.0
    %1105 = vmatpush1.msra.mxu0 0.0
    %1106 = vmatprep.subr.mxu0 0.0
    %1107 = vmatpush1.msra.mxu0 0.0
    %1108 = vmatprep.subr.mxu0 0.0
    %1109 = vmatpush1.msra.mxu0 0.0
    %1110 = vmatprep.subr.mxu0 0.0
    %1111 = vmatpush1.msra.mxu0 0.0
    %1112 = vmatprep.subr.mxu0 0.0
    %1113 = vmatpush1.msra.mxu0 0.0
    %1114 = vmatprep.subr.mxu0 0.0
    %1115 = vmatpush1.msra.mxu0 0.0
    %1116 = vmatprep.subr.mxu0 0.0
    %1117 = vmatpush1.msra.mxu0 0.0
    %1118 = vmatprep.subr.mxu0 0.0
    %1119 = vmatpush1.msra.mxu0 0.0
    %1120 = vmatprep.subr.mxu0 0.0
    %1121 = vmatpush1.msra.mxu0 0.0
    %1122 = vmatprep.subr.mxu0 0.0
    %1123 = vmatpush1.msra.mxu0 0.0
    %1124 = vmatprep.subr.mxu0 0.0
    %1125 = vmatpush1.msra.mxu0 0.0
    %1126 = vmatprep.subr.mxu0 0.0
    %1127 = vmatpush1.msra.mxu0 0.0
    %1128 = vmatprep.subr.mxu0 0.0
    %1129 = vmatpush1.msra.mxu0 0.0
    %1130 = vmatprep.subr.mxu0 0.0
    %1131 = vmatpush1.msra.mxu0 0.0
    %1132 = vmatprep.mubr.f32.mxu0 0.0
    %1133 = vmatmul.mubr.f32.gmra.mrb[0].mxu0 %v1066
    %v1134 = vpop.f32.mrb[0].mxu0
    %v1135 = vadd.f32 0.0, %v1134
    %v1136 = vpop.f32.mrb[0].mxu0
    %1137 = vdwg.mxu0
    %v1138 = vadd.f32 %v1059, %v1135
    %v1139 = vxor.u32 %v1138, 2147483648
    %v1140 = vmul.f32 %v1139, 1.442695
    %v1141 = vpow.pop %v1140
    %v1142 = vadd.f32 %v1141, 1.0
    %v1143 = vrcp.pop %v1142
    %v1144 = vmul.f32 1.0, %v1143
    %v1145 = vtanh.pop %v1138
    %v1146 = vld [vmem:[#allocation5] sm:$0xff]
    %1148 = vrot.lane.b32.xlu0 %v1146, 32
    %v1149 = vpop.permute.xlu0 %1148
    %v1151 = vmul.f32 %v1144, %v1149
    %1153 = vrot.lane.b32.xlu0 %v1145, 32
    %v1154 = vpop.permute.xlu0 %1153
    %v1156 = vmul.f32 %v1144, %v1154
    %1158 = vrot.lane.b32.xlu0 %v1156, 32
    %v1159 = vpop.permute.xlu0 %1158
    %v1161 = vadd.f32 %v1151, %v1159
    %v1162 = vtanh.pop %v1161
    %1164 = vrot.lane.b32.xlu0 %v1162, 32
    %v1165 = vpop.permute.xlu0 %1164
    %v1167 = vmul.f32 %v1144, %v1165
    %1169 = vrot.lane.b32.xlu0 %v1161, 96
    %v1170 = vpop.permute.xlu0 %1169
    %1172 = vst.msk [vmem:[#allocation5] sm:$0xff] %vm203, %v1170
    %1174 = vrot.lane.b32.xlu0 %v1167, 64
    %v1175 = vpop.permute.xlu0 %1174
    %1177 = vst.msk [vmem:[#allocation4] sm:$0xff] %vm203, %v1175
    %s1178 = scalar_lea.vmem [#allocation3], 56
    %1179 = vst.msk [vmem:[%s1178] sm:$0xff] %vm203, %v1175
    %v1180 = vld [vmem:[#allocation3] sm:$0xff]
    %v1181 = vld [vmem:[#allocation3 + $0x8] sm:$0xff]
    %v1182 = vld [vmem:[#allocation3 + $0x10] sm:$0xff]
    %v1183 = vld [vmem:[#allocation3 + $0x18] sm:$0xff]
    %v1184 = vld [vmem:[#allocation3 + $0x20] sm:$0xff]
    %v1185 = vld [vmem:[#allocation3 + $0x28] sm:$0xff]
    %v1186 = vld [vmem:[#allocation3 + $0x30] sm:$0xff]
    %v1187 = vld [vmem:[#allocation3 + $0x38] sm:$0xff]
    %v1188 = vld [vmem:[%s4] sm:$0xff]
    %v1189 = vld [vmem:[%s4 + $0x8] sm:$0xff]
    %v1190 = vld [vmem:[%s4 + $0x10] sm:$0xff]
    %v1191 = vld [vmem:[%s4 + $0x18] sm:$0xff]
    %v1192 = vld [vmem:[%s6] sm:$0x1]
    %v1194 = vlaneseq
    %v1195 = vshrl.u32 %v1194, 7
    %v1196 = vsub.s32 0, %v1195
    %v1197 = vrot.slane %v1192, %v1196
    %v1200 = vsel %vm203, %v1180, 0
    %v1203 = vsel %vm203, %v1181, 0
    %v1206 = vsel %vm203, %v1182, 0
    %v1209 = vsel %vm203, %v1183, 0
    %v1212 = vsel %vm203, %v1184, 0
    %v1215 = vsel %vm203, %v1185, 0
    %v1218 = vsel %vm203, %v1186, 0
    %v1221 = vsel %vm203, %v1187, 0
    %1223 = vmatprep.subr.mxu0 0.0
    %1224 = vmatpush1.msra.mxu0 %v1188
    %1225 = vmatprep.subr.mxu0 0.0
    %1226 = vmatpush1.msra.mxu0 %v1189
    %1227 = vmatprep.subr.mxu0 0.0
    %1228 = vmatpush1.msra.mxu0 %v1190
    %1229 = vmatprep.subr.mxu0 0.0
    %1230 = vmatpush1.msra.mxu0 %v1191
    %1231 = vmatprep.subr.mxu0 0.0
    %1232 = vmatpush1.msra.mxu0 0.0
    %1233 = vmatprep.subr.mxu0 0.0
    %1234 = vmatpush1.msra.mxu0 0.0
    %1235 = vmatprep.subr.mxu0 0.0
    %1236 = vmatpush1.msra.mxu0 0.0
    %1237 = vmatprep.subr.mxu0 0.0
    %1238 = vmatpush1.msra.mxu0 0.0
    %1239 = vmatprep.subr.mxu0 0.0
    %1240 = vmatpush1.msra.mxu0 0.0
    %1241 = vmatprep.subr.mxu0 0.0
    %1242 = vmatpush1.msra.mxu0 0.0
    %1243 = vmatprep.subr.mxu0 0.0
    %1244 = vmatpush1.msra.mxu0 0.0
    %1245 = vmatprep.subr.mxu0 0.0
    %1246 = vmatpush1.msra.mxu0 0.0
    %1247 = vmatprep.subr.mxu0 0.0
    %1248 = vmatpush1.msra.mxu0 0.0
    %1249 = vmatprep.subr.mxu0 0.0
    %1250 = vmatpush1.msra.mxu0 0.0
    %1251 = vmatprep.subr.mxu0 0.0
    %1252 = vmatpush1.msra.mxu0 0.0
    %1253 = vmatprep.subr.mxu0 0.0
    %1254 = vmatpush1.msra.mxu0 0.0
    %1255 = vmatprep.subr.mxu0 0.0
    %1256 = vmatpush1.msra.mxu0 0.0
    %1257 = vmatprep.subr.mxu0 0.0
    %1258 = vmatpush1.msra.mxu0 0.0
    %1259 = vmatprep.subr.mxu0 0.0
    %1260 = vmatpush1.msra.mxu0 0.0
    %1261 = vmatprep.subr.mxu0 0.0
    %1262 = vmatpush1.msra.mxu0 0.0
    %1263 = vmatprep.subr.mxu0 0.0
    %1264 = vmatpush1.msra.mxu0 0.0
    %1265 = vmatprep.subr.mxu0 0.0
    %1266 = vmatpush1.msra.mxu0 0.0
    %1267 = vmatprep.subr.mxu0 0.0
    %1268 = vmatpush1.msra.mxu0 0.0
    %1269 = vmatprep.subr.mxu0 0.0
    %1270 = vmatpush1.msra.mxu0 0.0
    %1271 = vmatprep.subr.mxu0 0.0
    %1272 = vmatpush1.msra.mxu0 0.0
    %1273 = vmatprep.subr.mxu0 0.0
    %1274 = vmatpush1.msra.mxu0 0.0
    %1275 = vmatprep.subr.mxu0 0.0
    %1276 = vmatpush1.msra.mxu0 0.0
    %1277 = vmatprep.subr.mxu0 0.0
    %1278 = vmatpush1.msra.mxu0 0.0
    %1279 = vmatprep.subr.mxu0 0.0
    %1280 = vmatpush1.msra.mxu0 0.0
    %1281 = vmatprep.subr.mxu0 0.0
    %1282 = vmatpush1.msra.mxu0 0.0
    %1283 = vmatprep.subr.mxu0 0.0
    %1284 = vmatpush1.msra.mxu0 0.0
    %1285 = vmatprep.subr.mxu0 0.0
    %1286 = vmatpush1.msra.mxu0 0.0
    %1287 = vmatprep.mubr.f32.mxu0 0.0
    %1288 = vmatmul.mubr.f32.gmra.mrb[0].mxu0 %v1200
    %v1289 = vpop.f32.mrb[0].mxu0
    %v1290 = vadd.f32 %v1197, %v1289
    %v1291 = vpop.f32.mrb[0].mxu0
    %1292 = vmatprep.mubr.f32.mxu0 0.0
    %1293 = vmatmul.mubr.f32.gmra.mrb[0].mxu0 %v1203
    %v1294 = vpop.f32.mrb[0].mxu0
    %v1295 = vadd.f32 %v1197, %v1294
    %v1296 = vpop.f32.mrb[0].mxu0
    %1297 = vmatprep.mubr.f32.mxu0 0.0
    %1298 = vmatmul.mubr.f32.gmra.mrb[0].mxu0 %v1206
    %v1299 = vpop.f32.mrb[0].mxu0
    %v1300 = vadd.f32 %v1197, %v1299
    %v1301 = vpop.f32.mrb[0].mxu0
    %1302 = vmatprep.mubr.f32.mxu0 0.0
    %1303 = vmatmul.mubr.f32.gmra.mrb[0].mxu0 %v1209
    %v1304 = vpop.f32.mrb[0].mxu0
    %v1305 = vadd.f32 %v1197, %v1304
    %v1306 = vpop.f32.mrb[0].mxu0
    %1307 = vmatprep.mubr.f32.mxu0 0.0
    %1308 = vmatmul.mubr.f32.gmra.mrb[0].mxu0 %v1212
    %v1309 = vpop.f32.mrb[0].mxu0
    %v1310 = vadd.f32 %v1197, %v1309
    %v1311 = vpop.f32.mrb[0].mxu0
    %1312 = vmatprep.mubr.f32.mxu0 0.0
    %1313 = vmatmul.mubr.f32.gmra.mrb[0].mxu0 %v1215
    %v1314 = vpop.f32.mrb[0].mxu0
    %v1315 = vadd.f32 %v1197, %v1314
    %v1316 = vpop.f32.mrb[0].mxu0
    %1317 = vmatprep.mubr.f32.mxu0 0.0
    %1318 = vmatmul.mubr.f32.gmra.mrb[0].mxu0 %v1218
    %v1319 = vpop.f32.mrb[0].mxu0
    %v1320 = vadd.f32 %v1197, %v1319
    %v1321 = vpop.f32.mrb[0].mxu0
    %1322 = vmatprep.mubr.f32.mxu0 0.0
    %1323 = vmatmul.mubr.f32.gmra.mrb[0].mxu0 %v1221
    %v1324 = vpop.f32.mrb[0].mxu0
    %v1325 = vadd.f32 %v1197, %v1324
    %v1326 = vpop.f32.mrb[0].mxu0
    %1327 = vdwg.mxu0
    %1328 = vst [vmem:[#allocation2] sm:$0xff] %v1290
    %1329 = vst [vmem:[#allocation2 + $0x8] sm:$0xff] %v1295
    %1330 = vst [vmem:[#allocation2 + $0x10] sm:$0xff] %v1300
    %1331 = vst [vmem:[#allocation2 + $0x18] sm:$0xff] %v1305
    %1332 = vst [vmem:[#allocation2 + $0x20] sm:$0xff] %v1310
    %1333 = vst [vmem:[#allocation2 + $0x28] sm:$0xff] %v1315
    %1334 = vst [vmem:[#allocation2 + $0x30] sm:$0xff] %v1320
    %1335 = vst [vmem:[#allocation2 + $0x38] sm:$0xff] %v1325
    %1336 = vst.msk [vmem:[#allocation4] sm:$0xff] %vm203, 0.0
    %1337 = vst.msk [vmem:[#allocation5] sm:$0xff] %vm203, 0.0
    %v1338 = vld [vmem:[#allocation2] sm:$0xff]
    %v1339 = vld [vmem:[#allocation4] sm:$0xff]
    %v1340 = vld [vmem:[%s5] sm:$0xff]
    %v1341 = vld [vmem:[%s5 + $0x8] sm:$0xff]
    %v1342 = vld [vmem:[%s5 + $0x10] sm:$0xff]
    %v1343 = vld [vmem:[%s5 + $0x18] sm:$0xff]
    %v1345 = vsel %vm203, %v1339, 0
    %1347 = vmatprep.subr.mxu0 0.0
    %1348 = vmatpush1.msra.mxu0 %v1340
    %1349 = vmatprep.subr.mxu0 0.0
    %1350 = vmatpush1.msra.mxu0 %v1341
    %1351 = vmatprep.subr.mxu0 0.0
    %1352 = vmatpush1.msra.mxu0 %v1342
    %1353 = vmatprep.subr.mxu0 0.0
    %1354 = vmatpush1.msra.mxu0 %v1343
    %1355 = vmatprep.subr.mxu0 0.0
    %1356 = vmatpush1.msra.mxu0 0.0
    %1357 = vmatprep.subr.mxu0 0.0
    %1358 = vmatpush1.msra.mxu0 0.0
    %1359 = vmatprep.subr.mxu0 0.0
    %1360 = vmatpush1.msra.mxu0 0.0
    %1361 = vmatprep.subr.mxu0 0.0
    %1362 = vmatpush1.msra.mxu0 0.0
    %1363 = vmatprep.subr.mxu0 0.0
    %1364 = vmatpush1.msra.mxu0 0.0
    %1365 = vmatprep.subr.mxu0 0.0
    %1366 = vmatpush1.msra.mxu0 0.0
    %1367 = vmatprep.subr.mxu0 0.0
    %1368 = vmatpush1.msra.mxu0 0.0
    %1369 = vmatprep.subr.mxu0 0.0
    %1370 = vmatpush1.msra.mxu0 0.0
    %1371 = vmatprep.subr.mxu0 0.0
    %1372 = vmatpush1.msra.mxu0 0.0
    %1373 = vmatprep.subr.mxu0 0.0
    %1374 = vmatpush1.msra.mxu0 0.0
    %1375 = vmatprep.subr.mxu0 0.0
    %1376 = vmatpush1.msra.mxu0 0.0
    %1377 = vmatprep.subr.mxu0 0.0
    %1378 = vmatpush1.msra.mxu0 0.0
    %1379 = vmatprep.subr.mxu0 0.0
    %1380 = vmatpush1.msra.mxu0 0.0
    %1381 = vmatprep.subr.mxu0 0.0
    %1382 = vmatpush1.msra.mxu0 0.0
    %1383 = vmatprep.subr.mxu0 0.0
    %1384 = vmatpush1.msra.mxu0 0.0
    %1385 = vmatprep.subr.mxu0 0.0
    %1386 = vmatpush1.msra.mxu0 0.0
    %1387 = vmatprep.subr.mxu0 0.0
    %1388 = vmatpush1.msra.mxu0 0.0
    %1389 = vmatprep.subr.mxu0 0.0
    %1390 = vmatpush1.msra.mxu0 0.0
    %1391 = vmatprep.subr.mxu0 0.0
    %1392 = vmatpush1.msra.mxu0 0.0
    %1393 = vmatprep.subr.mxu0 0.0
    %1394 = vmatpush1.msra.mxu0 0.0
    %1395 = vmatprep.subr.mxu0 0.0
    %1396 = vmatpush1.msra.mxu0 0.0
    %1397 = vmatprep.subr.mxu0 0.0
    %1398 = vmatpush1.msra.mxu0 0.0
    %1399 = vmatprep.subr.mxu0 0.0
    %1400 = vmatpush1.msra.mxu0 0.0
    %1401 = vmatprep.subr.mxu0 0.0
    %1402 = vmatpush1.msra.mxu0 0.0
    %1403 = vmatprep.subr.mxu0 0.0
    %1404 = vmatpush1.msra.mxu0 0.0
    %1405 = vmatprep.subr.mxu0 0.0
    %1406 = vmatpush1.msra.mxu0 0.0
    %1407 = vmatprep.subr.mxu0 0.0
    %1408 = vmatpush1.msra.mxu0 0.0
    %1409 = vmatprep.subr.mxu0 0.0
    %1410 = vmatpush1.msra.mxu0 0.0
    %1411 = vmatprep.mubr.f32.mxu0 0.0
    %1412 = vmatmul.mubr.f32.gmra.mrb[0].mxu0 %v1345
    %v1413 = vpop.f32.mrb[0].mxu0
    %v1414 = vadd.f32 0.0, %v1413
    %v1415 = vpop.f32.mrb[0].mxu0
    %1416 = vdwg.mxu0
    %v1417 = vadd.f32 %v1338, %v1414
    %v1418 = vxor.u32 %v1417, 2147483648
    %v1419 = vmul.f32 %v1418, 1.442695
    %v1420 = vpow.pop %v1419
    %v1421 = vadd.f32 %v1420, 1.0
    %v1422 = vrcp.pop %v1421
    %v1423 = vmul.f32 1.0, %v1422
    %v1424 = vtanh.pop %v1417
    %v1425 = vld [vmem:[#allocation5] sm:$0xff]
    %1427 = vrot.lane.b32.xlu0 %v1425, 32
    %v1428 = vpop.permute.xlu0 %1427
    %v1430 = vmul.f32 %v1423, %v1428
    %1432 = vrot.lane.b32.xlu0 %v1424, 32
    %v1433 = vpop.permute.xlu0 %1432
    %v1435 = vmul.f32 %v1423, %v1433
    %1437 = vrot.lane.b32.xlu0 %v1435, 32
    %v1438 = vpop.permute.xlu0 %1437
    %v1440 = vadd.f32 %v1430, %v1438
    %v1441 = vtanh.pop %v1440
    %1443 = vrot.lane.b32.xlu0 %v1441, 32
    %v1444 = vpop.permute.xlu0 %1443
    %v1446 = vmul.f32 %v1423, %v1444
    %1448 = vrot.lane.b32.xlu0 %v1440, 96
    %v1449 = vpop.permute.xlu0 %1448
    %1451 = vst.msk [vmem:[#allocation5] sm:$0xff] %vm203, %v1449
    %1453 = vrot.lane.b32.xlu0 %v1446, 64
    %v1454 = vpop.permute.xlu0 %1453
    %1456 = vst.msk [vmem:[#allocation4] sm:$0xff] %vm203, %v1454
    %v1457 = vld [vmem:[%s326] sm:$0xff]
    %v1458 = vld [vmem:[#allocation4] sm:$0xff]
    %v1459 = vld [vmem:[%s5] sm:$0xff]
    %v1460 = vld [vmem:[%s5 + $0x8] sm:$0xff]
    %v1461 = vld [vmem:[%s5 + $0x10] sm:$0xff]
    %v1462 = vld [vmem:[%s5 + $0x18] sm:$0xff]
    %v1464 = vsel %vm203, %v1458, 0
    %1466 = vmatprep.subr.mxu0 0.0
    %1467 = vmatpush1.msra.mxu0 %v1459
    %1468 = vmatprep.subr.mxu0 0.0
    %1469 = vmatpush1.msra.mxu0 %v1460
    %1470 = vmatprep.subr.mxu0 0.0
    %1471 = vmatpush1.msra.mxu0 %v1461
    %1472 = vmatprep.subr.mxu0 0.0
    %1473 = vmatpush1.msra.mxu0 %v1462
    %1474 = vmatprep.subr.mxu0 0.0
    %1475 = vmatpush1.msra.mxu0 0.0
    %1476 = vmatprep.subr.mxu0 0.0
    %1477 = vmatpush1.msra.mxu0 0.0
    %1478 = vmatprep.subr.mxu0 0.0
    %1479 = vmatpush1.msra.mxu0 0.0
    %1480 = vmatprep.subr.mxu0 0.0
    %1481 = vmatpush1.msra.mxu0 0.0
    %1482 = vmatprep.subr.mxu0 0.0
    %1483 = vmatpush1.msra.mxu0 0.0
    %1484 = vmatprep.subr.mxu0 0.0
    %1485 = vmatpush1.msra.mxu0 0.0
    %1486 = vmatprep.subr.mxu0 0.0
    %1487 = vmatpush1.msra.mxu0 0.0
    %1488 = vmatprep.subr.mxu0 0.0
    %1489 = vmatpush1.msra.mxu0 0.0
    %1490 = vmatprep.subr.mxu0 0.0
    %1491 = vmatpush1.msra.mxu0 0.0
    %1492 = vmatprep.subr.mxu0 0.0
    %1493 = vmatpush1.msra.mxu0 0.0
    %1494 = vmatprep.subr.mxu0 0.0
    %1495 = vmatpush1.msra.mxu0 0.0
    %1496 = vmatprep.subr.mxu0 0.0
    %1497 = vmatpush1.msra.mxu0 0.0
    %1498 = vmatprep.subr.mxu0 0.0
    %1499 = vmatpush1.msra.mxu0 0.0
    %1500 = vmatprep.subr.mxu0 0.0
    %1501 = vmatpush1.msra.mxu0 0.0
    %1502 = vmatprep.subr.mxu0 0.0
    %1503 = vmatpush1.msra.mxu0 0.0
    %1504 = vmatprep.subr.mxu0 0.0
    %1505 = vmatpush1.msra.mxu0 0.0
    %1506 = vmatprep.subr.mxu0 0.0
    %1507 = vmatpush1.msra.mxu0 0.0
    %1508 = vmatprep.subr.mxu0 0.0
    %1509 = vmatpush1.msra.mxu0 0.0
    %1510 = vmatprep.subr.mxu0 0.0
    %1511 = vmatpush1.msra.mxu0 0.0
    %1512 = vmatprep.subr.mxu0 0.0
    %1513 = vmatpush1.msra.mxu0 0.0
    %1514 = vmatprep.subr.mxu0 0.0
    %1515 = vmatpush1.msra.mxu0 0.0
    %1516 = vmatprep.subr.mxu0 0.0
    %1517 = vmatpush1.msra.mxu0 0.0
    %1518 = vmatprep.subr.mxu0 0.0
    %1519 = vmatpush1.msra.mxu0 0.0
    %1520 = vmatprep.subr.mxu0 0.0
    %1521 = vmatpush1.msra.mxu0 0.0
    %1522 = vmatprep.subr.mxu0 0.0
    %1523 = vmatpush1.msra.mxu0 0.0
    %1524 = vmatprep.subr.mxu0 0.0
    %1525 = vmatpush1.msra.mxu0 0.0
    %1526 = vmatprep.subr.mxu0 0.0
    %1527 = vmatpush1.msra.mxu0 0.0
    %1528 = vmatprep.subr.mxu0 0.0
    %1529 = vmatpush1.msra.mxu0 0.0
    %1530 = vmatprep.mubr.f32.mxu0 0.0
    %1531 = vmatmul.mubr.f32.gmra.mrb[0].mxu0 %v1464
    %v1532 = vpop.f32.mrb[0].mxu0
    %v1533 = vadd.f32 0.0, %v1532
    %v1534 = vpop.f32.mrb[0].mxu0
    %1535 = vdwg.mxu0
    %v1536 = vadd.f32 %v1457, %v1533
    %v1537 = vxor.u32 %v1536, 2147483648
    %v1538 = vmul.f32 %v1537, 1.442695
    %v1539 = vpow.pop %v1538
    %v1540 = vadd.f32 %v1539, 1.0
    %v1541 = vrcp.pop %v1540
    %v1542 = vmul.f32 1.0, %v1541
    %v1543 = vtanh.pop %v1536
    %v1544 = vld [vmem:[#allocation5] sm:$0xff]
    %1546 = vrot.lane.b32.xlu0 %v1544, 32
    %v1547 = vpop.permute.xlu0 %1546
    %v1549 = vmul.f32 %v1542, %v1547
    %1551 = vrot.lane.b32.xlu0 %v1543, 32
    %v1552 = vpop.permute.xlu0 %1551
    %v1554 = vmul.f32 %v1542, %v1552
    %1556 = vrot.lane.b32.xlu0 %v1554, 32
    %v1557 = vpop.permute.xlu0 %1556
    %v1559 = vadd.f32 %v1549, %v1557
    %v1560 = vtanh.pop %v1559
    %1562 = vrot.lane.b32.xlu0 %v1560, 32
    %v1563 = vpop.permute.xlu0 %1562
    %v1565 = vmul.f32 %v1542, %v1563
    %1567 = vrot.lane.b32.xlu0 %v1559, 96
    %v1568 = vpop.permute.xlu0 %1567
    %1570 = vst.msk [vmem:[#allocation5] sm:$0xff] %vm203, %v1568
    %1572 = vrot.lane.b32.xlu0 %v1565, 64
    %v1573 = vpop.permute.xlu0 %1572
    %1575 = vst.msk [vmem:[#allocation4] sm:$0xff] %vm203, %v1573
    %v1576 = vld [vmem:[%s448] sm:$0xff]
    %v1577 = vld [vmem:[#allocation4] sm:$0xff]
    %v1578 = vld [vmem:[%s5] sm:$0xff]
    %v1579 = vld [vmem:[%s5 + $0x8] sm:$0xff]
    %v1580 = vld [vmem:[%s5 + $0x10] sm:$0xff]
    %v1581 = vld [vmem:[%s5 + $0x18] sm:$0xff]
    %v1583 = vsel %vm203, %v1577, 0
    %1585 = vmatprep.subr.mxu0 0.0
    %1586 = vmatpush1.msra.mxu0 %v1578
    %1587 = vmatprep.subr.mxu0 0.0
    %1588 = vmatpush1.msra.mxu0 %v1579
    %1589 = vmatprep.subr.mxu0 0.0
    %1590 = vmatpush1.msra.mxu0 %v1580
    %1591 = vmatprep.subr.mxu0 0.0
    %1592 = vmatpush1.msra.mxu0 %v1581
    %1593 = vmatprep.subr.mxu0 0.0
    %1594 = vmatpush1.msra.mxu0 0.0
    %1595 = vmatprep.subr.mxu0 0.0
    %1596 = vmatpush1.msra.mxu0 0.0
    %1597 = vmatprep.subr.mxu0 0.0
    %1598 = vmatpush1.msra.mxu0 0.0
    %1599 = vmatprep.subr.mxu0 0.0
    %1600 = vmatpush1.msra.mxu0 0.0
    %1601 = vmatprep.subr.mxu0 0.0
    %1602 = vmatpush1.msra.mxu0 0.0
    %1603 = vmatprep.subr.mxu0 0.0
    %1604 = vmatpush1.msra.mxu0 0.0
    %1605 = vmatprep.subr.mxu0 0.0
    %1606 = vmatpush1.msra.mxu0 0.0
    %1607 = vmatprep.subr.mxu0 0.0
    %1608 = vmatpush1.msra.mxu0 0.0
    %1609 = vmatprep.subr.mxu0 0.0
    %1610 = vmatpush1.msra.mxu0 0.0
    %1611 = vmatprep.subr.mxu0 0.0
    %1612 = vmatpush1.msra.mxu0 0.0
    %1613 = vmatprep.subr.mxu0 0.0
    %1614 = vmatpush1.msra.mxu0 0.0
    %1615 = vmatprep.subr.mxu0 0.0
    %1616 = vmatpush1.msra.mxu0 0.0
    %1617 = vmatprep.subr.mxu0 0.0
    %1618 = vmatpush1.msra.mxu0 0.0
    %1619 = vmatprep.subr.mxu0 0.0
    %1620 = vmatpush1.msra.mxu0 0.0
    %1621 = vmatprep.subr.mxu0 0.0
    %1622 = vmatpush1.msra.mxu0 0.0
    %1623 = vmatprep.subr.mxu0 0.0
    %1624 = vmatpush1.msra.mxu0 0.0
    %1625 = vmatprep.subr.mxu0 0.0
    %1626 = vmatpush1.msra.mxu0 0.0
    %1627 = vmatprep.subr.mxu0 0.0
    %1628 = vmatpush1.msra.mxu0 0.0
    %1629 = vmatprep.subr.mxu0 0.0
    %1630 = vmatpush1.msra.mxu0 0.0
    %1631 = vmatprep.subr.mxu0 0.0
    %1632 = vmatpush1.msra.mxu0 0.0
    %1633 = vmatprep.subr.mxu0 0.0
    %1634 = vmatpush1.msra.mxu0 0.0
    %1635 = vmatprep.subr.mxu0 0.0
    %1636 = vmatpush1.msra.mxu0 0.0
    %1637 = vmatprep.subr.mxu0 0.0
    %1638 = vmatpush1.msra.mxu0 0.0
    %1639 = vmatprep.subr.mxu0 0.0
    %1640 = vmatpush1.msra.mxu0 0.0
    %1641 = vmatprep.subr.mxu0 0.0
    %1642 = vmatpush1.msra.mxu0 0.0
    %1643 = vmatprep.subr.mxu0 0.0
    %1644 = vmatpush1.msra.mxu0 0.0
    %1645 = vmatprep.subr.mxu0 0.0
    %1646 = vmatpush1.msra.mxu0 0.0
    %1647 = vmatprep.subr.mxu0 0.0
    %1648 = vmatpush1.msra.mxu0 0.0
    %1649 = vmatprep.mubr.f32.mxu0 0.0
    %1650 = vmatmul.mubr.f32.gmra.mrb[0].mxu0 %v1583
    %v1651 = vpop.f32.mrb[0].mxu0
    %v1652 = vadd.f32 0.0, %v1651
    %v1653 = vpop.f32.mrb[0].mxu0
    %1654 = vdwg.mxu0
    %v1655 = vadd.f32 %v1576, %v1652
    %v1656 = vxor.u32 %v1655, 2147483648
    %v1657 = vmul.f32 %v1656, 1.442695
    %v1658 = vpow.pop %v1657
    %v1659 = vadd.f32 %v1658, 1.0
    %v1660 = vrcp.pop %v1659
    %v1661 = vmul.f32 1.0, %v1660
    %v1662 = vtanh.pop %v1655
    %v1663 = vld [vmem:[#allocation5] sm:$0xff]
    %1665 = vrot.lane.b32.xlu0 %v1663, 32
    %v1666 = vpop.permute.xlu0 %1665
    %v1668 = vmul.f32 %v1661, %v1666
    %1670 = vrot.lane.b32.xlu0 %v1662, 32
    %v1671 = vpop.permute.xlu0 %1670
    %v1673 = vmul.f32 %v1661, %v1671
    %1675 = vrot.lane.b32.xlu0 %v1673, 32
    %v1676 = vpop.permute.xlu0 %1675
    %v1678 = vadd.f32 %v1668, %v1676
    %v1679 = vtanh.pop %v1678
    %1681 = vrot.lane.b32.xlu0 %v1679, 32
    %v1682 = vpop.permute.xlu0 %1681
    %v1684 = vmul.f32 %v1661, %v1682
    %1686 = vrot.lane.b32.xlu0 %v1678, 96
    %v1687 = vpop.permute.xlu0 %1686
    %1689 = vst.msk [vmem:[#allocation5] sm:$0xff] %vm203, %v1687
    %1691 = vrot.lane.b32.xlu0 %v1684, 64
    %v1692 = vpop.permute.xlu0 %1691
    %1694 = vst.msk [vmem:[#allocation4] sm:$0xff] %vm203, %v1692
    %v1695 = vld [vmem:[%s570] sm:$0xff]
    %v1696 = vld [vmem:[#allocation4] sm:$0xff]
    %v1697 = vld [vmem:[%s5] sm:$0xff]
    %v1698 = vld [vmem:[%s5 + $0x8] sm:$0xff]
    %v1699 = vld [vmem:[%s5 + $0x10] sm:$0xff]
    %v1700 = vld [vmem:[%s5 + $0x18] sm:$0xff]
    %v1702 = vsel %vm203, %v1696, 0
    %1704 = vmatprep.subr.mxu0 0.0
    %1705 = vmatpush1.msra.mxu0 %v1697
    %1706 = vmatprep.subr.mxu0 0.0
    %1707 = vmatpush1.msra.mxu0 %v1698
    %1708 = vmatprep.subr.mxu0 0.0
    %1709 = vmatpush1.msra.mxu0 %v1699
    %1710 = vmatprep.subr.mxu0 0.0
    %1711 = vmatpush1.msra.mxu0 %v1700
    %1712 = vmatprep.subr.mxu0 0.0
    %1713 = vmatpush1.msra.mxu0 0.0
    %1714 = vmatprep.subr.mxu0 0.0
    %1715 = vmatpush1.msra.mxu0 0.0
    %1716 = vmatprep.subr.mxu0 0.0
    %1717 = vmatpush1.msra.mxu0 0.0
    %1718 = vmatprep.subr.mxu0 0.0
    %1719 = vmatpush1.msra.mxu0 0.0
    %1720 = vmatprep.subr.mxu0 0.0
    %1721 = vmatpush1.msra.mxu0 0.0
    %1722 = vmatprep.subr.mxu0 0.0
    %1723 = vmatpush1.msra.mxu0 0.0
    %1724 = vmatprep.subr.mxu0 0.0
    %1725 = vmatpush1.msra.mxu0 0.0
    %1726 = vmatprep.subr.mxu0 0.0
    %1727 = vmatpush1.msra.mxu0 0.0
    %1728 = vmatprep.subr.mxu0 0.0
    %1729 = vmatpush1.msra.mxu0 0.0
    %1730 = vmatprep.subr.mxu0 0.0
    %1731 = vmatpush1.msra.mxu0 0.0
    %1732 = vmatprep.subr.mxu0 0.0
    %1733 = vmatpush1.msra.mxu0 0.0
    %1734 = vmatprep.subr.mxu0 0.0
    %1735 = vmatpush1.msra.mxu0 0.0
    %1736 = vmatprep.subr.mxu0 0.0
    %1737 = vmatpush1.msra.mxu0 0.0
    %1738 = vmatprep.subr.mxu0 0.0
    %1739 = vmatpush1.msra.mxu0 0.0
    %1740 = vmatprep.subr.mxu0 0.0
    %1741 = vmatpush1.msra.mxu0 0.0
    %1742 = vmatprep.subr.mxu0 0.0
    %1743 = vmatpush1.msra.mxu0 0.0
    %1744 = vmatprep.subr.mxu0 0.0
    %1745 = vmatpush1.msra.mxu0 0.0
    %1746 = vmatprep.subr.mxu0 0.0
    %1747 = vmatpush1.msra.mxu0 0.0
    %1748 = vmatprep.subr.mxu0 0.0
    %1749 = vmatpush1.msra.mxu0 0.0
    %1750 = vmatprep.subr.mxu0 0.0
    %1751 = vmatpush1.msra.mxu0 0.0
    %1752 = vmatprep.subr.mxu0 0.0
    %1753 = vmatpush1.msra.mxu0 0.0
    %1754 = vmatprep.subr.mxu0 0.0
    %1755 = vmatpush1.msra.mxu0 0.0
    %1756 = vmatprep.subr.mxu0 0.0
    %1757 = vmatpush1.msra.mxu0 0.0
    %1758 = vmatprep.subr.mxu0 0.0
    %1759 = vmatpush1.msra.mxu0 0.0
    %1760 = vmatprep.subr.mxu0 0.0
    %1761 = vmatpush1.msra.mxu0 0.0
    %1762 = vmatprep.subr.mxu0 0.0
    %1763 = vmatpush1.msra.mxu0 0.0
    %1764 = vmatprep.subr.mxu0 0.0
    %1765 = vmatpush1.msra.mxu0 0.0
    %1766 = vmatprep.subr.mxu0 0.0
    %1767 = vmatpush1.msra.mxu0 0.0
    %1768 = vmatprep.mubr.f32.mxu0 0.0
    %1769 = vmatmul.mubr.f32.gmra.mrb[0].mxu0 %v1702
    %v1770 = vpop.f32.mrb[0].mxu0
    %v1771 = vadd.f32 0.0, %v1770
    %v1772 = vpop.f32.mrb[0].mxu0
    %1773 = vdwg.mxu0
    %v1774 = vadd.f32 %v1695, %v1771
    %v1775 = vxor.u32 %v1774, 2147483648
    %v1776 = vmul.f32 %v1775, 1.442695
    %v1777 = vpow.pop %v1776
    %v1778 = vadd.f32 %v1777, 1.0
    %v1779 = vrcp.pop %v1778
    %v1780 = vmul.f32 1.0, %v1779
    %v1781 = vtanh.pop %v1774
    %v1782 = vld [vmem:[#allocation5] sm:$0xff]
    %1784 = vrot.lane.b32.xlu0 %v1782, 32
    %v1785 = vpop.permute.xlu0 %1784
    %v1787 = vmul.f32 %v1780, %v1785
    %1789 = vrot.lane.b32.xlu0 %v1781, 32
    %v1790 = vpop.permute.xlu0 %1789
    %v1792 = vmul.f32 %v1780, %v1790
    %1794 = vrot.lane.b32.xlu0 %v1792, 32
    %v1795 = vpop.permute.xlu0 %1794
    %v1797 = vadd.f32 %v1787, %v1795
    %v1798 = vtanh.pop %v1797
    %1800 = vrot.lane.b32.xlu0 %v1798, 32
    %v1801 = vpop.permute.xlu0 %1800
    %v1803 = vmul.f32 %v1780, %v1801
    %1805 = vrot.lane.b32.xlu0 %v1797, 96
    %v1806 = vpop.permute.xlu0 %1805
    %1808 = vst.msk [vmem:[#allocation5] sm:$0xff] %vm203, %v1806
    %1810 = vrot.lane.b32.xlu0 %v1803, 64
    %v1811 = vpop.permute.xlu0 %1810
    %1813 = vst.msk [vmem:[#allocation4] sm:$0xff] %vm203, %v1811
    %v1814 = vld [vmem:[%s692] sm:$0xff]
    %v1815 = vld [vmem:[#allocation4] sm:$0xff]
    %v1816 = vld [vmem:[%s5] sm:$0xff]
    %v1817 = vld [vmem:[%s5 + $0x8] sm:$0xff]
    %v1818 = vld [vmem:[%s5 + $0x10] sm:$0xff]
    %v1819 = vld [vmem:[%s5 + $0x18] sm:$0xff]
    %v1821 = vsel %vm203, %v1815, 0
    %1823 = vmatprep.subr.mxu0 0.0
    %1824 = vmatpush1.msra.mxu0 %v1816
    %1825 = vmatprep.subr.mxu0 0.0
    %1826 = vmatpush1.msra.mxu0 %v1817
    %1827 = vmatprep.subr.mxu0 0.0
    %1828 = vmatpush1.msra.mxu0 %v1818
    %1829 = vmatprep.subr.mxu0 0.0
    %1830 = vmatpush1.msra.mxu0 %v1819
    %1831 = vmatprep.subr.mxu0 0.0
    %1832 = vmatpush1.msra.mxu0 0.0
    %1833 = vmatprep.subr.mxu0 0.0
    %1834 = vmatpush1.msra.mxu0 0.0
    %1835 = vmatprep.subr.mxu0 0.0
    %1836 = vmatpush1.msra.mxu0 0.0
    %1837 = vmatprep.subr.mxu0 0.0
    %1838 = vmatpush1.msra.mxu0 0.0
    %1839 = vmatprep.subr.mxu0 0.0
    %1840 = vmatpush1.msra.mxu0 0.0
    %1841 = vmatprep.subr.mxu0 0.0
    %1842 = vmatpush1.msra.mxu0 0.0
    %1843 = vmatprep.subr.mxu0 0.0
    %1844 = vmatpush1.msra.mxu0 0.0
    %1845 = vmatprep.subr.mxu0 0.0
    %1846 = vmatpush1.msra.mxu0 0.0
    %1847 = vmatprep.subr.mxu0 0.0
    %1848 = vmatpush1.msra.mxu0 0.0
    %1849 = vmatprep.subr.mxu0 0.0
    %1850 = vmatpush1.msra.mxu0 0.0
    %1851 = vmatprep.subr.mxu0 0.0
    %1852 = vmatpush1.msra.mxu0 0.0
    %1853 = vmatprep.subr.mxu0 0.0
    %1854 = vmatpush1.msra.mxu0 0.0
    %1855 = vmatprep.subr.mxu0 0.0
    %1856 = vmatpush1.msra.mxu0 0.0
    %1857 = vmatprep.subr.mxu0 0.0
    %1858 = vmatpush1.msra.mxu0 0.0
    %1859 = vmatprep.subr.mxu0 0.0
    %1860 = vmatpush1.msra.mxu0 0.0
    %1861 = vmatprep.subr.mxu0 0.0
    %1862 = vmatpush1.msra.mxu0 0.0
    %1863 = vmatprep.subr.mxu0 0.0
    %1864 = vmatpush1.msra.mxu0 0.0
    %1865 = vmatprep.subr.mxu0 0.0
    %1866 = vmatpush1.msra.mxu0 0.0
    %1867 = vmatprep.subr.mxu0 0.0
    %1868 = vmatpush1.msra.mxu0 0.0
    %1869 = vmatprep.subr.mxu0 0.0
    %1870 = vmatpush1.msra.mxu0 0.0
    %1871 = vmatprep.subr.mxu0 0.0
    %1872 = vmatpush1.msra.mxu0 0.0
    %1873 = vmatprep.subr.mxu0 0.0
    %1874 = vmatpush1.msra.mxu0 0.0
    %1875 = vmatprep.subr.mxu0 0.0
    %1876 = vmatpush1.msra.mxu0 0.0
    %1877 = vmatprep.subr.mxu0 0.0
    %1878 = vmatpush1.msra.mxu0 0.0
    %1879 = vmatprep.subr.mxu0 0.0
    %1880 = vmatpush1.msra.mxu0 0.0
    %1881 = vmatprep.subr.mxu0 0.0
    %1882 = vmatpush1.msra.mxu0 0.0
    %1883 = vmatprep.subr.mxu0 0.0
    %1884 = vmatpush1.msra.mxu0 0.0
    %1885 = vmatprep.subr.mxu0 0.0
    %1886 = vmatpush1.msra.mxu0 0.0
    %1887 = vmatprep.mubr.f32.mxu0 0.0
    %1888 = vmatmul.mubr.f32.gmra.mrb[0].mxu0 %v1821
    %v1889 = vpop.f32.mrb[0].mxu0
    %v1890 = vadd.f32 0.0, %v1889
    %v1891 = vpop.f32.mrb[0].mxu0
    %1892 = vdwg.mxu0
    %v1893 = vadd.f32 %v1814, %v1890
    %v1894 = vxor.u32 %v1893, 2147483648
    %v1895 = vmul.f32 %v1894, 1.442695
    %v1896 = vpow.pop %v1895
    %v1897 = vadd.f32 %v1896, 1.0
    %v1898 = vrcp.pop %v1897
    %v1899 = vmul.f32 1.0, %v1898
    %v1900 = vtanh.pop %v1893
    %v1901 = vld [vmem:[#allocation5] sm:$0xff]
    %1903 = vrot.lane.b32.xlu0 %v1901, 32
    %v1904 = vpop.permute.xlu0 %1903
    %v1906 = vmul.f32 %v1899, %v1904
    %1908 = vrot.lane.b32.xlu0 %v1900, 32
    %v1909 = vpop.permute.xlu0 %1908
    %v1911 = vmul.f32 %v1899, %v1909
    %1913 = vrot.lane.b32.xlu0 %v1911, 32
    %v1914 = vpop.permute.xlu0 %1913
    %v1916 = vadd.f32 %v1906, %v1914
    %v1917 = vtanh.pop %v1916
    %1919 = vrot.lane.b32.xlu0 %v1917, 32
    %v1920 = vpop.permute.xlu0 %1919
    %v1922 = vmul.f32 %v1899, %v1920
    %1924 = vrot.lane.b32.xlu0 %v1916, 96
    %v1925 = vpop.permute.xlu0 %1924
    %1927 = vst.msk [vmem:[#allocation5] sm:$0xff] %vm203, %v1925
    %1929 = vrot.lane.b32.xlu0 %v1922, 64
    %v1930 = vpop.permute.xlu0 %1929
    %1932 = vst.msk [vmem:[#allocation4] sm:$0xff] %vm203, %v1930
    %v1933 = vld [vmem:[%s814] sm:$0xff]
    %v1934 = vld [vmem:[#allocation4] sm:$0xff]
    %v1935 = vld [vmem:[%s5] sm:$0xff]
    %v1936 = vld [vmem:[%s5 + $0x8] sm:$0xff]
    %v1937 = vld [vmem:[%s5 + $0x10] sm:$0xff]
    %v1938 = vld [vmem:[%s5 + $0x18] sm:$0xff]
    %v1940 = vsel %vm203, %v1934, 0
    %1942 = vmatprep.subr.mxu0 0.0
    %1943 = vmatpush1.msra.mxu0 %v1935
    %1944 = vmatprep.subr.mxu0 0.0
    %1945 = vmatpush1.msra.mxu0 %v1936
    %1946 = vmatprep.subr.mxu0 0.0
    %1947 = vmatpush1.msra.mxu0 %v1937
    %1948 = vmatprep.subr.mxu0 0.0
    %1949 = vmatpush1.msra.mxu0 %v1938
    %1950 = vmatprep.subr.mxu0 0.0
    %1951 = vmatpush1.msra.mxu0 0.0
    %1952 = vmatprep.subr.mxu0 0.0
    %1953 = vmatpush1.msra.mxu0 0.0
    %1954 = vmatprep.subr.mxu0 0.0
    %1955 = vmatpush1.msra.mxu0 0.0
    %1956 = vmatprep.subr.mxu0 0.0
    %1957 = vmatpush1.msra.mxu0 0.0
    %1958 = vmatprep.subr.mxu0 0.0
    %1959 = vmatpush1.msra.mxu0 0.0
    %1960 = vmatprep.subr.mxu0 0.0
    %1961 = vmatpush1.msra.mxu0 0.0
    %1962 = vmatprep.subr.mxu0 0.0
    %1963 = vmatpush1.msra.mxu0 0.0
    %1964 = vmatprep.subr.mxu0 0.0
    %1965 = vmatpush1.msra.mxu0 0.0
    %1966 = vmatprep.subr.mxu0 0.0
    %1967 = vmatpush1.msra.mxu0 0.0
    %1968 = vmatprep.subr.mxu0 0.0
    %1969 = vmatpush1.msra.mxu0 0.0
    %1970 = vmatprep.subr.mxu0 0.0
    %1971 = vmatpush1.msra.mxu0 0.0
    %1972 = vmatprep.subr.mxu0 0.0
    %1973 = vmatpush1.msra.mxu0 0.0
    %1974 = vmatprep.subr.mxu0 0.0
    %1975 = vmatpush1.msra.mxu0 0.0
    %1976 = vmatprep.subr.mxu0 0.0
    %1977 = vmatpush1.msra.mxu0 0.0
    %1978 = vmatprep.subr.mxu0 0.0
    %1979 = vmatpush1.msra.mxu0 0.0
    %1980 = vmatprep.subr.mxu0 0.0
    %1981 = vmatpush1.msra.mxu0 0.0
    %1982 = vmatprep.subr.mxu0 0.0
    %1983 = vmatpush1.msra.mxu0 0.0
    %1984 = vmatprep.subr.mxu0 0.0
    %1985 = vmatpush1.msra.mxu0 0.0
    %1986 = vmatprep.subr.mxu0 0.0
    %1987 = vmatpush1.msra.mxu0 0.0
    %1988 = vmatprep.subr.mxu0 0.0
    %1989 = vmatpush1.msra.mxu0 0.0
    %1990 = vmatprep.subr.mxu0 0.0
    %1991 = vmatpush1.msra.mxu0 0.0
    %1992 = vmatprep.subr.mxu0 0.0
    %1993 = vmatpush1.msra.mxu0 0.0
    %1994 = vmatprep.subr.mxu0 0.0
    %1995 = vmatpush1.msra.mxu0 0.0
    %1996 = vmatprep.subr.mxu0 0.0
    %1997 = vmatpush1.msra.mxu0 0.0
    %1998 = vmatprep.subr.mxu0 0.0
    %1999 = vmatpush1.msra.mxu0 0.0
    %2000 = vmatprep.subr.mxu0 0.0
    %2001 = vmatpush1.msra.mxu0 0.0
    %2002 = vmatprep.subr.mxu0 0.0
    %2003 = vmatpush1.msra.mxu0 0.0
    %2004 = vmatprep.subr.mxu0 0.0
    %2005 = vmatpush1.msra.mxu0 0.0
    %2006 = vmatprep.mubr.f32.mxu0 0.0
    %2007 = vmatmul.mubr.f32.gmra.mrb[0].mxu0 %v1940
    %v2008 = vpop.f32.mrb[0].mxu0
    %v2009 = vadd.f32 0.0, %v2008
    %v2010 = vpop.f32.mrb[0].mxu0
    %2011 = vdwg.mxu0
    %v2012 = vadd.f32 %v1933, %v2009
    %v2013 = vxor.u32 %v2012, 2147483648
    %v2014 = vmul.f32 %v2013, 1.442695
    %v2015 = vpow.pop %v2014
    %v2016 = vadd.f32 %v2015, 1.0
    %v2017 = vrcp.pop %v2016
    %v2018 = vmul.f32 1.0, %v2017
    %v2019 = vtanh.pop %v2012
    %v2020 = vld [vmem:[#allocation5] sm:$0xff]
    %2022 = vrot.lane.b32.xlu0 %v2020, 32
    %v2023 = vpop.permute.xlu0 %2022
    %v2025 = vmul.f32 %v2018, %v2023
    %2027 = vrot.lane.b32.xlu0 %v2019, 32
    %v2028 = vpop.permute.xlu0 %2027
    %v2030 = vmul.f32 %v2018, %v2028
    %2032 = vrot.lane.b32.xlu0 %v2030, 32
    %v2033 = vpop.permute.xlu0 %2032
    %v2035 = vadd.f32 %v2025, %v2033
    %v2036 = vtanh.pop %v2035
    %2038 = vrot.lane.b32.xlu0 %v2036, 32
    %v2039 = vpop.permute.xlu0 %2038
    %v2041 = vmul.f32 %v2018, %v2039
    %2043 = vrot.lane.b32.xlu0 %v2035, 96
    %v2044 = vpop.permute.xlu0 %2043
    %2046 = vst.msk [vmem:[#allocation5] sm:$0xff] %vm203, %v2044
    %2048 = vrot.lane.b32.xlu0 %v2041, 64
    %v2049 = vpop.permute.xlu0 %2048
    %2051 = vst.msk [vmem:[#allocation4] sm:$0xff] %vm203, %v2049
    %v2052 = vld [vmem:[%s936] sm:$0xff]
    %v2053 = vld [vmem:[#allocation4] sm:$0xff]
    %v2054 = vld [vmem:[%s5] sm:$0xff]
    %v2055 = vld [vmem:[%s5 + $0x8] sm:$0xff]
    %v2056 = vld [vmem:[%s5 + $0x10] sm:$0xff]
    %v2057 = vld [vmem:[%s5 + $0x18] sm:$0xff]
    %v2059 = vsel %vm203, %v2053, 0
    %2061 = vmatprep.subr.mxu0 0.0
    %2062 = vmatpush1.msra.mxu0 %v2054
    %2063 = vmatprep.subr.mxu0 0.0
    %2064 = vmatpush1.msra.mxu0 %v2055
    %2065 = vmatprep.subr.mxu0 0.0
    %2066 = vmatpush1.msra.mxu0 %v2056
    %2067 = vmatprep.subr.mxu0 0.0
    %2068 = vmatpush1.msra.mxu0 %v2057
    %2069 = vmatprep.subr.mxu0 0.0
    %2070 = vmatpush1.msra.mxu0 0.0
    %2071 = vmatprep.subr.mxu0 0.0
    %2072 = vmatpush1.msra.mxu0 0.0
    %2073 = vmatprep.subr.mxu0 0.0
    %2074 = vmatpush1.msra.mxu0 0.0
    %2075 = vmatprep.subr.mxu0 0.0
    %2076 = vmatpush1.msra.mxu0 0.0
    %2077 = vmatprep.subr.mxu0 0.0
    %2078 = vmatpush1.msra.mxu0 0.0
    %2079 = vmatprep.subr.mxu0 0.0
    %2080 = vmatpush1.msra.mxu0 0.0
    %2081 = vmatprep.subr.mxu0 0.0
    %2082 = vmatpush1.msra.mxu0 0.0
    %2083 = vmatprep.subr.mxu0 0.0
    %2084 = vmatpush1.msra.mxu0 0.0
    %2085 = vmatprep.subr.mxu0 0.0
    %2086 = vmatpush1.msra.mxu0 0.0
    %2087 = vmatprep.subr.mxu0 0.0
    %2088 = vmatpush1.msra.mxu0 0.0
    %2089 = vmatprep.subr.mxu0 0.0
    %2090 = vmatpush1.msra.mxu0 0.0
    %2091 = vmatprep.subr.mxu0 0.0
    %2092 = vmatpush1.msra.mxu0 0.0
    %2093 = vmatprep.subr.mxu0 0.0
    %2094 = vmatpush1.msra.mxu0 0.0
    %2095 = vmatprep.subr.mxu0 0.0
    %2096 = vmatpush1.msra.mxu0 0.0
    %2097 = vmatprep.subr.mxu0 0.0
    %2098 = vmatpush1.msra.mxu0 0.0
    %2099 = vmatprep.subr.mxu0 0.0
    %2100 = vmatpush1.msra.mxu0 0.0
    %2101 = vmatprep.subr.mxu0 0.0
    %2102 = vmatpush1.msra.mxu0 0.0
    %2103 = vmatprep.subr.mxu0 0.0
    %2104 = vmatpush1.msra.mxu0 0.0
    %2105 = vmatprep.subr.mxu0 0.0
    %2106 = vmatpush1.msra.mxu0 0.0
    %2107 = vmatprep.subr.mxu0 0.0
    %2108 = vmatpush1.msra.mxu0 0.0
    %2109 = vmatprep.subr.mxu0 0.0
    %2110 = vmatpush1.msra.mxu0 0.0
    %2111 = vmatprep.subr.mxu0 0.0
    %2112 = vmatpush1.msra.mxu0 0.0
    %2113 = vmatprep.subr.mxu0 0.0
    %2114 = vmatpush1.msra.mxu0 0.0
    %2115 = vmatprep.subr.mxu0 0.0
    %2116 = vmatpush1.msra.mxu0 0.0
    %2117 = vmatprep.subr.mxu0 0.0
    %2118 = vmatpush1.msra.mxu0 0.0
    %2119 = vmatprep.subr.mxu0 0.0
    %2120 = vmatpush1.msra.mxu0 0.0
    %2121 = vmatprep.subr.mxu0 0.0
    %2122 = vmatpush1.msra.mxu0 0.0
    %2123 = vmatprep.subr.mxu0 0.0
    %2124 = vmatpush1.msra.mxu0 0.0
    %2125 = vmatprep.mubr.f32.mxu0 0.0
    %2126 = vmatmul.mubr.f32.gmra.mrb[0].mxu0 %v2059
    %v2127 = vpop.f32.mrb[0].mxu0
    %v2128 = vadd.f32 0.0, %v2127
    %v2129 = vpop.f32.mrb[0].mxu0
    %2130 = vdwg.mxu0
    %v2131 = vadd.f32 %v2052, %v2128
    %v2132 = vxor.u32 %v2131, 2147483648
    %v2133 = vmul.f32 %v2132, 1.442695
    %v2134 = vpow.pop %v2133
    %v2135 = vadd.f32 %v2134, 1.0
    %v2136 = vrcp.pop %v2135
    %v2137 = vmul.f32 1.0, %v2136
    %v2138 = vtanh.pop %v2131
    %v2139 = vld [vmem:[#allocation5] sm:$0xff]
    %2141 = vrot.lane.b32.xlu0 %v2139, 32
    %v2142 = vpop.permute.xlu0 %2141
    %v2144 = vmul.f32 %v2137, %v2142
    %2146 = vrot.lane.b32.xlu0 %v2138, 32
    %v2147 = vpop.permute.xlu0 %2146
    %v2149 = vmul.f32 %v2137, %v2147
    %2151 = vrot.lane.b32.xlu0 %v2149, 32
    %v2152 = vpop.permute.xlu0 %2151
    %v2154 = vadd.f32 %v2144, %v2152
    %v2155 = vtanh.pop %v2154
    %2157 = vrot.lane.b32.xlu0 %v2155, 32
    %v2158 = vpop.permute.xlu0 %2157
    %v2160 = vmul.f32 %v2137, %v2158
    %2162 = vrot.lane.b32.xlu0 %v2154, 96
    %v2163 = vpop.permute.xlu0 %2162
    %2165 = vst.msk [vmem:[#allocation5] sm:$0xff] %vm203, %v2163
    %2167 = vrot.lane.b32.xlu0 %v2160, 64
    %v2168 = vpop.permute.xlu0 %2167
    %2170 = vst.msk [vmem:[#allocation4] sm:$0xff] %vm203, %v2168
    %v2171 = vld [vmem:[%s1058] sm:$0xff]
    %v2172 = vld [vmem:[#allocation4] sm:$0xff]
    %v2173 = vld [vmem:[%s5] sm:$0xff]
    %v2174 = vld [vmem:[%s5 + $0x8] sm:$0xff]
    %v2175 = vld [vmem:[%s5 + $0x10] sm:$0xff]
    %v2176 = vld [vmem:[%s5 + $0x18] sm:$0xff]
    %v2178 = vsel %vm203, %v2172, 0
    %2180 = vmatprep.subr.mxu0 0.0
    %2181 = vmatpush1.msra.mxu0 %v2173
    %2182 = vmatprep.subr.mxu0 0.0
    %2183 = vmatpush1.msra.mxu0 %v2174
    %2184 = vmatprep.subr.mxu0 0.0
    %2185 = vmatpush1.msra.mxu0 %v2175
    %2186 = vmatprep.subr.mxu0 0.0
    %2187 = vmatpush1.msra.mxu0 %v2176
    %2188 = vmatprep.subr.mxu0 0.0
    %2189 = vmatpush1.msra.mxu0 0.0
    %2190 = vmatprep.subr.mxu0 0.0
    %2191 = vmatpush1.msra.mxu0 0.0
    %2192 = vmatprep.subr.mxu0 0.0
    %2193 = vmatpush1.msra.mxu0 0.0
    %2194 = vmatprep.subr.mxu0 0.0
    %2195 = vmatpush1.msra.mxu0 0.0
    %2196 = vmatprep.subr.mxu0 0.0
    %2197 = vmatpush1.msra.mxu0 0.0
    %2198 = vmatprep.subr.mxu0 0.0
    %2199 = vmatpush1.msra.mxu0 0.0
    %2200 = vmatprep.subr.mxu0 0.0
    %2201 = vmatpush1.msra.mxu0 0.0
    %2202 = vmatprep.subr.mxu0 0.0
    %2203 = vmatpush1.msra.mxu0 0.0
    %2204 = vmatprep.subr.mxu0 0.0
    %2205 = vmatpush1.msra.mxu0 0.0
    %2206 = vmatprep.subr.mxu0 0.0
    %2207 = vmatpush1.msra.mxu0 0.0
    %2208 = vmatprep.subr.mxu0 0.0
    %2209 = vmatpush1.msra.mxu0 0.0
    %2210 = vmatprep.subr.mxu0 0.0
    %2211 = vmatpush1.msra.mxu0 0.0
    %2212 = vmatprep.subr.mxu0 0.0
    %2213 = vmatpush1.msra.mxu0 0.0
    %2214 = vmatprep.subr.mxu0 0.0
    %2215 = vmatpush1.msra.mxu0 0.0
    %2216 = vmatprep.subr.mxu0 0.0
    %2217 = vmatpush1.msra.mxu0 0.0
    %2218 = vmatprep.subr.mxu0 0.0
    %2219 = vmatpush1.msra.mxu0 0.0
    %2220 = vmatprep.subr.mxu0 0.0
    %2221 = vmatpush1.msra.mxu0 0.0
    %2222 = vmatprep.subr.mxu0 0.0
    %2223 = vmatpush1.msra.mxu0 0.0
    %2224 = vmatprep.subr.mxu0 0.0
    %2225 = vmatpush1.msra.mxu0 0.0
    %2226 = vmatprep.subr.mxu0 0.0
    %2227 = vmatpush1.msra.mxu0 0.0
    %2228 = vmatprep.subr.mxu0 0.0
    %2229 = vmatpush1.msra.mxu0 0.0
    %2230 = vmatprep.subr.mxu0 0.0
    %2231 = vmatpush1.msra.mxu0 0.0
    %2232 = vmatprep.subr.mxu0 0.0
    %2233 = vmatpush1.msra.mxu0 0.0
    %2234 = vmatprep.subr.mxu0 0.0
    %2235 = vmatpush1.msra.mxu0 0.0
    %2236 = vmatprep.subr.mxu0 0.0
    %2237 = vmatpush1.msra.mxu0 0.0
    %2238 = vmatprep.subr.mxu0 0.0
    %2239 = vmatpush1.msra.mxu0 0.0
    %2240 = vmatprep.subr.mxu0 0.0
    %2241 = vmatpush1.msra.mxu0 0.0
    %2242 = vmatprep.subr.mxu0 0.0
    %2243 = vmatpush1.msra.mxu0 0.0
    %2244 = vmatprep.mubr.f32.mxu0 0.0
    %2245 = vmatmul.mubr.f32.gmra.mrb[0].mxu0 %v2178
    %v2246 = vpop.f32.mrb[0].mxu0
    %v2247 = vadd.f32 0.0, %v2246
    %v2248 = vpop.f32.mrb[0].mxu0
    %2249 = vdwg.mxu0
    %v2250 = vadd.f32 %v2171, %v2247
    %v2251 = vxor.u32 %v2250, 2147483648
    %v2252 = vmul.f32 %v2251, 1.442695
    %v2253 = vpow.pop %v2252
    %v2254 = vadd.f32 %v2253, 1.0
    %v2255 = vrcp.pop %v2254
    %v2256 = vmul.f32 1.0, %v2255
    %v2257 = vtanh.pop %v2250
    %v2258 = vld [vmem:[#allocation5] sm:$0xff]
    %2260 = vrot.lane.b32.xlu0 %v2258, 32
    %v2261 = vpop.permute.xlu0 %2260
    %v2263 = vmul.f32 %v2256, %v2261
    %2265 = vrot.lane.b32.xlu0 %v2257, 32
    %v2266 = vpop.permute.xlu0 %2265
    %v2268 = vmul.f32 %v2256, %v2266
    %2270 = vrot.lane.b32.xlu0 %v2268, 32
    %v2271 = vpop.permute.xlu0 %2270
    %v2273 = vadd.f32 %v2263, %v2271
    %v2274 = vtanh.pop %v2273
    %2276 = vrot.lane.b32.xlu0 %v2274, 32
    %v2277 = vpop.permute.xlu0 %2276
    %v2279 = vmul.f32 %v2256, %v2277
    %2281 = vrot.lane.b32.xlu0 %v2273, 96
    %v2282 = vpop.permute.xlu0 %2281
    %2284 = vst.msk [vmem:[#allocation5] sm:$0xff] %vm203, %v2282
    %2286 = vrot.lane.b32.xlu0 %v2279, 64
    %v2287 = vpop.permute.xlu0 %2286
    %2289 = vst.msk [vmem:[#allocation4] sm:$0xff] %vm203, %v2287
    %v2290 = vld [vmem:[#allocation4] sm:$0xff]
    %v2291 = vld [vmem:[%s7] sm:$0xff]
    %v2292 = vld [vmem:[%s7 + $0x8] sm:$0xff]
    %v2293 = vld [vmem:[%s7 + $0x10] sm:$0xff]
    %v2294 = vld [vmem:[%s7 + $0x18] sm:$0xff]
    %v2295 = vld [vmem:[#allocation6] sm:$0x1]
    %v2297 = vlaneseq
    %v2298 = vshrl.u32 %v2297, 7
    %v2299 = vsub.s32 0, %v2298
    %v2300 = vrot.slane %v2295, %v2299
    %v2303 = vsel %vm203, %v2290, 0
    %2305 = vmatprep.subr.mxu0 0.0
    %2306 = vmatpush1.msra.mxu0 %v2291
    %2307 = vmatprep.subr.mxu0 0.0
    %2308 = vmatpush1.msra.mxu0 %v2292
    %2309 = vmatprep.subr.mxu0 0.0
    %2310 = vmatpush1.msra.mxu0 %v2293
    %2311 = vmatprep.subr.mxu0 0.0
    %2312 = vmatpush1.msra.mxu0 %v2294
    %2313 = vmatprep.subr.mxu0 0.0
    %2314 = vmatpush1.msra.mxu0 0.0
    %2315 = vmatprep.subr.mxu0 0.0
    %2316 = vmatpush1.msra.mxu0 0.0
    %2317 = vmatprep.subr.mxu0 0.0
    %2318 = vmatpush1.msra.mxu0 0.0
    %2319 = vmatprep.subr.mxu0 0.0
    %2320 = vmatpush1.msra.mxu0 0.0
    %2321 = vmatprep.subr.mxu0 0.0
    %2322 = vmatpush1.msra.mxu0 0.0
    %2323 = vmatprep.subr.mxu0 0.0
    %2324 = vmatpush1.msra.mxu0 0.0
    %2325 = vmatprep.subr.mxu0 0.0
    %2326 = vmatpush1.msra.mxu0 0.0
    %2327 = vmatprep.subr.mxu0 0.0
    %2328 = vmatpush1.msra.mxu0 0.0
    %2329 = vmatprep.subr.mxu0 0.0
    %2330 = vmatpush1.msra.mxu0 0.0
    %2331 = vmatprep.subr.mxu0 0.0
    %2332 = vmatpush1.msra.mxu0 0.0
    %2333 = vmatprep.subr.mxu0 0.0
    %2334 = vmatpush1.msra.mxu0 0.0
    %2335 = vmatprep.subr.mxu0 0.0
    %2336 = vmatpush1.msra.mxu0 0.0
    %2337 = vmatprep.subr.mxu0 0.0
    %2338 = vmatpush1.msra.mxu0 0.0
    %2339 = vmatprep.subr.mxu0 0.0
    %2340 = vmatpush1.msra.mxu0 0.0
    %2341 = vmatprep.subr.mxu0 0.0
    %2342 = vmatpush1.msra.mxu0 0.0
    %2343 = vmatprep.subr.mxu0 0.0
    %2344 = vmatpush1.msra.mxu0 0.0
    %2345 = vmatprep.subr.mxu0 0.0
    %2346 = vmatpush1.msra.mxu0 0.0
    %2347 = vmatprep.subr.mxu0 0.0
    %2348 = vmatpush1.msra.mxu0 0.0
    %2349 = vmatprep.subr.mxu0 0.0
    %2350 = vmatpush1.msra.mxu0 0.0
    %2351 = vmatprep.subr.mxu0 0.0
    %2352 = vmatpush1.msra.mxu0 0.0
    %2353 = vmatprep.subr.mxu0 0.0
    %2354 = vmatpush1.msra.mxu0 0.0
    %2355 = vmatprep.subr.mxu0 0.0
    %2356 = vmatpush1.msra.mxu0 0.0
    %2357 = vmatprep.subr.mxu0 0.0
    %2358 = vmatpush1.msra.mxu0 0.0
    %2359 = vmatprep.subr.mxu0 0.0
    %2360 = vmatpush1.msra.mxu0 0.0
    %2361 = vmatprep.subr.mxu0 0.0
    %2362 = vmatpush1.msra.mxu0 0.0
    %2363 = vmatprep.subr.mxu0 0.0
    %2364 = vmatpush1.msra.mxu0 0.0
    %2365 = vmatprep.subr.mxu0 0.0
    %2366 = vmatpush1.msra.mxu0 0.0
    %2367 = vmatprep.subr.mxu0 0.0
    %2368 = vmatpush1.msra.mxu0 0.0
    %2369 = vmatprep.mubr.f32.mxu0 0.0
    %2370 = vmatmul.mubr.f32.gmra.mrb[0].mxu0 %v2303
    %v2371 = vpop.f32.mrb[0].mxu0
    %v2372 = vadd.f32 %v2300, %v2371
    %v2373 = vpop.f32.mrb[0].mxu0
    %2374 = vdwg.mxu0
    %vm2375 = vcmask 7168
    %2376 = vst.msk [vmem:[%s9] sm:$0xff] %vm2375, %v2372
    // Predicated region
    $region42: #{tpu_custom_call.1} parent=1 // pred_check
      _
    $region43: #{tpu_custom_call.1} parent=1 // pred_check_branch
      %2378 = sbr.rel (0) target = $region45
    $region44: #{tpu_custom_call.1} parent=1 // pred_region
      _
    $region45: #{tpu_custom_call.1} parent=1 // pred_fallthru
      _
    // Predicated region
    $region46: #{tpu_custom_call.1} parent=1 // pred_check
      _
    $region47: #{tpu_custom_call.1} parent=1 // pred_check_branch
      %2380 = sbr.rel (0) target = $region49
    $region48: #{tpu_custom_call.1} parent=1 // pred_region
      _
    $region49: #{tpu_custom_call.1} parent=1 // pred_fallthru
      _
    %2381 = vsyncpa [#allocation8], 1

</llo_original>
